<compile_context>
chip_gen: v5e
topology: v5e:2x2
jax: 0.10.0
libtpu: 0.0.40
codegen_flags: <defaults>
</compile_context>

<pallas_src>
import jax
import jax.numpy as jnp
from jax import lax
from jax.experimental import pallas as pl
from jax.experimental.pallas import tpu as pltpu

# RNet geometry (standard 3x24x24 input).
H0, W0, C0 = 24, 24, 3
C1, C2, C3 = 28, 48, 64
K1 = 3 * 3 * C0            # conv1 im2col contraction size (27)
H1, W1 = 22, 22            # conv1 3x3 valid
HP1, WP1 = 11, 11          # maxpool k3 s2 ceil_mode
H2, W2 = 9, 9              # conv2 3x3 valid
HP2, WP2 = 4, 4            # maxpool k3 s2 ceil_mode
H3, W3 = 3, 3              # conv3 2x2 valid
HID = 128
NHEAD = 16                 # 2 (cls) + 4 (bbox) + 10 (landmark), fused
NOUT = 128                 # head columns padded to one full lane group (dense store)

B_TILE = 32                # images per grid step (sublane dim; multiple of 8)


def _prelu(v, alpha):
    return jnp.where(v >= 0.0, v, alpha * v)


def _pool_row_w(hmax, win, wout):
    """Max over W windows [2j, 2j+1, min(2j+2, win-1)]; hmax: (win, B, C) f32."""
    half = win // 2
    pairs = hmax[:2 * half].reshape((half, 2) + hmax.shape[1:])
    ev = pairs[:, 0]                                   # columns 0, 2, 4, ...
    od = pairs[:, 1]                                   # columns 1, 3, 5, ...
    a = ev[:wout]                                      # 2j
    b = od[:wout]                                      # 2j + 1
    last = min(2 * (wout - 1) + 2, win - 1)            # ceil_mode clamp (in-window)
    c = jnp.concatenate([ev[1:wout], hmax[last:last + 1]], axis=0)   # 2j + 2
    return jnp.maximum(jnp.maximum(a, b), c)


def _pool3s2_ceil(src_ref, dst_ref, hin, win, hout, wout):
    """MaxPool2d(kernel=3, stride=2, ceil_mode=True) on (H, W, B, C).

    Max tree runs in the source dtype (f32 -> v5e-friendly VPU); only the final
    store casts to the destination dtype (bf16 feeds the next matmul's LHS).
    """
    def row(i, carry):
        r0 = src_ref[2 * i]
        r1 = src_ref[jnp.minimum(2 * i + 1, hin - 1)]
        r2 = src_ref[jnp.minimum(2 * i + 2, hin - 1)]
        hmax = jnp.maximum(jnp.maximum(r0, r1), r2)    # (win, B, C) f32
        dst_ref[i] = _pool_row_w(hmax, win, wout).astype(dst_ref.dtype)
        return carry
    lax.fori_loop(0, hout, row, 0)


def _conv_taps(src_ref, dst_ref, w_ref, b_ref, alpha, hout, wout, kh_sz, kw_sz):
    """Valid conv + PReLU with tap weights resident in vregs.

    src_ref (Hin, Win, B, Cin) bf16 -> dst_ref (hout, wout, B, Cout).
    Per output row: each needed source row is loaded once, kw windows are value
    slices, and all kh*kw taps are accumulated in one chained sum of dots.
    """
    bt = dst_ref.shape[2]
    cin = w_ref.shape[2]
    cout = w_ref.shape[3]
    w_taps = [w_ref[kh, kw] for kh in range(kh_sz) for kw in range(kw_sz)]  # hoisted
    bias = b_ref[...]                                  # (1, cout) f32, hoisted

    def row(ho, carry):
        acc = None
        for kh in range(kh_sz):
            src_row = src_ref[ho + kh]                 # (Win, B, Cin) bf16
            for kw in range(kw_sz):
                lhs = src_row[kw:kw + wout].reshape(wout * bt, cin)
                d = jnp.dot(lhs, w_taps[kh * kw_sz + kw],
                            preferred_element_type=jnp.float32)
                acc = d if acc is None else acc + d    # chained sum (MRB-friendly on v7x)
        y = _prelu(acc + bias, alpha)
        dst_ref[ho] = y.astype(dst_ref.dtype).reshape(wout, bt, cout)
        return carry
    lax.fori_loop(0, hout, row, 0)


def rnet_kernel(alpha_ref,                             # SMEM (3,)
                x_ref,                                 # VMEM (22, 22, B_TILE, 27) bf16 (im2col)
                w1_ref, b1_ref, w2_ref, b2_ref, w3_ref, b3_ref,
                fcw_ref, fcb_ref, wh_ref, bh_ref,
                out_ref,                               # VMEM (B_TILE, 128) f32
                c1, p1, c2, p2, c3):                   # VMEM scratch
    bt = out_ref.shape[0]
    a1 = alpha_ref[0]
    a2 = alpha_ref[1]
    a3 = alpha_ref[2]

    # conv1 + prelu1: one (W1*B, 27) x (27, 28) matmul per output row.
    w1 = w1_ref[...]                                   # (27, 28) bf16, hoisted
    b1 = b1_ref[...]                                   # (1, 28) f32, hoisted

    def conv1_row(ho, carry):
        lhs = x_ref[ho].reshape(W1 * bt, K1)           # bf16, pure layout relabel
        y = jnp.dot(lhs, w1, preferred_element_type=jnp.float32) + b1
        c1[ho] = _prelu(y, a1).reshape(W1, bt, C1)
        return carry
    lax.fori_loop(0, H1, conv1_row, 0)

    # pool1 -> conv2 + prelu2 -> pool2 -> conv3 + prelu3
    _pool3s2_ceil(c1, p1, H1, W1, HP1, WP1)
    _conv_taps(p1, c2, w2_ref, b2_ref, a2, H2, W2, 3, 3)
    _pool3s2_ceil(c2, p2, H2, W2, HP2, WP2)
    _conv_taps(p2, c3, w3_ref, b3_ref, a3, H3, W3, 2, 2)

    # fully connected: flatten order (C, H, W) is baked into fcw layout (H, W, C, 128)
    feat = None
    for h in range(H3):
        for w in range(W3):
            d = jnp.dot(c3[h, w], fcw_ref[h, w], preferred_element_type=jnp.float32)
            feat = d if feat is None else feat + d     # chained sum of 9 dots
    feat = feat + fcb_ref[...]                         # (B_TILE, 128) f32

    # fused heads, padded to 128 columns: one matmul, one unmasked lane-dense store
    out_ref[...] = (jnp.dot(feat.astype(jnp.bfloat16), wh_ref[...],
                            preferred_element_type=jnp.float32) + bh_ref[...])


def _im2col_conv1(x_nchw_f32):
    """Fused NCHW -> conv1 patch tensor: (B, 3, 24, 24) -> (22, 22, B, 27) bf16."""
    x = jnp.transpose(x_nchw_f32, (0, 2, 3, 1))                  # (B, 24, 24, 3)
    cols = [x[:, kh:kh + H1, kw:kw + W1, :]
            for kh in range(3) for kw in range(3)]               # (kh, kw, ci) order
    patches = jnp.concatenate(cols, axis=-1)                     # (B, 22, 22, 27)
    return jnp.transpose(patches, (1, 2, 0, 3)).astype(jnp.bfloat16)


def rnet_forward(x_nchw, params, b_tile=B_TILE):
    """x_nchw: (B, 3, 24, 24) float32, PyTorch layout. Returns (cls, bbox, lmk)."""
    (alphas, w1, b1, w2, b2, w3, b3, fcw, fcb, wh, bh) = params
    B = x_nchw.shape[0]
    bp = ((B + b_tile - 1) // b_tile) * b_tile
    x = x_nchw.astype(jnp.float32)
    if bp != B:
        x = jnp.pad(x, ((0, bp - B), (0, 0), (0, 0), (0, 0)))
    xcol = _im2col_conv1(x)                                      # (22, 22, bp, 27) bf16

    # Matmul operands in bf16 (f32 accumulation); biases stay f32.
    w1k = w1.reshape(K1, C1).astype(jnp.bfloat16)                # (27, 28)
    w2k = w2.astype(jnp.bfloat16)                                # (3, 3, 28, 48)
    w3k = w3.astype(jnp.bfloat16)                                # (2, 2, 48, 64)
    fcwk = fcw.astype(jnp.bfloat16)                              # (3, 3, 64, 128)
    whk = wh.astype(jnp.bfloat16)                                # (128, 128) padded heads

    def full_spec(a):
        zeros = (0,) * a.ndim
        return pl.BlockSpec(a.shape, lambda i, z=zeros: z)

    in_specs = [
        pl.BlockSpec(memory_space=pltpu.MemorySpace.SMEM),               # prelu alphas
        pl.BlockSpec((H1, W1, b_tile, K1), lambda i: (0, 0, i, 0)),      # im2col image tile
    ] + [full_spec(p) for p in (w1k, b1, w2k, b2, w3k, b3, fcwk, fcb, whk, bh)]

    out = pl.pallas_call(
        rnet_kernel,
        out_shape=jax.ShapeDtypeStruct((bp, NOUT), jnp.float32),
        grid=(bp // b_tile,),
        in_specs=in_specs,
        out_specs=pl.BlockSpec((b_tile, NOUT), lambda i: (i, 0)),
        scratch_shapes=[
            pltpu.VMEM((H1, W1, b_tile, C1), jnp.float32),     # conv1 out (elementwise-heavy)
            pltpu.VMEM((HP1, WP1, b_tile, C1), jnp.bfloat16),  # pool1 out (conv2 LHS)
            pltpu.VMEM((H2, W2, b_tile, C2), jnp.float32),     # conv2 out
            pltpu.VMEM((HP2, WP2, b_tile, C2), jnp.bfloat16),  # pool2 out (conv3 LHS)
            pltpu.VMEM((H3, W3, b_tile, C3), jnp.bfloat16),    # conv3 out (FC LHS)
        ],
        compiler_params=pltpu.CompilerParams(
            dimension_semantics=("parallel",),        # batch blocks across TCs (v7x megacore)
            vmem_limit_bytes=48 * 1024 * 1024),       # padded footprint ~18 MiB at B_TILE=32
    )(alphas, xcol, w1k, b1, w2k, b2, w3k, b3, fcwk, fcb, whk, bh)

    out = out[:B]
    return out[:, 0:2], out[:, 2:6], out[:, 6:NHEAD]


def init_params(key):
    """Deterministic synthetic parameters matching the PyTorch module shapes."""
    ks = jax.random.split(key, 10)

    def kaiming_out(k, shape):      # PyTorch conv weight (Cout, Cin, KH, KW), fan_out, relu
        cout, _, kh, kw = shape
        fan_out = cout * kh * kw
        return jax.random.normal(k, shape, jnp.float32) * jnp.sqrt(2.0 / fan_out)

    def linear(k, out_f, in_f):     # PyTorch default Linear init (uniform)
        bound = float(in_f) ** -0.5
        kw_, kb_ = jax.random.split(k)
        w = jax.random.uniform(kw_, (out_f, in_f), jnp.float32, -bound, bound)
        b = jax.random.uniform(kb_, (out_f,), jnp.float32, -bound, bound)
        return w, b

    w1_t = kaiming_out(ks[0], (C1, C0, 3, 3))
    b1 = jax.random.uniform(ks[1], (C1,), jnp.float32, -0.1, 0.1)
    w2_t = kaiming_out(ks[2], (C2, C1, 3, 3))
    b2 = jax.random.uniform(ks[3], (C2,), jnp.float32, -0.1, 0.1)
    w3_t = kaiming_out(ks[4], (C3, C2, 2, 2))
    b3 = jax.random.uniform(ks[5], (C3,), jnp.float32, -0.1, 0.1)
    fcw_t, fcb = linear(ks[6], HID, C3 * H3 * W3)
    wc_t, bc = linear(ks[7], 2, HID)
    wb_t, bb = linear(ks[8], 4, HID)
    wl_t, bl = linear(ks[9], 10, HID)
    alphas = jnp.full((3,), 0.25, jnp.float32)                 # nn.PReLU() default

    # glue: PyTorch layouts -> kernel layouts
    w1 = jnp.transpose(w1_t, (2, 3, 1, 0))                     # (KH, KW, Cin, Cout)
    w2 = jnp.transpose(w2_t, (2, 3, 1, 0))
    w3 = jnp.transpose(w3_t, (2, 3, 1, 0))
    # fc weight (128, 576) with 576 = flatten of (C=64, H=3, W=3) -> (H, W, C, 128)
    fcw = jnp.transpose(fcw_t.reshape(HID, C3, H3, W3), (2, 3, 1, 0))
    # fused heads, padded to 128 cols for a lane-dense store: [cls(2)|bbox(4)|lmk(10)|0...]
    wh = jnp.concatenate([wc_t, wb_t, wl_t], axis=0).T         # (128, 16)
    wh = jnp.pad(wh, ((0, 0), (0, NOUT - NHEAD)))
    bh = jnp.pad(jnp.concatenate([bc, bb, bl]), (0, NOUT - NHEAD)).reshape(1, NOUT)

    return (alphas, w1, b1.reshape(1, -1), w2, b2.reshape(1, -1),
            w3, b3.reshape(1, -1), fcw, fcb.reshape(1, -1), wh, bh)


def rnet_reference(x_nchw, params):
    """Pure-JAX f32 reference (lax conv / reduce_window) for correctness check."""
    (alphas, w1, b1, w2, b2, w3, b3, fcw, fcb, wh, bh) = params
    x = jnp.transpose(x_nchw.astype(jnp.float32), (0, 2, 3, 1))       # NHWC

    def conv(v, w, b, a):
        y = lax.conv_general_dilated(v, w, (1, 1), 'VALID',
                                     dimension_numbers=('NHWC', 'HWIO', 'NHWC'),
                                     precision=lax.Precision.HIGHEST)
        y = y + b.reshape(1, 1, 1, -1)
        return jnp.where(y >= 0.0, y, a * y)

    def pool(v):                                               # k=3, s=2, ceil_mode=True
        return lax.reduce_window(v, -jnp.inf, lax.max, (1, 3, 3, 1), (1, 2, 2, 1),
                                 ((0, 0), (0, 1), (0, 1), (0, 0)))

    y = pool(conv(x, w1, b1, alphas[0]))
    y = pool(conv(y, w2, b2, alphas[1]))
    y = conv(y, w3, b3, alphas[2])
    b = y.shape[0]
    feat_in = jnp.transpose(y, (0, 3, 1, 2)).reshape(b, C3 * H3 * W3)       # (C,H,W) flatten
    fcw2 = jnp.transpose(fcw, (2, 0, 1, 3)).reshape(C3 * H3 * W3, HID)
    feat = jnp.dot(feat_in, fcw2, precision=lax.Precision.HIGHEST) + fcb
    out = jnp.dot(feat, wh, precision=lax.Precision.HIGHEST) + bh
    return out[:, 0:2], out[:, 2:6], out[:, 6:NHEAD]


if __name__ == "__main__":
    key = jax.random.PRNGKey(0)
    pkey, xkey = jax.random.split(key)
    params = init_params(pkey)
    x = jax.random.normal(xkey, (2, 3, 24, 24), jnp.float32)   # NCHW, like PyTorch

    cls_out, bbox_out, lmk_out = rnet_forward(x, params)
    jax.block_until_ready((cls_out, bbox_out, lmk_out))

    assert cls_out.shape == (2, 2)
    assert bbox_out.shape == (2, 4)
    assert lmk_out.shape == (2, 10)
    assert bool(jnp.all(jnp.isfinite(cls_out)))
    assert bool(jnp.all(jnp.isfinite(bbox_out)))
    assert bool(jnp.all(jnp.isfinite(lmk_out)))

    # bf16 matmul operands + f32 accumulation vs. full-f32 HIGHEST-precision reference.
    cls_r, box_r, lmk_r = rnet_reference(x, params)
    assert bool(jnp.allclose(cls_out, cls_r, atol=4e-2, rtol=4e-2))
    assert bool(jnp.allclose(bbox_out, box_r, atol=4e-2, rtol=4e-2))
    assert bool(jnp.allclose(lmk_out, lmk_r, atol=4e-2, rtol=4e-2))

    print("KERNEL_OK")
</pallas_src>

<mosaic_0001>
module attributes {stable_mosaic.version = 11 : i64} {
  func.func @rnet_kernel(%arg0: i32, %arg1: memref<3xf32, #tpu.memory_space<smem>>, %arg2: memref<22x22x32x27xbf16, #tpu.memory_space<vmem>>, %arg3: memref<27x28xbf16, #tpu.memory_space<vmem>>, %arg4: memref<1x28xf32, #tpu.memory_space<vmem>>, %arg5: memref<3x3x28x48xbf16, #tpu.memory_space<vmem>>, %arg6: memref<1x48xf32, #tpu.memory_space<vmem>>, %arg7: memref<2x2x48x64xbf16, #tpu.memory_space<vmem>>, %arg8: memref<1x64xf32, #tpu.memory_space<vmem>>, %arg9: memref<3x3x64x128xbf16, #tpu.memory_space<vmem>>, %arg10: memref<1x128xf32, #tpu.memory_space<vmem>>, %arg11: memref<128x128xbf16, #tpu.memory_space<vmem>>, %arg12: memref<1x128xf32, #tpu.memory_space<vmem>>, %arg13: memref<32x128xf32, #tpu.memory_space<vmem>>, %arg14: memref<22x22x32x28xf32, #tpu.memory_space<vmem>>, %arg15: memref<11x11x32x28xbf16, #tpu.memory_space<vmem>>, %arg16: memref<9x9x32x48xf32, #tpu.memory_space<vmem>>, %arg17: memref<4x4x32x48xbf16, #tpu.memory_space<vmem>>, %arg18: memref<3x3x32x64xbf16, #tpu.memory_space<vmem>>) attributes {dimension_semantics = [#tpu.dimension_semantics<parallel>], iteration_bounds = array<i64: 1>, scalar_prefetch = 0 : i64, scratch_operands = 5 : i64, tpu.core_type = #tpu.core_type<tc>, window_params = [{transform_indices = @transform_0, window_bounds = array<i64: 3>}, {transform_indices = @transform_1, window_bounds = array<i64: 22, 22, 32, 27>}, {pipeline_mode = #tpu.pipeline_mode<synchronous>, transform_indices = @transform_2, window_bounds = array<i64: 27, 28>}, {pipeline_mode = #tpu.pipeline_mode<synchronous>, transform_indices = @transform_3, window_bounds = array<i64: 1, 28>}, {pipeline_mode = #tpu.pipeline_mode<synchronous>, transform_indices = @transform_4, window_bounds = array<i64: 3, 3, 28, 48>}, {pipeline_mode = #tpu.pipeline_mode<synchronous>, transform_indices = @transform_5, window_bounds = array<i64: 1, 48>}, {pipeline_mode = #tpu.pipeline_mode<synchronous>, transform_indices = @transform_6, window_bounds = array<i64: 2, 2, 48, 64>}, {pipeline_mode = #tpu.pipeline_mode<synchronous>, transform_indices = @transform_7, window_bounds = array<i64: 1, 64>}, {pipeline_mode = #tpu.pipeline_mode<synchronous>, transform_indices = @transform_8, window_bounds = array<i64: 3, 3, 64, 128>}, {pipeline_mode = #tpu.pipeline_mode<synchronous>, transform_indices = @transform_9, window_bounds = array<i64: 1, 128>}, {pipeline_mode = #tpu.pipeline_mode<synchronous>, transform_indices = @transform_10, window_bounds = array<i64: 128, 128>}, {pipeline_mode = #tpu.pipeline_mode<synchronous>, transform_indices = @transform_11, window_bounds = array<i64: 1, 128>}, {transform_indices = @transform_12, window_bounds = array<i64: 32, 128>}]} {
    %c0 = arith.constant 0 : index
    %0 = memref.load %arg1[%c0] : memref<3xf32, #tpu.memory_space<smem>>
    %c1 = arith.constant 1 : index
    %1 = memref.load %arg1[%c1] : memref<3xf32, #tpu.memory_space<smem>>
    %c2 = arith.constant 2 : index
    %2 = memref.load %arg1[%c2] : memref<3xf32, #tpu.memory_space<smem>>
    %c0_0 = arith.constant 0 : index
    %c0_1 = arith.constant 0 : index
    %3 = vector.load %arg3[%c0_0, %c0_1] : memref<27x28xbf16, #tpu.memory_space<vmem>>, vector<27x28xbf16>
    %c0_2 = arith.constant 0 : index
    %c0_3 = arith.constant 0 : index
    %4 = vector.load %arg4[%c0_2, %c0_3] : memref<1x28xf32, #tpu.memory_space<vmem>>, vector<1x28xf32>
    %c0_i32 = arith.constant 0 : i32
    %c22_i32 = arith.constant 22 : i32
    %5 = arith.addi %c0_i32, %c22_i32 : i32
    %c1_i32 = arith.constant 1 : i32
    scf.for %arg19 = %c0_i32 to %5 step %c1_i32  : i32 {
      %101 = arith.index_cast %arg19 : i32 to index
      %c0_162 = arith.constant 0 : index
      %c0_163 = arith.constant 0 : index
      %c0_164 = arith.constant 0 : index
      %102 = vector.load %arg2[%101, %c0_162, %c0_163, %c0_164] : memref<22x22x32x27xbf16, #tpu.memory_space<vmem>>, vector<1x22x32x27xbf16>
      %103 = vector.shape_cast %102 : vector<1x22x32x27xbf16> to vector<22x32x27xbf16>
      %104 = vector.shape_cast %103 : vector<22x32x27xbf16> to vector<704x27xbf16>
      %cst_165 = arith.constant dense<0.000000e+00> : vector<704x28xf32>
      %105 = tpu.matmul %104, %3, %cst_165 {dimension_numbers = #tpu.dot_dimension_numbers<[1], [0], [0], [1], [0, 0, 1, 1], [], []>} : vector<704x27xbf16>, vector<27x28xbf16>, vector<704x28xf32> -> vector<704x28xf32>
      %106 = vector.broadcast %4 : vector<1x28xf32> to vector<704x28xf32>
      %107 = arith.addf %105, %106 : vector<704x28xf32>
      %cst_166 = arith.constant 0.000000e+00 : f32
      %108 = vector.broadcast %cst_166 : f32 to vector<704x28xf32>
      %109 = arith.cmpf oge, %107, %108 : vector<704x28xf32>
      %110 = vector.broadcast %0 : f32 to vector<704x28xf32>
      %111 = arith.mulf %110, %107 : vector<704x28xf32>
      %112 = arith.select %109, %107, %111 : vector<704x28xi1>, vector<704x28xf32>
      %113 = vector.shape_cast %112 : vector<704x28xf32> to vector<22x32x28xf32>
      %114 = arith.index_cast %arg19 : i32 to index
      %c0_167 = arith.constant 0 : index
      %c0_168 = arith.constant 0 : index
      %c0_169 = arith.constant 0 : index
      %115 = vector.load %arg14[%114, %c0_167, %c0_168, %c0_169] : memref<22x22x32x28xf32, #tpu.memory_space<vmem>>, vector<1x22x32x28xf32>
      %116 = vector.shape_cast %115 : vector<1x22x32x28xf32> to vector<22x32x28xf32>
      %117 = vector.shape_cast %113 : vector<22x32x28xf32> to vector<1x22x32x28xf32>
      tpu.vector_store %arg14[%114, %c0_167, %c0_168, %c0_169], %117 {strides = array<i32>} : memref<22x22x32x28xf32, #tpu.memory_space<vmem>>, vector<1x22x32x28xf32>,
    }
    %c22_i32_4 = arith.constant 22 : i32
    %c0_i32_5 = arith.constant 0 : i32
    %c11_i32 = arith.constant 11 : i32
    %6 = arith.addi %c0_i32_5, %c11_i32 : i32
    %c1_i32_6 = arith.constant 1 : i32
    scf.for %arg19 = %c0_i32_5 to %6 step %c1_i32_6  : i32 {
      %c2_i32 = arith.constant 2 : i32
      %101 = arith.muli %c2_i32, %arg19 : i32
      %102 = arith.index_cast %101 : i32 to index
      %c0_162 = arith.constant 0 : index
      %c0_163 = arith.constant 0 : index
      %c0_164 = arith.constant 0 : index
      %103 = vector.load %arg14[%102, %c0_162, %c0_163, %c0_164] : memref<22x22x32x28xf32, #tpu.memory_space<vmem>>, vector<1x22x32x28xf32>
      %104 = vector.shape_cast %103 : vector<1x22x32x28xf32> to vector<22x32x28xf32>
      %c2_i32_165 = arith.constant 2 : i32
      %105 = arith.muli %c2_i32_165, %arg19 : i32
      %c1_i32_166 = arith.constant 1 : i32
      %106 = arith.addi %105, %c1_i32_166 : i32
      %c21_i32 = arith.constant 21 : i32
      %107 = arith.minsi %106, %c21_i32 : i32
      %108 = arith.index_cast %107 : i32 to index
      %c0_167 = arith.constant 0 : index
      %c0_168 = arith.constant 0 : index
      %c0_169 = arith.constant 0 : index
      %109 = vector.load %arg14[%108, %c0_167, %c0_168, %c0_169] : memref<22x22x32x28xf32, #tpu.memory_space<vmem>>, vector<1x22x32x28xf32>
      %110 = vector.shape_cast %109 : vector<1x22x32x28xf32> to vector<22x32x28xf32>
      %c2_i32_170 = arith.constant 2 : i32
      %111 = arith.muli %c2_i32_170, %arg19 : i32
      %c2_i32_171 = arith.constant 2 : i32
      %112 = arith.addi %111, %c2_i32_171 : i32
      %c21_i32_172 = arith.constant 21 : i32
      %113 = arith.minsi %112, %c21_i32_172 : i32
      %114 = arith.index_cast %113 : i32 to index
      %c0_173 = arith.constant 0 : index
      %c0_174 = arith.constant 0 : index
      %c0_175 = arith.constant 0 : index
      %115 = vector.load %arg14[%114, %c0_173, %c0_174, %c0_175] : memref<22x22x32x28xf32, #tpu.memory_space<vmem>>, vector<1x22x32x28xf32>
      %116 = vector.shape_cast %115 : vector<1x22x32x28xf32> to vector<22x32x28xf32>
      %117 = arith.maximumf %104, %110 : vector<22x32x28xf32>
      %118 = arith.maximumf %117, %116 : vector<22x32x28xf32>
      %119 = vector.shape_cast %118 : vector<22x32x28xf32> to vector<11x2x32x28xf32>
      %120 = vector.extract_strided_slice %119 {offsets = [0, 0, 0, 0], sizes = [11, 1, 32, 28], strides = [1, 1, 1, 1]} : vector<11x2x32x28xf32> to vector<11x1x32x28xf32>
      %121 = vector.shape_cast %120 : vector<11x1x32x28xf32> to vector<11x32x28xf32>
      %122 = vector.extract_strided_slice %119 {offsets = [0, 1, 0, 0], sizes = [11, 1, 32, 28], strides = [1, 1, 1, 1]} : vector<11x2x32x28xf32> to vector<11x1x32x28xf32>
      %123 = vector.shape_cast %122 : vector<11x1x32x28xf32> to vector<11x32x28xf32>
      %124 = vector.extract_strided_slice %121 {offsets = [1, 0, 0], sizes = [10, 32, 28], strides = [1, 1, 1]} : vector<11x32x28xf32> to vector<10x32x28xf32>
      %125 = vector.extract_strided_slice %118 {offsets = [21, 0, 0], sizes = [1, 32, 28], strides = [1, 1, 1]} : vector<22x32x28xf32> to vector<1x32x28xf32>
      %126 = tpu.concatenate %124, %125 in 0 : vector<10x32x28xf32>, vector<1x32x28xf32> -> vector<11x32x28xf32>
      %127 = arith.maximumf %121, %123 : vector<11x32x28xf32>
      %128 = arith.maximumf %127, %126 : vector<11x32x28xf32>
      %129 = arith.truncf %128 : vector<11x32x28xf32> to vector<11x32x28xbf16>
      %130 = arith.index_cast %arg19 : i32 to index
      %c0_176 = arith.constant 0 : index
      %c0_177 = arith.constant 0 : index
      %c0_178 = arith.constant 0 : index
      %131 = vector.load %arg15[%130, %c0_176, %c0_177, %c0_178] : memref<11x11x32x28xbf16, #tpu.memory_space<vmem>>, vector<1x11x32x28xbf16>
      %132 = vector.shape_cast %131 : vector<1x11x32x28xbf16> to vector<11x32x28xbf16>
      %133 = vector.shape_cast %129 : vector<11x32x28xbf16> to vector<1x11x32x28xbf16>
      tpu.vector_store %arg15[%130, %c0_176, %c0_177, %c0_178], %133 {strides = array<i32>} : memref<11x11x32x28xbf16, #tpu.memory_space<vmem>>, vector<1x11x32x28xbf16>,
    }
    %c11_i32_7 = arith.constant 11 : i32
    %c0_8 = arith.constant 0 : index
    %c0_9 = arith.constant 0 : index
    %c0_10 = arith.constant 0 : index
    %c0_11 = arith.constant 0 : index
    %7 = vector.load %arg5[%c0_8, %c0_9, %c0_10, %c0_11] : memref<3x3x28x48xbf16, #tpu.memory_space<vmem>>, vector<1x1x28x48xbf16>
    %8 = vector.shape_cast %7 : vector<1x1x28x48xbf16> to vector<28x48xbf16>
    %c0_12 = arith.constant 0 : index
    %c1_13 = arith.constant 1 : index
    %c0_14 = arith.constant 0 : index
    %c0_15 = arith.constant 0 : index
    %9 = vector.load %arg5[%c0_12, %c1_13, %c0_14, %c0_15] : memref<3x3x28x48xbf16, #tpu.memory_space<vmem>>, vector<1x1x28x48xbf16>
    %10 = vector.shape_cast %9 : vector<1x1x28x48xbf16> to vector<28x48xbf16>
    %c0_16 = arith.constant 0 : index
    %c2_17 = arith.constant 2 : index
    %c0_18 = arith.constant 0 : index
    %c0_19 = arith.constant 0 : index
    %11 = vector.load %arg5[%c0_16, %c2_17, %c0_18, %c0_19] : memref<3x3x28x48xbf16, #tpu.memory_space<vmem>>, vector<1x1x28x48xbf16>
    %12 = vector.shape_cast %11 : vector<1x1x28x48xbf16> to vector<28x48xbf16>
    %c1_20 = arith.constant 1 : index
    %c0_21 = arith.constant 0 : index
    %c0_22 = arith.constant 0 : index
    %c0_23 = arith.constant 0 : index
    %13 = vector.load %arg5[%c1_20, %c0_21, %c0_22, %c0_23] : memref<3x3x28x48xbf16, #tpu.memory_space<vmem>>, vector<1x1x28x48xbf16>
    %14 = vector.shape_cast %13 : vector<1x1x28x48xbf16> to vector<28x48xbf16>
    %c1_24 = arith.constant 1 : index
    %c1_25 = arith.constant 1 : index
    %c0_26 = arith.constant 0 : index
    %c0_27 = arith.constant 0 : index
    %15 = vector.load %arg5[%c1_24, %c1_25, %c0_26, %c0_27] : memref<3x3x28x48xbf16, #tpu.memory_space<vmem>>, vector<1x1x28x48xbf16>
    %16 = vector.shape_cast %15 : vector<1x1x28x48xbf16> to vector<28x48xbf16>
    %c1_28 = arith.constant 1 : index
    %c2_29 = arith.constant 2 : index
    %c0_30 = arith.constant 0 : index
    %c0_31 = arith.constant 0 : index
    %17 = vector.load %arg5[%c1_28, %c2_29, %c0_30, %c0_31] : memref<3x3x28x48xbf16, #tpu.memory_space<vmem>>, vector<1x1x28x48xbf16>
    %18 = vector.shape_cast %17 : vector<1x1x28x48xbf16> to vector<28x48xbf16>
    %c2_32 = arith.constant 2 : index
    %c0_33 = arith.constant 0 : index
    %c0_34 = arith.constant 0 : index
    %c0_35 = arith.constant 0 : index
    %19 = vector.load %arg5[%c2_32, %c0_33, %c0_34, %c0_35] : memref<3x3x28x48xbf16, #tpu.memory_space<vmem>>, vector<1x1x28x48xbf16>
    %20 = vector.shape_cast %19 : vector<1x1x28x48xbf16> to vector<28x48xbf16>
    %c2_36 = arith.constant 2 : index
    %c1_37 = arith.constant 1 : index
    %c0_38 = arith.constant 0 : index
    %c0_39 = arith.constant 0 : index
    %21 = vector.load %arg5[%c2_36, %c1_37, %c0_38, %c0_39] : memref<3x3x28x48xbf16, #tpu.memory_space<vmem>>, vector<1x1x28x48xbf16>
    %22 = vector.shape_cast %21 : vector<1x1x28x48xbf16> to vector<28x48xbf16>
    %c2_40 = arith.constant 2 : index
    %c2_41 = arith.constant 2 : index
    %c0_42 = arith.constant 0 : index
    %c0_43 = arith.constant 0 : index
    %23 = vector.load %arg5[%c2_40, %c2_41, %c0_42, %c0_43] : memref<3x3x28x48xbf16, #tpu.memory_space<vmem>>, vector<1x1x28x48xbf16>
    %24 = vector.shape_cast %23 : vector<1x1x28x48xbf16> to vector<28x48xbf16>
    %c0_44 = arith.constant 0 : index
    %c0_45 = arith.constant 0 : index
    %25 = vector.load %arg6[%c0_44, %c0_45] : memref<1x48xf32, #tpu.memory_space<vmem>>, vector<1x48xf32>
    %c0_i32_46 = arith.constant 0 : i32
    %c9_i32 = arith.constant 9 : i32
    %26 = arith.addi %c0_i32_46, %c9_i32 : i32
    %c1_i32_47 = arith.constant 1 : i32
    scf.for %arg19 = %c0_i32_46 to %26 step %c1_i32_47  : i32 {
      %c0_i32_162 = arith.constant 0 : i32
      %101 = arith.addi %arg19, %c0_i32_162 : i32
      %102 = arith.index_cast %101 : i32 to index
      %c0_163 = arith.constant 0 : index
      %c0_164 = arith.constant 0 : index
      %c0_165 = arith.constant 0 : index
      %103 = vector.load %arg15[%102, %c0_163, %c0_164, %c0_165] : memref<11x11x32x28xbf16, #tpu.memory_space<vmem>>, vector<1x11x32x28xbf16>
      %104 = vector.shape_cast %103 : vector<1x11x32x28xbf16> to vector<11x32x28xbf16>
      %105 = vector.extract_strided_slice %104 {offsets = [0, 0, 0], sizes = [9, 32, 28], strides = [1, 1, 1]} : vector<11x32x28xbf16> to vector<9x32x28xbf16>
      %106 = vector.shape_cast %105 : vector<9x32x28xbf16> to vector<288x28xbf16>
      %cst_166 = arith.constant dense<0.000000e+00> : vector<288x48xf32>
      %107 = tpu.matmul %106, %8, %cst_166 {dimension_numbers = #tpu.dot_dimension_numbers<[1], [0], [0], [1], [0, 0, 1, 1], [], []>} : vector<288x28xbf16>, vector<28x48xbf16>, vector<288x48xf32> -> vector<288x48xf32>
      %108 = vector.extract_strided_slice %104 {offsets = [1, 0, 0], sizes = [9, 32, 28], strides = [1, 1, 1]} : vector<11x32x28xbf16> to vector<9x32x28xbf16>
      %109 = vector.shape_cast %108 : vector<9x32x28xbf16> to vector<288x28xbf16>
      %cst_167 = arith.constant dense<0.000000e+00> : vector<288x48xf32>
      %110 = tpu.matmul %109, %10, %cst_167 {dimension_numbers = #tpu.dot_dimension_numbers<[1], [0], [0], [1], [0, 0, 1, 1], [], []>} : vector<288x28xbf16>, vector<28x48xbf16>, vector<288x48xf32> -> vector<288x48xf32>
      %111 = arith.addf %107, %110 : vector<288x48xf32>
      %112 = vector.extract_strided_slice %104 {offsets = [2, 0, 0], sizes = [9, 32, 28], strides = [1, 1, 1]} : vector<11x32x28xbf16> to vector<9x32x28xbf16>
      %113 = vector.shape_cast %112 : vector<9x32x28xbf16> to vector<288x28xbf16>
      %cst_168 = arith.constant dense<0.000000e+00> : vector<288x48xf32>
      %114 = tpu.matmul %113, %12, %cst_168 {dimension_numbers = #tpu.dot_dimension_numbers<[1], [0], [0], [1], [0, 0, 1, 1], [], []>} : vector<288x28xbf16>, vector<28x48xbf16>, vector<288x48xf32> -> vector<288x48xf32>
      %115 = arith.addf %111, %114 : vector<288x48xf32>
      %c1_i32_169 = arith.constant 1 : i32
      %116 = arith.addi %arg19, %c1_i32_169 : i32
      %117 = arith.index_cast %116 : i32 to index
      %c0_170 = arith.constant 0 : index
      %c0_171 = arith.constant 0 : index
      %c0_172 = arith.constant 0 : index
      %118 = vector.load %arg15[%117, %c0_170, %c0_171, %c0_172] : memref<11x11x32x28xbf16, #tpu.memory_space<vmem>>, vector<1x11x32x28xbf16>
      %119 = vector.shape_cast %118 : vector<1x11x32x28xbf16> to vector<11x32x28xbf16>
      %120 = vector.extract_strided_slice %119 {offsets = [0, 0, 0], sizes = [9, 32, 28], strides = [1, 1, 1]} : vector<11x32x28xbf16> to vector<9x32x28xbf16>
      %121 = vector.shape_cast %120 : vector<9x32x28xbf16> to vector<288x28xbf16>
      %cst_173 = arith.constant dense<0.000000e+00> : vector<288x48xf32>
      %122 = tpu.matmul %121, %14, %cst_173 {dimension_numbers = #tpu.dot_dimension_numbers<[1], [0], [0], [1], [0, 0, 1, 1], [], []>} : vector<288x28xbf16>, vector<28x48xbf16>, vector<288x48xf32> -> vector<288x48xf32>
      %123 = arith.addf %115, %122 : vector<288x48xf32>
      %124 = vector.extract_strided_slice %119 {offsets = [1, 0, 0], sizes = [9, 32, 28], strides = [1, 1, 1]} : vector<11x32x28xbf16> to vector<9x32x28xbf16>
      %125 = vector.shape_cast %124 : vector<9x32x28xbf16> to vector<288x28xbf16>
      %cst_174 = arith.constant dense<0.000000e+00> : vector<288x48xf32>
      %126 = tpu.matmul %125, %16, %cst_174 {dimension_numbers = #tpu.dot_dimension_numbers<[1], [0], [0], [1], [0, 0, 1, 1], [], []>} : vector<288x28xbf16>, vector<28x48xbf16>, vector<288x48xf32> -> vector<288x48xf32>
      %127 = arith.addf %123, %126 : vector<288x48xf32>
      %128 = vector.extract_strided_slice %119 {offsets = [2, 0, 0], sizes = [9, 32, 28], strides = [1, 1, 1]} : vector<11x32x28xbf16> to vector<9x32x28xbf16>
      %129 = vector.shape_cast %128 : vector<9x32x28xbf16> to vector<288x28xbf16>
      %cst_175 = arith.constant dense<0.000000e+00> : vector<288x48xf32>
      %130 = tpu.matmul %129, %18, %cst_175 {dimension_numbers = #tpu.dot_dimension_numbers<[1], [0], [0], [1], [0, 0, 1, 1], [], []>} : vector<288x28xbf16>, vector<28x48xbf16>, vector<288x48xf32> -> vector<288x48xf32>
      %131 = arith.addf %127, %130 : vector<288x48xf32>
      %c2_i32 = arith.constant 2 : i32
      %132 = arith.addi %arg19, %c2_i32 : i32
      %133 = arith.index_cast %132 : i32 to index
      %c0_176 = arith.constant 0 : index
      %c0_177 = arith.constant 0 : index
      %c0_178 = arith.constant 0 : index
      %134 = vector.load %arg15[%133, %c0_176, %c0_177, %c0_178] : memref<11x11x32x28xbf16, #tpu.memory_space<vmem>>, vector<1x11x32x28xbf16>
      %135 = vector.shape_cast %134 : vector<1x11x32x28xbf16> to vector<11x32x28xbf16>
      %136 = vector.extract_strided_slice %135 {offsets = [0, 0, 0], sizes = [9, 32, 28], strides = [1, 1, 1]} : vector<11x32x28xbf16> to vector<9x32x28xbf16>
      %137 = vector.shape_cast %136 : vector<9x32x28xbf16> to vector<288x28xbf16>
      %cst_179 = arith.constant dense<0.000000e+00> : vector<288x48xf32>
      %138 = tpu.matmul %137, %20, %cst_179 {dimension_numbers = #tpu.dot_dimension_numbers<[1], [0], [0], [1], [0, 0, 1, 1], [], []>} : vector<288x28xbf16>, vector<28x48xbf16>, vector<288x48xf32> -> vector<288x48xf32>
      %139 = arith.addf %131, %138 : vector<288x48xf32>
      %140 = vector.extract_strided_slice %135 {offsets = [1, 0, 0], sizes = [9, 32, 28], strides = [1, 1, 1]} : vector<11x32x28xbf16> to vector<9x32x28xbf16>
      %141 = vector.shape_cast %140 : vector<9x32x28xbf16> to vector<288x28xbf16>
      %cst_180 = arith.constant dense<0.000000e+00> : vector<288x48xf32>
      %142 = tpu.matmul %141, %22, %cst_180 {dimension_numbers = #tpu.dot_dimension_numbers<[1], [0], [0], [1], [0, 0, 1, 1], [], []>} : vector<288x28xbf16>, vector<28x48xbf16>, vector<288x48xf32> -> vector<288x48xf32>
      %143 = arith.addf %139, %142 : vector<288x48xf32>
      %144 = vector.extract_strided_slice %135 {offsets = [2, 0, 0], sizes = [9, 32, 28], strides = [1, 1, 1]} : vector<11x32x28xbf16> to vector<9x32x28xbf16>
      %145 = vector.shape_cast %144 : vector<9x32x28xbf16> to vector<288x28xbf16>
      %cst_181 = arith.constant dense<0.000000e+00> : vector<288x48xf32>
      %146 = tpu.matmul %145, %24, %cst_181 {dimension_numbers = #tpu.dot_dimension_numbers<[1], [0], [0], [1], [0, 0, 1, 1], [], []>} : vector<288x28xbf16>, vector<28x48xbf16>, vector<288x48xf32> -> vector<288x48xf32>
      %147 = arith.addf %143, %146 : vector<288x48xf32>
      %148 = vector.broadcast %25 : vector<1x48xf32> to vector<288x48xf32>
      %149 = arith.addf %147, %148 : vector<288x48xf32>
      %cst_182 = arith.constant 0.000000e+00 : f32
      %150 = vector.broadcast %cst_182 : f32 to vector<288x48xf32>
      %151 = arith.cmpf oge, %149, %150 : vector<288x48xf32>
      %152 = vector.broadcast %1 : f32 to vector<288x48xf32>
      %153 = arith.mulf %152, %149 : vector<288x48xf32>
      %154 = arith.select %151, %149, %153 : vector<288x48xi1>, vector<288x48xf32>
      %155 = vector.shape_cast %154 : vector<288x48xf32> to vector<9x32x48xf32>
      %156 = arith.index_cast %arg19 : i32 to index
      %c0_183 = arith.constant 0 : index
      %c0_184 = arith.constant 0 : index
      %c0_185 = arith.constant 0 : index
      %157 = vector.load %arg16[%156, %c0_183, %c0_184, %c0_185] : memref<9x9x32x48xf32, #tpu.memory_space<vmem>>, vector<1x9x32x48xf32>
      %158 = vector.shape_cast %157 : vector<1x9x32x48xf32> to vector<9x32x48xf32>
      %159 = vector.shape_cast %155 : vector<9x32x48xf32> to vector<1x9x32x48xf32>
      tpu.vector_store %arg16[%156, %c0_183, %c0_184, %c0_185], %159 {strides = array<i32>} : memref<9x9x32x48xf32, #tpu.memory_space<vmem>>, vector<1x9x32x48xf32>,
    }
    %c9_i32_48 = arith.constant 9 : i32
    %c0_i32_49 = arith.constant 0 : i32
    %c4_i32 = arith.constant 4 : i32
    %27 = arith.addi %c0_i32_49, %c4_i32 : i32
    %c1_i32_50 = arith.constant 1 : i32
    scf.for %arg19 = %c0_i32_49 to %27 step %c1_i32_50  : i32 {
      %c2_i32 = arith.constant 2 : i32
      %101 = arith.muli %c2_i32, %arg19 : i32
      %102 = arith.index_cast %101 : i32 to index
      %c0_162 = arith.constant 0 : index
      %c0_163 = arith.constant 0 : index
      %c0_164 = arith.constant 0 : index
      %103 = vector.load %arg16[%102, %c0_162, %c0_163, %c0_164] : memref<9x9x32x48xf32, #tpu.memory_space<vmem>>, vector<1x9x32x48xf32>
      %104 = vector.shape_cast %103 : vector<1x9x32x48xf32> to vector<9x32x48xf32>
      %c2_i32_165 = arith.constant 2 : i32
      %105 = arith.muli %c2_i32_165, %arg19 : i32
      %c1_i32_166 = arith.constant 1 : i32
      %106 = arith.addi %105, %c1_i32_166 : i32
      %c8_i32 = arith.constant 8 : i32
      %107 = arith.minsi %106, %c8_i32 : i32
      %108 = arith.index_cast %107 : i32 to index
      %c0_167 = arith.constant 0 : index
      %c0_168 = arith.constant 0 : index
      %c0_169 = arith.constant 0 : index
      %109 = vector.load %arg16[%108, %c0_167, %c0_168, %c0_169] : memref<9x9x32x48xf32, #tpu.memory_space<vmem>>, vector<1x9x32x48xf32>
      %110 = vector.shape_cast %109 : vector<1x9x32x48xf32> to vector<9x32x48xf32>
      %c2_i32_170 = arith.constant 2 : i32
      %111 = arith.muli %c2_i32_170, %arg19 : i32
      %c2_i32_171 = arith.constant 2 : i32
      %112 = arith.addi %111, %c2_i32_171 : i32
      %c8_i32_172 = arith.constant 8 : i32
      %113 = arith.minsi %112, %c8_i32_172 : i32
      %114 = arith.index_cast %113 : i32 to index
      %c0_173 = arith.constant 0 : index
      %c0_174 = arith.constant 0 : index
      %c0_175 = arith.constant 0 : index
      %115 = vector.load %arg16[%114, %c0_173, %c0_174, %c0_175] : memref<9x9x32x48xf32, #tpu.memory_space<vmem>>, vector<1x9x32x48xf32>
      %116 = vector.shape_cast %115 : vector<1x9x32x48xf32> to vector<9x32x48xf32>
      %117 = arith.maximumf %104, %110 : vector<9x32x48xf32>
      %118 = arith.maximumf %117, %116 : vector<9x32x48xf32>
      %119 = vector.extract_strided_slice %118 {offsets = [0, 0, 0], sizes = [8, 32, 48], strides = [1, 1, 1]} : vector<9x32x48xf32> to vector<8x32x48xf32>
      %120 = vector.shape_cast %119 : vector<8x32x48xf32> to vector<4x2x32x48xf32>
      %121 = vector.extract_strided_slice %120 {offsets = [0, 0, 0, 0], sizes = [4, 1, 32, 48], strides = [1, 1, 1, 1]} : vector<4x2x32x48xf32> to vector<4x1x32x48xf32>
      %122 = vector.shape_cast %121 : vector<4x1x32x48xf32> to vector<4x32x48xf32>
      %123 = vector.extract_strided_slice %120 {offsets = [0, 1, 0, 0], sizes = [4, 1, 32, 48], strides = [1, 1, 1, 1]} : vector<4x2x32x48xf32> to vector<4x1x32x48xf32>
      %124 = vector.shape_cast %123 : vector<4x1x32x48xf32> to vector<4x32x48xf32>
      %125 = vector.extract_strided_slice %122 {offsets = [1, 0, 0], sizes = [3, 32, 48], strides = [1, 1, 1]} : vector<4x32x48xf32> to vector<3x32x48xf32>
      %126 = vector.extract_strided_slice %118 {offsets = [8, 0, 0], sizes = [1, 32, 48], strides = [1, 1, 1]} : vector<9x32x48xf32> to vector<1x32x48xf32>
      %127 = tpu.concatenate %125, %126 in 0 : vector<3x32x48xf32>, vector<1x32x48xf32> -> vector<4x32x48xf32>
      %128 = arith.maximumf %122, %124 : vector<4x32x48xf32>
      %129 = arith.maximumf %128, %127 : vector<4x32x48xf32>
      %130 = arith.truncf %129 : vector<4x32x48xf32> to vector<4x32x48xbf16>
      %131 = arith.index_cast %arg19 : i32 to index
      %c0_176 = arith.constant 0 : index
      %c0_177 = arith.constant 0 : index
      %c0_178 = arith.constant 0 : index
      %132 = vector.load %arg17[%131, %c0_176, %c0_177, %c0_178] : memref<4x4x32x48xbf16, #tpu.memory_space<vmem>>, vector<1x4x32x48xbf16>
      %133 = vector.shape_cast %132 : vector<1x4x32x48xbf16> to vector<4x32x48xbf16>
      %134 = vector.shape_cast %130 : vector<4x32x48xbf16> to vector<1x4x32x48xbf16>
      tpu.vector_store %arg17[%131, %c0_176, %c0_177, %c0_178], %134 {strides = array<i32>} : memref<4x4x32x48xbf16, #tpu.memory_space<vmem>>, vector<1x4x32x48xbf16>,
    }
    %c4_i32_51 = arith.constant 4 : i32
    %c0_52 = arith.constant 0 : index
    %c0_53 = arith.constant 0 : index
    %c0_54 = arith.constant 0 : index
    %c0_55 = arith.constant 0 : index
    %28 = vector.load %arg7[%c0_52, %c0_53, %c0_54, %c0_55] : memref<2x2x48x64xbf16, #tpu.memory_space<vmem>>, vector<1x1x48x64xbf16>
    %29 = vector.shape_cast %28 : vector<1x1x48x64xbf16> to vector<48x64xbf16>
    %c0_56 = arith.constant 0 : index
    %c1_57 = arith.constant 1 : index
    %c0_58 = arith.constant 0 : index
    %c0_59 = arith.constant 0 : index
    %30 = vector.load %arg7[%c0_56, %c1_57, %c0_58, %c0_59] : memref<2x2x48x64xbf16, #tpu.memory_space<vmem>>, vector<1x1x48x64xbf16>
    %31 = vector.shape_cast %30 : vector<1x1x48x64xbf16> to vector<48x64xbf16>
    %c1_60 = arith.constant 1 : index
    %c0_61 = arith.constant 0 : index
    %c0_62 = arith.constant 0 : index
    %c0_63 = arith.constant 0 : index
    %32 = vector.load %arg7[%c1_60, %c0_61, %c0_62, %c0_63] : memref<2x2x48x64xbf16, #tpu.memory_space<vmem>>, vector<1x1x48x64xbf16>
    %33 = vector.shape_cast %32 : vector<1x1x48x64xbf16> to vector<48x64xbf16>
    %c1_64 = arith.constant 1 : index
    %c1_65 = arith.constant 1 : index
    %c0_66 = arith.constant 0 : index
    %c0_67 = arith.constant 0 : index
    %34 = vector.load %arg7[%c1_64, %c1_65, %c0_66, %c0_67] : memref<2x2x48x64xbf16, #tpu.memory_space<vmem>>, vector<1x1x48x64xbf16>
    %35 = vector.shape_cast %34 : vector<1x1x48x64xbf16> to vector<48x64xbf16>
    %c0_68 = arith.constant 0 : index
    %c0_69 = arith.constant 0 : index
    %36 = vector.load %arg8[%c0_68, %c0_69] : memref<1x64xf32, #tpu.memory_space<vmem>>, vector<1x64xf32>
    %c0_i32_70 = arith.constant 0 : i32
    %c3_i32 = arith.constant 3 : i32
    %37 = arith.addi %c0_i32_70, %c3_i32 : i32
    %c1_i32_71 = arith.constant 1 : i32
    scf.for %arg19 = %c0_i32_70 to %37 step %c1_i32_71  : i32 {
      %c0_i32_162 = arith.constant 0 : i32
      %101 = arith.addi %arg19, %c0_i32_162 : i32
      %102 = arith.index_cast %101 : i32 to index
      %c0_163 = arith.constant 0 : index
      %c0_164 = arith.constant 0 : index
      %c0_165 = arith.constant 0 : index
      %103 = vector.load %arg17[%102, %c0_163, %c0_164, %c0_165] : memref<4x4x32x48xbf16, #tpu.memory_space<vmem>>, vector<1x4x32x48xbf16>
      %104 = vector.shape_cast %103 : vector<1x4x32x48xbf16> to vector<4x32x48xbf16>
      %105 = vector.extract_strided_slice %104 {offsets = [0, 0, 0], sizes = [3, 32, 48], strides = [1, 1, 1]} : vector<4x32x48xbf16> to vector<3x32x48xbf16>
      %106 = vector.shape_cast %105 : vector<3x32x48xbf16> to vector<96x48xbf16>
      %cst_166 = arith.constant dense<0.000000e+00> : vector<96x64xf32>
      %107 = tpu.matmul %106, %29, %cst_166 {dimension_numbers = #tpu.dot_dimension_numbers<[1], [0], [0], [1], [0, 0, 1, 1], [], []>} : vector<96x48xbf16>, vector<48x64xbf16>, vector<96x64xf32> -> vector<96x64xf32>
      %108 = vector.extract_strided_slice %104 {offsets = [1, 0, 0], sizes = [3, 32, 48], strides = [1, 1, 1]} : vector<4x32x48xbf16> to vector<3x32x48xbf16>
      %109 = vector.shape_cast %108 : vector<3x32x48xbf16> to vector<96x48xbf16>
      %cst_167 = arith.constant dense<0.000000e+00> : vector<96x64xf32>
      %110 = tpu.matmul %109, %31, %cst_167 {dimension_numbers = #tpu.dot_dimension_numbers<[1], [0], [0], [1], [0, 0, 1, 1], [], []>} : vector<96x48xbf16>, vector<48x64xbf16>, vector<96x64xf32> -> vector<96x64xf32>
      %111 = arith.addf %107, %110 : vector<96x64xf32>
      %c1_i32_168 = arith.constant 1 : i32
      %112 = arith.addi %arg19, %c1_i32_168 : i32
      %113 = arith.index_cast %112 : i32 to index
      %c0_169 = arith.constant 0 : index
      %c0_170 = arith.constant 0 : index
      %c0_171 = arith.constant 0 : index
      %114 = vector.load %arg17[%113, %c0_169, %c0_170, %c0_171] : memref<4x4x32x48xbf16, #tpu.memory_space<vmem>>, vector<1x4x32x48xbf16>
      %115 = vector.shape_cast %114 : vector<1x4x32x48xbf16> to vector<4x32x48xbf16>
      %116 = vector.extract_strided_slice %115 {offsets = [0, 0, 0], sizes = [3, 32, 48], strides = [1, 1, 1]} : vector<4x32x48xbf16> to vector<3x32x48xbf16>
      %117 = vector.shape_cast %116 : vector<3x32x48xbf16> to vector<96x48xbf16>
      %cst_172 = arith.constant dense<0.000000e+00> : vector<96x64xf32>
      %118 = tpu.matmul %117, %33, %cst_172 {dimension_numbers = #tpu.dot_dimension_numbers<[1], [0], [0], [1], [0, 0, 1, 1], [], []>} : vector<96x48xbf16>, vector<48x64xbf16>, vector<96x64xf32> -> vector<96x64xf32>
      %119 = arith.addf %111, %118 : vector<96x64xf32>
      %120 = vector.extract_strided_slice %115 {offsets = [1, 0, 0], sizes = [3, 32, 48], strides = [1, 1, 1]} : vector<4x32x48xbf16> to vector<3x32x48xbf16>
      %121 = vector.shape_cast %120 : vector<3x32x48xbf16> to vector<96x48xbf16>
      %cst_173 = arith.constant dense<0.000000e+00> : vector<96x64xf32>
      %122 = tpu.matmul %121, %35, %cst_173 {dimension_numbers = #tpu.dot_dimension_numbers<[1], [0], [0], [1], [0, 0, 1, 1], [], []>} : vector<96x48xbf16>, vector<48x64xbf16>, vector<96x64xf32> -> vector<96x64xf32>
      %123 = arith.addf %119, %122 : vector<96x64xf32>
      %124 = vector.broadcast %36 : vector<1x64xf32> to vector<96x64xf32>
      %125 = arith.addf %123, %124 : vector<96x64xf32>
      %cst_174 = arith.constant 0.000000e+00 : f32
      %126 = vector.broadcast %cst_174 : f32 to vector<96x64xf32>
      %127 = arith.cmpf oge, %125, %126 : vector<96x64xf32>
      %128 = vector.broadcast %2 : f32 to vector<96x64xf32>
      %129 = arith.mulf %128, %125 : vector<96x64xf32>
      %130 = arith.select %127, %125, %129 : vector<96x64xi1>, vector<96x64xf32>
      %131 = arith.truncf %130 : vector<96x64xf32> to vector<96x64xbf16>
      %132 = vector.shape_cast %131 : vector<96x64xbf16> to vector<3x32x64xbf16>
      %133 = arith.index_cast %arg19 : i32 to index
      %c0_175 = arith.constant 0 : index
      %c0_176 = arith.constant 0 : index
      %c0_177 = arith.constant 0 : index
      %134 = vector.load %arg18[%133, %c0_175, %c0_176, %c0_177] : memref<3x3x32x64xbf16, #tpu.memory_space<vmem>>, vector<1x3x32x64xbf16>
      %135 = vector.shape_cast %134 : vector<1x3x32x64xbf16> to vector<3x32x64xbf16>
      %136 = vector.shape_cast %132 : vector<3x32x64xbf16> to vector<1x3x32x64xbf16>
      tpu.vector_store %arg18[%133, %c0_175, %c0_176, %c0_177], %136 {strides = array<i32>} : memref<3x3x32x64xbf16, #tpu.memory_space<vmem>>, vector<1x3x32x64xbf16>,
    }
    %c3_i32_72 = arith.constant 3 : i32
    %c0_73 = arith.constant 0 : index
    %c0_74 = arith.constant 0 : index
    %c0_75 = arith.constant 0 : index
    %c0_76 = arith.constant 0 : index
    %38 = vector.load %arg18[%c0_73, %c0_74, %c0_75, %c0_76] : memref<3x3x32x64xbf16, #tpu.memory_space<vmem>>, vector<1x1x32x64xbf16>
    %39 = vector.shape_cast %38 : vector<1x1x32x64xbf16> to vector<32x64xbf16>
    %c0_77 = arith.constant 0 : index
    %c0_78 = arith.constant 0 : index
    %c0_79 = arith.constant 0 : index
    %c0_80 = arith.constant 0 : index
    %40 = vector.load %arg9[%c0_77, %c0_78, %c0_79, %c0_80] : memref<3x3x64x128xbf16, #tpu.memory_space<vmem>>, vector<1x1x64x128xbf16>
    %41 = vector.shape_cast %40 : vector<1x1x64x128xbf16> to vector<64x128xbf16>
    %cst = arith.constant dense<0.000000e+00> : vector<32x128xf32>
    %42 = tpu.matmul %39, %41, %cst {dimension_numbers = #tpu.dot_dimension_numbers<[1], [0], [0], [1], [0, 0, 1, 1], [], []>} : vector<32x64xbf16>, vector<64x128xbf16>, vector<32x128xf32> -> vector<32x128xf32>
    %c0_81 = arith.constant 0 : index
    %c1_82 = arith.constant 1 : index
    %c0_83 = arith.constant 0 : index
    %c0_84 = arith.constant 0 : index
    %43 = vector.load %arg18[%c0_81, %c1_82, %c0_83, %c0_84] : memref<3x3x32x64xbf16, #tpu.memory_space<vmem>>, vector<1x1x32x64xbf16>
    %44 = vector.shape_cast %43 : vector<1x1x32x64xbf16> to vector<32x64xbf16>
    %c0_85 = arith.constant 0 : index
    %c1_86 = arith.constant 1 : index
    %c0_87 = arith.constant 0 : index
    %c0_88 = arith.constant 0 : index
    %45 = vector.load %arg9[%c0_85, %c1_86, %c0_87, %c0_88] : memref<3x3x64x128xbf16, #tpu.memory_space<vmem>>, vector<1x1x64x128xbf16>
    %46 = vector.shape_cast %45 : vector<1x1x64x128xbf16> to vector<64x128xbf16>
    %cst_89 = arith.constant dense<0.000000e+00> : vector<32x128xf32>
    %47 = tpu.matmul %44, %46, %cst_89 {dimension_numbers = #tpu.dot_dimension_numbers<[1], [0], [0], [1], [0, 0, 1, 1], [], []>} : vector<32x64xbf16>, vector<64x128xbf16>, vector<32x128xf32> -> vector<32x128xf32>
    %48 = arith.addf %42, %47 : vector<32x128xf32>
    %c0_90 = arith.constant 0 : index
    %c2_91 = arith.constant 2 : index
    %c0_92 = arith.constant 0 : index
    %c0_93 = arith.constant 0 : index
    %49 = vector.load %arg18[%c0_90, %c2_91, %c0_92, %c0_93] : memref<3x3x32x64xbf16, #tpu.memory_space<vmem>>, vector<1x1x32x64xbf16>
    %50 = vector.shape_cast %49 : vector<1x1x32x64xbf16> to vector<32x64xbf16>
    %c0_94 = arith.constant 0 : index
    %c2_95 = arith.constant 2 : index
    %c0_96 = arith.constant 0 : index
    %c0_97 = arith.constant 0 : index
    %51 = vector.load %arg9[%c0_94, %c2_95, %c0_96, %c0_97] : memref<3x3x64x128xbf16, #tpu.memory_space<vmem>>, vector<1x1x64x128xbf16>
    %52 = vector.shape_cast %51 : vector<1x1x64x128xbf16> to vector<64x128xbf16>
    %cst_98 = arith.constant dense<0.000000e+00> : vector<32x128xf32>
    %53 = tpu.matmul %50, %52, %cst_98 {dimension_numbers = #tpu.dot_dimension_numbers<[1], [0], [0], [1], [0, 0, 1, 1], [], []>} : vector<32x64xbf16>, vector<64x128xbf16>, vector<32x128xf32> -> vector<32x128xf32>
    %54 = arith.addf %48, %53 : vector<32x128xf32>
    %c1_99 = arith.constant 1 : index
    %c0_100 = arith.constant 0 : index
    %c0_101 = arith.constant 0 : index
    %c0_102 = arith.constant 0 : index
    %55 = vector.load %arg18[%c1_99, %c0_100, %c0_101, %c0_102] : memref<3x3x32x64xbf16, #tpu.memory_space<vmem>>, vector<1x1x32x64xbf16>
    %56 = vector.shape_cast %55 : vector<1x1x32x64xbf16> to vector<32x64xbf16>
    %c1_103 = arith.constant 1 : index
    %c0_104 = arith.constant 0 : index
    %c0_105 = arith.constant 0 : index
    %c0_106 = arith.constant 0 : index
    %57 = vector.load %arg9[%c1_103, %c0_104, %c0_105, %c0_106] : memref<3x3x64x128xbf16, #tpu.memory_space<vmem>>, vector<1x1x64x128xbf16>
    %58 = vector.shape_cast %57 : vector<1x1x64x128xbf16> to vector<64x128xbf16>
    %cst_107 = arith.constant dense<0.000000e+00> : vector<32x128xf32>
    %59 = tpu.matmul %56, %58, %cst_107 {dimension_numbers = #tpu.dot_dimension_numbers<[1], [0], [0], [1], [0, 0, 1, 1], [], []>} : vector<32x64xbf16>, vector<64x128xbf16>, vector<32x128xf32> -> vector<32x128xf32>
    %60 = arith.addf %54, %59 : vector<32x128xf32>
    %c1_108 = arith.constant 1 : index
    %c1_109 = arith.constant 1 : index
    %c0_110 = arith.constant 0 : index
    %c0_111 = arith.constant 0 : index
    %61 = vector.load %arg18[%c1_108, %c1_109, %c0_110, %c0_111] : memref<3x3x32x64xbf16, #tpu.memory_space<vmem>>, vector<1x1x32x64xbf16>
    %62 = vector.shape_cast %61 : vector<1x1x32x64xbf16> to vector<32x64xbf16>
    %c1_112 = arith.constant 1 : index
    %c1_113 = arith.constant 1 : index
    %c0_114 = arith.constant 0 : index
    %c0_115 = arith.constant 0 : index
    %63 = vector.load %arg9[%c1_112, %c1_113, %c0_114, %c0_115] : memref<3x3x64x128xbf16, #tpu.memory_space<vmem>>, vector<1x1x64x128xbf16>
    %64 = vector.shape_cast %63 : vector<1x1x64x128xbf16> to vector<64x128xbf16>
    %cst_116 = arith.constant dense<0.000000e+00> : vector<32x128xf32>
    %65 = tpu.matmul %62, %64, %cst_116 {dimension_numbers = #tpu.dot_dimension_numbers<[1], [0], [0], [1], [0, 0, 1, 1], [], []>} : vector<32x64xbf16>, vector<64x128xbf16>, vector<32x128xf32> -> vector<32x128xf32>
    %66 = arith.addf %60, %65 : vector<32x128xf32>
    %c1_117 = arith.constant 1 : index
    %c2_118 = arith.constant 2 : index
    %c0_119 = arith.constant 0 : index
    %c0_120 = arith.constant 0 : index
    %67 = vector.load %arg18[%c1_117, %c2_118, %c0_119, %c0_120] : memref<3x3x32x64xbf16, #tpu.memory_space<vmem>>, vector<1x1x32x64xbf16>
    %68 = vector.shape_cast %67 : vector<1x1x32x64xbf16> to vector<32x64xbf16>
    %c1_121 = arith.constant 1 : index
    %c2_122 = arith.constant 2 : index
    %c0_123 = arith.constant 0 : index
    %c0_124 = arith.constant 0 : index
    %69 = vector.load %arg9[%c1_121, %c2_122, %c0_123, %c0_124] : memref<3x3x64x128xbf16, #tpu.memory_space<vmem>>, vector<1x1x64x128xbf16>
    %70 = vector.shape_cast %69 : vector<1x1x64x128xbf16> to vector<64x128xbf16>
    %cst_125 = arith.constant dense<0.000000e+00> : vector<32x128xf32>
    %71 = tpu.matmul %68, %70, %cst_125 {dimension_numbers = #tpu.dot_dimension_numbers<[1], [0], [0], [1], [0, 0, 1, 1], [], []>} : vector<32x64xbf16>, vector<64x128xbf16>, vector<32x128xf32> -> vector<32x128xf32>
    %72 = arith.addf %66, %71 : vector<32x128xf32>
    %c2_126 = arith.constant 2 : index
    %c0_127 = arith.constant 0 : index
    %c0_128 = arith.constant 0 : index
    %c0_129 = arith.constant 0 : index
    %73 = vector.load %arg18[%c2_126, %c0_127, %c0_128, %c0_129] : memref<3x3x32x64xbf16, #tpu.memory_space<vmem>>, vector<1x1x32x64xbf16>
    %74 = vector.shape_cast %73 : vector<1x1x32x64xbf16> to vector<32x64xbf16>
    %c2_130 = arith.constant 2 : index
    %c0_131 = arith.constant 0 : index
    %c0_132 = arith.constant 0 : index
    %c0_133 = arith.constant 0 : index
    %75 = vector.load %arg9[%c2_130, %c0_131, %c0_132, %c0_133] : memref<3x3x64x128xbf16, #tpu.memory_space<vmem>>, vector<1x1x64x128xbf16>
    %76 = vector.shape_cast %75 : vector<1x1x64x128xbf16> to vector<64x128xbf16>
    %cst_134 = arith.constant dense<0.000000e+00> : vector<32x128xf32>
    %77 = tpu.matmul %74, %76, %cst_134 {dimension_numbers = #tpu.dot_dimension_numbers<[1], [0], [0], [1], [0, 0, 1, 1], [], []>} : vector<32x64xbf16>, vector<64x128xbf16>, vector<32x128xf32> -> vector<32x128xf32>
    %78 = arith.addf %72, %77 : vector<32x128xf32>
    %c2_135 = arith.constant 2 : index
    %c1_136 = arith.constant 1 : index
    %c0_137 = arith.constant 0 : index
    %c0_138 = arith.constant 0 : index
    %79 = vector.load %arg18[%c2_135, %c1_136, %c0_137, %c0_138] : memref<3x3x32x64xbf16, #tpu.memory_space<vmem>>, vector<1x1x32x64xbf16>
    %80 = vector.shape_cast %79 : vector<1x1x32x64xbf16> to vector<32x64xbf16>
    %c2_139 = arith.constant 2 : index
    %c1_140 = arith.constant 1 : index
    %c0_141 = arith.constant 0 : index
    %c0_142 = arith.constant 0 : index
    %81 = vector.load %arg9[%c2_139, %c1_140, %c0_141, %c0_142] : memref<3x3x64x128xbf16, #tpu.memory_space<vmem>>, vector<1x1x64x128xbf16>
    %82 = vector.shape_cast %81 : vector<1x1x64x128xbf16> to vector<64x128xbf16>
    %cst_143 = arith.constant dense<0.000000e+00> : vector<32x128xf32>
    %83 = tpu.matmul %80, %82, %cst_143 {dimension_numbers = #tpu.dot_dimension_numbers<[1], [0], [0], [1], [0, 0, 1, 1], [], []>} : vector<32x64xbf16>, vector<64x128xbf16>, vector<32x128xf32> -> vector<32x128xf32>
    %84 = arith.addf %78, %83 : vector<32x128xf32>
    %c2_144 = arith.constant 2 : index
    %c2_145 = arith.constant 2 : index
    %c0_146 = arith.constant 0 : index
    %c0_147 = arith.constant 0 : index
    %85 = vector.load %arg18[%c2_144, %c2_145, %c0_146, %c0_147] : memref<3x3x32x64xbf16, #tpu.memory_space<vmem>>, vector<1x1x32x64xbf16>
    %86 = vector.shape_cast %85 : vector<1x1x32x64xbf16> to vector<32x64xbf16>
    %c2_148 = arith.constant 2 : index
    %c2_149 = arith.constant 2 : index
    %c0_150 = arith.constant 0 : index
    %c0_151 = arith.constant 0 : index
    %87 = vector.load %arg9[%c2_148, %c2_149, %c0_150, %c0_151] : memref<3x3x64x128xbf16, #tpu.memory_space<vmem>>, vector<1x1x64x128xbf16>
    %88 = vector.shape_cast %87 : vector<1x1x64x128xbf16> to vector<64x128xbf16>
    %cst_152 = arith.constant dense<0.000000e+00> : vector<32x128xf32>
    %89 = tpu.matmul %86, %88, %cst_152 {dimension_numbers = #tpu.dot_dimension_numbers<[1], [0], [0], [1], [0, 0, 1, 1], [], []>} : vector<32x64xbf16>, vector<64x128xbf16>, vector<32x128xf32> -> vector<32x128xf32>
    %90 = arith.addf %84, %89 : vector<32x128xf32>
    %c0_153 = arith.constant 0 : index
    %c0_154 = arith.constant 0 : index
    %91 = vector.load %arg10[%c0_153, %c0_154] : memref<1x128xf32, #tpu.memory_space<vmem>>, vector<1x128xf32>
    %92 = vector.broadcast %91 : vector<1x128xf32> to vector<32x128xf32>
    %93 = arith.addf %90, %92 : vector<32x128xf32>
    %94 = arith.truncf %93 : vector<32x128xf32> to vector<32x128xbf16>
    %c0_155 = arith.constant 0 : index
    %c0_156 = arith.constant 0 : index
    %95 = vector.load %arg11[%c0_155, %c0_156] : memref<128x128xbf16, #tpu.memory_space<vmem>>, vector<128x128xbf16>
    %cst_157 = arith.constant dense<0.000000e+00> : vector<32x128xf32>
    %96 = tpu.matmul %94, %95, %cst_157 {dimension_numbers = #tpu.dot_dimension_numbers<[1], [0], [0], [1], [0, 0, 1, 1], [], []>} : vector<32x128xbf16>, vector<128x128xbf16>, vector<32x128xf32> -> vector<32x128xf32>
    %c0_158 = arith.constant 0 : index
    %c0_159 = arith.constant 0 : index
    %97 = vector.load %arg12[%c0_158, %c0_159] : memref<1x128xf32, #tpu.memory_space<vmem>>, vector<1x128xf32>
    %98 = vector.broadcast %97 : vector<1x128xf32> to vector<32x128xf32>
    %99 = arith.addf %96, %98 : vector<32x128xf32>
    %c0_160 = arith.constant 0 : index
    %c0_161 = arith.constant 0 : index
    %100 = vector.load %arg13[%c0_160, %c0_161] : memref<32x128xf32, #tpu.memory_space<vmem>>, vector<32x128xf32>
    tpu.vector_store %arg13[%c0_160, %c0_161], %99 {strides = array<i32>} : memref<32x128xf32, #tpu.memory_space<vmem>>, vector<32x128xf32>,
    return
  }
  func.func @transform_0(%arg0: i32) -> i32 {
    %c0_i32 = arith.constant 0 : i32
    %c0_i32_0 = arith.constant 0 : i32
    return %c0_i32 : i32
  }
  func.func @transform_1(%arg0: i32) -> (i32, i32, i32, i32) {
    %c0_i32 = arith.constant 0 : i32
    %c0_i32_0 = arith.constant 0 : i32
    %c0_i32_1 = arith.constant 0 : i32
    %c0_i32_2 = arith.constant 0 : i32
    return %c0_i32, %c0_i32_0, %arg0, %c0_i32_1 : i32, i32, i32, i32
  }
  func.func @transform_2(%arg0: i32) -> (i32, i32) {
    %c0_i32 = arith.constant 0 : i32
    %c0_i32_0 = arith.constant 0 : i32
    %c0_i32_1 = arith.constant 0 : i32
    return %c0_i32, %c0_i32_0 : i32, i32
  }
  func.func @transform_3(%arg0: i32) -> (i32, i32) {
    %c0_i32 = arith.constant 0 : i32
    %c0_i32_0 = arith.constant 0 : i32
    %c0_i32_1 = arith.constant 0 : i32
    return %c0_i32, %c0_i32_0 : i32, i32
  }
  func.func @transform_4(%arg0: i32) -> (i32, i32, i32, i32) {
    %c0_i32 = arith.constant 0 : i32
    %c0_i32_0 = arith.constant 0 : i32
    %c0_i32_1 = arith.constant 0 : i32
    %c0_i32_2 = arith.constant 0 : i32
    %c0_i32_3 = arith.constant 0 : i32
    return %c0_i32, %c0_i32_0, %c0_i32_1, %c0_i32_2 : i32, i32, i32, i32
  }
  func.func @transform_5(%arg0: i32) -> (i32, i32) {
    %c0_i32 = arith.constant 0 : i32
    %c0_i32_0 = arith.constant 0 : i32
    %c0_i32_1 = arith.constant 0 : i32
    return %c0_i32, %c0_i32_0 : i32, i32
  }
  func.func @transform_6(%arg0: i32) -> (i32, i32, i32, i32) {
    %c0_i32 = arith.constant 0 : i32
    %c0_i32_0 = arith.constant 0 : i32
    %c0_i32_1 = arith.constant 0 : i32
    %c0_i32_2 = arith.constant 0 : i32
    %c0_i32_3 = arith.constant 0 : i32
    return %c0_i32, %c0_i32_0, %c0_i32_1, %c0_i32_2 : i32, i32, i32, i32
  }
  func.func @transform_7(%arg0: i32) -> (i32, i32) {
    %c0_i32 = arith.constant 0 : i32
    %c0_i32_0 = arith.constant 0 : i32
    %c0_i32_1 = arith.constant 0 : i32
    return %c0_i32, %c0_i32_0 : i32, i32
  }
  func.func @transform_8(%arg0: i32) -> (i32, i32, i32, i32) {
    %c0_i32 = arith.constant 0 : i32
    %c0_i32_0 = arith.constant 0 : i32
    %c0_i32_1 = arith.constant 0 : i32
    %c0_i32_2 = arith.constant 0 : i32
    %c0_i32_3 = arith.constant 0 : i32
    return %c0_i32, %c0_i32_0, %c0_i32_1, %c0_i32_2 : i32, i32, i32, i32
  }
  func.func @transform_9(%arg0: i32) -> (i32, i32) {
    %c0_i32 = arith.constant 0 : i32
    %c0_i32_0 = arith.constant 0 : i32
    %c0_i32_1 = arith.constant 0 : i32
    return %c0_i32, %c0_i32_0 : i32, i32
  }
  func.func @transform_10(%arg0: i32) -> (i32, i32) {
    %c0_i32 = arith.constant 0 : i32
    %c0_i32_0 = arith.constant 0 : i32
    %c0_i32_1 = arith.constant 0 : i32
    return %c0_i32, %c0_i32_0 : i32, i32
  }
  func.func @transform_11(%arg0: i32) -> (i32, i32) {
    %c0_i32 = arith.constant 0 : i32
    %c0_i32_0 = arith.constant 0 : i32
    %c0_i32_1 = arith.constant 0 : i32
    return %c0_i32, %c0_i32_0 : i32, i32
  }
  func.func @transform_12(%arg0: i32) -> (i32, i32) {
    %c0_i32 = arith.constant 0 : i32
    %c0_i32_0 = arith.constant 0 : i32
    return %arg0, %c0_i32 : i32, i32
  }
}

</mosaic_0001>

<llo_original>
// kernel: tpu_custom_call.1
$region0: #{tpu_custom_call.1}
  #allocation0 [shape = 'u32[]', space=smem, size = 0x4, offset = 0x4, fixed_abs, tag = 'smem constant byte address 0x4 - core index']
  #allocation1 [shape = 'u32[72,128]{1,0:T(1,128)}', space=vmem, size = 0x9000, scoped, tag = 'internal scratch']
  #allocation2 [shape = 'f32[22,22,32,28]{3,2,1,0:T(8,128)}', space=vmem, size = 0x790000, scoped, tag = 'scratch operand']
  #allocation3 [shape = 'bf16[11,11,32,28]{3,2,1,0:T(8,128)(2,1)}', space=vmem, size = 0xf2000, scoped, tag = 'scratch operand']
  #allocation4 [shape = 'f32[9,9,32,48]{3,2,1,0:T(8,128)}', space=vmem, size = 0x144000, scoped, tag = 'scratch operand']
  #allocation5 [shape = 'bf16[4,4,32,48]{3,2,1,0:T(8,128)(2,1)}', space=vmem, size = 0x20000, scoped, tag = 'scratch operand']
  #allocation6 [shape = 'bf16[3,3,32,64]{3,2,1,0:T(8,128)(2,1)}', space=vmem, size = 0x12000, scoped, tag = 'scratch operand']
  %s0 = inlined_call_operand.vmem [shape: f32[3], index: 0, kind: input, shape index: {}]
  %s1 = inlined_call_operand.vmem [shape: bf16[22,22,32,27], index: 1, kind: input, shape index: {}]
  %s2 = inlined_call_operand.vmem [shape: bf16[27,28], index: 2, kind: input, shape index: {}]
  %s3 = inlined_call_operand.vmem [shape: f32[1,28], index: 3, kind: input, shape index: {}]
  %s4 = inlined_call_operand.vmem [shape: bf16[3,3,28,48], index: 4, kind: input, shape index: {}]
  %s5 = inlined_call_operand.vmem [shape: f32[1,48], index: 5, kind: input, shape index: {}]
  %s6 = inlined_call_operand.vmem [shape: bf16[2,2,48,64], index: 6, kind: input, shape index: {}]
  %s7 = inlined_call_operand.vmem [shape: f32[1,64], index: 7, kind: input, shape index: {}]
  %s8 = inlined_call_operand.vmem [shape: bf16[3,3,64,128], index: 8, kind: input, shape index: {}]
  %s9 = inlined_call_operand.vmem [shape: f32[1,128], index: 9, kind: input, shape index: {}]
  %s10 = inlined_call_operand.vmem [shape: bf16[128,128], index: 10, kind: input, shape index: {}]
  %s11 = inlined_call_operand.vmem [shape: f32[1,128], index: 11, kind: input, shape index: {}]
  %s12 = inlined_call_operand.hbm [shape: f32[32,128], index: 12, kind: output, shape index: {}]
  %s13 = sld [smem:[#allocation0]]
  $region97: #{tpu_custom_call.1} parent=0
    _
  %s15 = ssub.s32 1, %s13
  %s16 = scalar_select 0, %s15, %s13
  $region1: #{tpu_custom_call.1} parent=0
    #allocation7 [shape = 'u8[512]{0}', space=smem, size = 0x200, scoped, tag = 'input window, operand 0, single buffered']
    #allocation8 [shape = 's32[1]{0}', space=sflag, size = 0x4, scoped, tag = 'scoped memory for tpu_custom_call.1']
    #allocation9 [shape = 's32[1]{0}', space=sflag, size = 0x4, scoped, tag = 'scoped memory for tpu_custom_call.1']
    #allocation10 [shape = 'u8[16384]{0}', space=vmem, size = 0x4000, scoped, tag = 'output window, operand 0, single buffered']
    %17 = vsyncpa [#allocation9], 0
    %18 = vsyncpa [#allocation8], 0
    // Predicated region
    $region2: #{tpu_custom_call.1} parent=1 // pred_check
      _
    $region3: #{tpu_custom_call.1} parent=1 // pred_check_branch
      %20 = sbr.rel (0) target = $region5
    $region4: #{tpu_custom_call.1} parent=1 // pred_region
      %22 = vsyncadd [#allocation9], 0
      %s24 = sshll.u32 %s0, 4
      %s25 = int_to_ptr.vmem [resolvable:$true] %s24
      %27 = dma.vmem_to_smem %s25, 16, [#allocation7], [#allocation9]
    $region5: #{tpu_custom_call.1} parent=1 // pred_fallthru
      _
    // Predicated region
    $region6: #{tpu_custom_call.1} parent=1 // pred_check
      _
    $region7: #{tpu_custom_call.1} parent=1 // pred_check_branch
      %29 = sbr.rel (0) target = $region9
    $region8: #{tpu_custom_call.1} parent=1 // pred_region
      _
    $region9: #{tpu_custom_call.1} parent=1 // pred_fallthru
      _
    // Predicated region
    $region10: #{tpu_custom_call.1} parent=1 // pred_check
      _
    $region11: #{tpu_custom_call.1} parent=1 // pred_check_branch
      %31 = sbr.rel (0) target = $region13
    $region12: #{tpu_custom_call.1} parent=1 // pred_region
      _
    $region13: #{tpu_custom_call.1} parent=1 // pred_fallthru
      _
    // Predicated region
    $region14: #{tpu_custom_call.1} parent=1 // pred_check
      _
    $region15: #{tpu_custom_call.1} parent=1 // pred_check_branch
      %33 = sbr.rel (0) target = $region17
    $region16: #{tpu_custom_call.1} parent=1 // pred_region
      _
    $region17: #{tpu_custom_call.1} parent=1 // pred_fallthru
      _
    // Predicated region
    $region18: #{tpu_custom_call.1} parent=1 // pred_check
      _
    $region19: #{tpu_custom_call.1} parent=1 // pred_check_branch
      %35 = sbr.rel (0) target = $region21
    $region20: #{tpu_custom_call.1} parent=1 // pred_region
      _
    $region21: #{tpu_custom_call.1} parent=1 // pred_fallthru
      _
    // Predicated region
    $region22: #{tpu_custom_call.1} parent=1 // pred_check
      _
    $region23: #{tpu_custom_call.1} parent=1 // pred_check_branch
      %37 = sbr.rel (0) target = $region25
    $region24: #{tpu_custom_call.1} parent=1 // pred_region
      _
    $region25: #{tpu_custom_call.1} parent=1 // pred_fallthru
      _
    // Predicated region
    $region26: #{tpu_custom_call.1} parent=1 // pred_check
      _
    $region27: #{tpu_custom_call.1} parent=1 // pred_check_branch
      %39 = sbr.rel (0) target = $region29
    $region28: #{tpu_custom_call.1} parent=1 // pred_region
      _
    $region29: #{tpu_custom_call.1} parent=1 // pred_fallthru
      _
    // Predicated region
    $region30: #{tpu_custom_call.1} parent=1 // pred_check
      _
    $region31: #{tpu_custom_call.1} parent=1 // pred_check_branch
      %41 = sbr.rel (0) target = $region33
    $region32: #{tpu_custom_call.1} parent=1 // pred_region
      _
    $region33: #{tpu_custom_call.1} parent=1 // pred_fallthru
      _
    // Predicated region
    $region34: #{tpu_custom_call.1} parent=1 // pred_check
      _
    $region35: #{tpu_custom_call.1} parent=1 // pred_check_branch
      %43 = sbr.rel (0) target = $region37
    $region36: #{tpu_custom_call.1} parent=1 // pred_region
      _
    $region37: #{tpu_custom_call.1} parent=1 // pred_fallthru
      _
    // Predicated region
    $region38: #{tpu_custom_call.1} parent=1 // pred_check
      _
    $region39: #{tpu_custom_call.1} parent=1 // pred_check_branch
      %45 = sbr.rel (0) target = $region41
    $region40: #{tpu_custom_call.1} parent=1 // pred_region
      _
    $region41: #{tpu_custom_call.1} parent=1 // pred_fallthru
      _
    // Predicated region
    $region42: #{tpu_custom_call.1} parent=1 // pred_check
      _
    $region43: #{tpu_custom_call.1} parent=1 // pred_check_branch
      %47 = sbr.rel (0) target = $region45
    $region44: #{tpu_custom_call.1} parent=1 // pred_region
      _
    $region45: #{tpu_custom_call.1} parent=1 // pred_fallthru
      _
    // Predicated region
    $region46: #{tpu_custom_call.1} parent=1 // pred_check
      _
    $region47: #{tpu_custom_call.1} parent=1 // pred_check_branch
      %49 = sbr.rel (0) target = $region49
    $region48: #{tpu_custom_call.1} parent=1 // pred_region
      _
    $region49: #{tpu_custom_call.1} parent=1 // pred_fallthru
      _
    // Predicated region
    $region50: #{tpu_custom_call.1} parent=1 // pred_check
      _
    $region51: #{tpu_custom_call.1} parent=1 // pred_check_branch
      %51 = sbr.rel (0) target = $region53
    $region52: #{tpu_custom_call.1} parent=1 // pred_region
      %53 = dma.done [#allocation9], 16
    $region53: #{tpu_custom_call.1} parent=1 // pred_fallthru
      _
    %54 = sfence
    %s56 = sld [smem:[#allocation7]]
    %s57 = sld [smem:[#allocation7 + $0x1]]
    %s58 = sld [smem:[#allocation7 + $0x2]]
    %v59 = vld [vmem:[%s2] sm:$0xf]
    %v60 = vld [vmem:[%s2 + $0x4] sm:$0xf]
    %v61 = vld [vmem:[%s2 + $0x8] sm:$0xf]
    %v62 = vld [vmem:[%s2 + $0xc] sm:$0x3]
    %v63 = vld [vmem:[%s3] sm:$0x1]
    loop: start=0, step=1, limit=22
    $region54: #{tpu_custom_call.1} parent=1 // loop_pre_header
      _
    $region55: #{tpu_custom_call.1} parent=1 // loop_header
      %s65 = sphi 0, %s69
      %p66 = scmp.ge.s32.totalorder %s65, 22
    $region56: #{tpu_custom_call.1} parent=1 // loop_header_branch
      %68 = sbr.rel (%p66) target = $region60
    $region57: #{tpu_custom_call.1} parent=1 // loop_body
      %s70 = smul.u32 %s65, 88
      %s71 = smul.addr %s70, 4
      %s72 = scalar_lea.vmem %s1, %s71
      %v73 = vld [vmem:[%s72] sm:$0xf]
      %v74 = vld [vmem:[%s72 + $0x4] sm:$0xf]
      %v75 = vld [vmem:[%s72 + $0x8] sm:$0xf]
      %v76 = vld [vmem:[%s72 + $0xc] sm:$0xf]
      %v77 = vld [vmem:[%s72 + $0x10] sm:$0xf]
      %v78 = vld [vmem:[%s72 + $0x14] sm:$0xf]
      %v79 = vld [vmem:[%s72 + $0x18] sm:$0xf]
      %v80 = vld [vmem:[%s72 + $0x1c] sm:$0xf]
      %v81 = vld [vmem:[%s72 + $0x20] sm:$0xf]
      %v82 = vld [vmem:[%s72 + $0x24] sm:$0xf]
      %v83 = vld [vmem:[%s72 + $0x28] sm:$0xf]
      %v84 = vld [vmem:[%s72 + $0x2c] sm:$0xf]
      %v85 = vld [vmem:[%s72 + $0x30] sm:$0xf]
      %v86 = vld [vmem:[%s72 + $0x34] sm:$0xf]
      %v87 = vld [vmem:[%s72 + $0x38] sm:$0xf]
      %v88 = vld [vmem:[%s72 + $0x3c] sm:$0xf]
      %v89 = vld [vmem:[%s72 + $0x40] sm:$0xf]
      %v90 = vld [vmem:[%s72 + $0x44] sm:$0xf]
      %v91 = vld [vmem:[%s72 + $0x48] sm:$0xf]
      %v92 = vld [vmem:[%s72 + $0x4c] sm:$0xf]
      %v93 = vld [vmem:[%s72 + $0x50] sm:$0xf]
      %v94 = vld [vmem:[%s72 + $0x54] sm:$0xf]
      %v95 = vld [vmem:[%s72 + $0x58] sm:$0xf]
      %v96 = vld [vmem:[%s72 + $0x5c] sm:$0xf]
      %v97 = vld [vmem:[%s72 + $0x60] sm:$0xf]
      %v98 = vld [vmem:[%s72 + $0x64] sm:$0xf]
      %v99 = vld [vmem:[%s72 + $0x68] sm:$0xf]
      %v100 = vld [vmem:[%s72 + $0x6c] sm:$0xf]
      %v101 = vld [vmem:[%s72 + $0x70] sm:$0xf]
      %v102 = vld [vmem:[%s72 + $0x74] sm:$0xf]
      %v103 = vld [vmem:[%s72 + $0x78] sm:$0xf]
      %v104 = vld [vmem:[%s72 + $0x7c] sm:$0xf]
      %v105 = vld [vmem:[%s72 + $0x80] sm:$0xf]
      %v106 = vld [vmem:[%s72 + $0x84] sm:$0xf]
      %v107 = vld [vmem:[%s72 + $0x88] sm:$0xf]
      %v108 = vld [vmem:[%s72 + $0x8c] sm:$0xf]
      %v109 = vld [vmem:[%s72 + $0x90] sm:$0xf]
      %v110 = vld [vmem:[%s72 + $0x94] sm:$0xf]
      %v111 = vld [vmem:[%s72 + $0x98] sm:$0xf]
      %v112 = vld [vmem:[%s72 + $0x9c] sm:$0xf]
      %v113 = vld [vmem:[%s72 + $0xa0] sm:$0xf]
      %v114 = vld [vmem:[%s72 + $0xa4] sm:$0xf]
      %v115 = vld [vmem:[%s72 + $0xa8] sm:$0xf]
      %v116 = vld [vmem:[%s72 + $0xac] sm:$0xf]
      %v117 = vld [vmem:[%s72 + $0xb0] sm:$0xf]
      %v118 = vld [vmem:[%s72 + $0xb4] sm:$0xf]
      %v119 = vld [vmem:[%s72 + $0xb8] sm:$0xf]
      %v120 = vld [vmem:[%s72 + $0xbc] sm:$0xf]
      %v121 = vld [vmem:[%s72 + $0xc0] sm:$0xf]
      %v122 = vld [vmem:[%s72 + $0xc4] sm:$0xf]
      %v123 = vld [vmem:[%s72 + $0xc8] sm:$0xf]
      %v124 = vld [vmem:[%s72 + $0xcc] sm:$0xf]
      %v125 = vld [vmem:[%s72 + $0xd0] sm:$0xf]
      %v126 = vld [vmem:[%s72 + $0xd4] sm:$0xf]
      %v127 = vld [vmem:[%s72 + $0xd8] sm:$0xf]
      %v128 = vld [vmem:[%s72 + $0xdc] sm:$0xf]
      %v129 = vld [vmem:[%s72 + $0xe0] sm:$0xf]
      %v130 = vld [vmem:[%s72 + $0xe4] sm:$0xf]
      %v131 = vld [vmem:[%s72 + $0xe8] sm:$0xf]
      %v132 = vld [vmem:[%s72 + $0xec] sm:$0xf]
      %v133 = vld [vmem:[%s72 + $0xf0] sm:$0xf]
      %v134 = vld [vmem:[%s72 + $0xf4] sm:$0xf]
      %v135 = vld [vmem:[%s72 + $0xf8] sm:$0xf]
      %v136 = vld [vmem:[%s72 + $0xfc] sm:$0xf]
      %v137 = vld [vmem:[%s72 + $0x100] sm:$0xf]
      %v138 = vld [vmem:[%s72 + $0x104] sm:$0xf]
      %v139 = vld [vmem:[%s72 + $0x108] sm:$0xf]
      %v140 = vld [vmem:[%s72 + $0x10c] sm:$0xf]
      %v141 = vld [vmem:[%s72 + $0x110] sm:$0xf]
      %v142 = vld [vmem:[%s72 + $0x114] sm:$0xf]
      %v143 = vld [vmem:[%s72 + $0x118] sm:$0xf]
      %v144 = vld [vmem:[%s72 + $0x11c] sm:$0xf]
      %v145 = vld [vmem:[%s72 + $0x120] sm:$0xf]
      %v146 = vld [vmem:[%s72 + $0x124] sm:$0xf]
      %v147 = vld [vmem:[%s72 + $0x128] sm:$0xf]
      %v148 = vld [vmem:[%s72 + $0x12c] sm:$0xf]
      %v149 = vld [vmem:[%s72 + $0x130] sm:$0xf]
      %v150 = vld [vmem:[%s72 + $0x134] sm:$0xf]
      %v151 = vld [vmem:[%s72 + $0x138] sm:$0xf]
      %v152 = vld [vmem:[%s72 + $0x13c] sm:$0xf]
      %v153 = vld [vmem:[%s72 + $0x140] sm:$0xf]
      %v154 = vld [vmem:[%s72 + $0x144] sm:$0xf]
      %v155 = vld [vmem:[%s72 + $0x148] sm:$0xf]
      %v156 = vld [vmem:[%s72 + $0x14c] sm:$0xf]
      %v157 = vld [vmem:[%s72 + $0x150] sm:$0xf]
      %v158 = vld [vmem:[%s72 + $0x154] sm:$0xf]
      %v159 = vld [vmem:[%s72 + $0x158] sm:$0xf]
      %v160 = vld [vmem:[%s72 + $0x15c] sm:$0xf]
      %v162 = vperm.slane %v63, 0
      %v252 = vunpack.c.l.b16 %v73
      %v253 = vunpack.c.l.b16 %v74
      %v254 = vunpack.c.l.b16 %v75
      %v255 = vunpack.c.l.b16 %v76
      %v256 = vunpack.c.l.b16 %v77
      %v257 = vunpack.c.l.b16 %v78
      %v258 = vunpack.c.l.b16 %v79
      %v259 = vunpack.c.l.b16 %v80
      %v260 = vunpack.c.l.b16 %v81
      %v261 = vunpack.c.l.b16 %v82
      %v262 = vunpack.c.l.b16 %v83
      %v263 = vunpack.c.l.b16 %v84
      %v264 = vunpack.c.l.b16 %v85
      %v265 = vunpack.c.l.b16 %v86
      %v266 = vunpack.c.l.b16 %v87
      %v267 = vunpack.c.l.b16 %v88
      %v268 = vunpack.c.l.b16 %v89
      %v269 = vunpack.c.l.b16 %v90
      %v270 = vunpack.c.l.b16 %v91
      %v271 = vunpack.c.l.b16 %v92
      %v272 = vunpack.c.l.b16 %v93
      %v273 = vunpack.c.l.b16 %v94
      %v274 = vunpack.c.l.b16 %v95
      %v275 = vunpack.c.l.b16 %v96
      %v276 = vunpack.c.l.b16 %v97
      %v277 = vunpack.c.l.b16 %v98
      %v278 = vunpack.c.l.b16 %v99
      %v279 = vunpack.c.l.b16 %v100
      %v280 = vunpack.c.l.b16 %v101
      %v281 = vunpack.c.l.b16 %v102
      %v282 = vunpack.c.l.b16 %v103
      %v283 = vunpack.c.l.b16 %v104
      %v284 = vunpack.c.l.b16 %v105
      %v285 = vunpack.c.l.b16 %v106
      %v286 = vunpack.c.l.b16 %v107
      %v287 = vunpack.c.l.b16 %v108
      %v288 = vunpack.c.l.b16 %v109
      %v289 = vunpack.c.l.b16 %v110
      %v290 = vunpack.c.l.b16 %v111
      %v291 = vunpack.c.l.b16 %v112
      %v292 = vunpack.c.l.b16 %v113
      %v293 = vunpack.c.l.b16 %v114
      %v294 = vunpack.c.l.b16 %v115
      %v295 = vunpack.c.l.b16 %v116
      %v296 = vunpack.c.l.b16 %v117
      %v297 = vunpack.c.l.b16 %v118
      %v298 = vunpack.c.l.b16 %v119
      %v299 = vunpack.c.l.b16 %v120
      %v300 = vunpack.c.l.b16 %v121
      %v301 = vunpack.c.l.b16 %v122
      %v302 = vunpack.c.l.b16 %v123
      %v303 = vunpack.c.l.b16 %v124
      %v304 = vunpack.c.l.b16 %v125
      %v305 = vunpack.c.l.b16 %v126
      %v306 = vunpack.c.l.b16 %v127
      %v307 = vunpack.c.l.b16 %v128
      %v308 = vunpack.c.l.b16 %v129
      %v309 = vunpack.c.l.b16 %v130
      %v310 = vunpack.c.l.b16 %v131
      %v311 = vunpack.c.l.b16 %v132
      %v312 = vunpack.c.l.b16 %v133
      %v313 = vunpack.c.l.b16 %v134
      %v314 = vunpack.c.l.b16 %v135
      %v315 = vunpack.c.l.b16 %v136
      %v316 = vunpack.c.l.b16 %v137
      %v317 = vunpack.c.l.b16 %v138
      %v318 = vunpack.c.l.b16 %v139
      %v319 = vunpack.c.l.b16 %v140
      %v320 = vunpack.c.l.b16 %v141
      %v321 = vunpack.c.l.b16 %v142
      %v322 = vunpack.c.l.b16 %v143
      %v323 = vunpack.c.l.b16 %v144
      %v324 = vunpack.c.l.b16 %v145
      %v325 = vunpack.c.l.b16 %v146
      %v326 = vunpack.c.l.b16 %v147
      %v327 = vunpack.c.l.b16 %v148
      %v328 = vunpack.c.l.b16 %v149
      %v329 = vunpack.c.l.b16 %v150
      %v330 = vunpack.c.l.b16 %v151
      %v331 = vunpack.c.l.b16 %v152
      %v332 = vunpack.c.l.b16 %v153
      %v333 = vunpack.c.l.b16 %v154
      %v334 = vunpack.c.l.b16 %v155
      %v335 = vunpack.c.l.b16 %v156
      %v336 = vunpack.c.l.b16 %v157
      %v337 = vunpack.c.l.b16 %v158
      %v338 = vunpack.c.l.b16 %v159
      %v339 = vunpack.c.l.b16 %v160
      %v340 = vpack.c.b16 %v253, %v252
      %v341 = vpack.c.b16 %v255, %v254
      %v342 = vpack.c.b16 %v257, %v256
      %v343 = vpack.c.b16 %v259, %v258
      %v344 = vpack.c.b16 %v261, %v260
      %v345 = vpack.c.b16 %v263, %v262
      %v346 = vpack.c.b16 %v265, %v264
      %v347 = vpack.c.b16 %v267, %v266
      %v348 = vpack.c.b16 %v269, %v268
      %v349 = vpack.c.b16 %v271, %v270
      %v350 = vpack.c.b16 %v273, %v272
      %v351 = vpack.c.b16 %v275, %v274
      %v352 = vpack.c.b16 %v277, %v276
      %v353 = vpack.c.b16 %v279, %v278
      %v354 = vpack.c.b16 %v281, %v280
      %v355 = vpack.c.b16 %v283, %v282
      %v356 = vpack.c.b16 %v285, %v284
      %v357 = vpack.c.b16 %v287, %v286
      %v358 = vpack.c.b16 %v289, %v288
      %v359 = vpack.c.b16 %v291, %v290
      %v360 = vpack.c.b16 %v293, %v292
      %v361 = vpack.c.b16 %v295, %v294
      %v362 = vpack.c.b16 %v297, %v296
      %v363 = vpack.c.b16 %v299, %v298
      %v364 = vpack.c.b16 %v301, %v300
      %v365 = vpack.c.b16 %v303, %v302
      %v366 = vpack.c.b16 %v305, %v304
      %v367 = vpack.c.b16 %v307, %v306
      %v368 = vpack.c.b16 %v309, %v308
      %v369 = vpack.c.b16 %v311, %v310
      %v370 = vpack.c.b16 %v313, %v312
      %v371 = vpack.c.b16 %v315, %v314
      %v372 = vpack.c.b16 %v317, %v316
      %v373 = vpack.c.b16 %v319, %v318
      %v374 = vpack.c.b16 %v321, %v320
      %v375 = vpack.c.b16 %v323, %v322
      %v376 = vpack.c.b16 %v325, %v324
      %v377 = vpack.c.b16 %v327, %v326
      %v378 = vpack.c.b16 %v329, %v328
      %v379 = vpack.c.b16 %v331, %v330
      %v380 = vpack.c.b16 %v333, %v332
      %v381 = vpack.c.b16 %v335, %v334
      %v382 = vpack.c.b16 %v337, %v336
      %v383 = vpack.c.b16 %v339, %v338
      %v388 = vunpack.c.l.b16 %v59
      %v389 = vunpack.c.l.b16 %v60
      %v390 = vunpack.c.l.b16 %v61
      %v391 = vunpack.c.l.b16 %v62
      %v392 = vpack.c.b16 %v389, %v388
      %v393 = vpack.c.b16 %v391, %v390
      %vm395 = vcmask 220160
      %v397 = vsel %vm395, %v340, 0
      %v400 = vsel %vm395, %v341, 0
      %v403 = vsel %vm395, %v342, 0
      %v406 = vsel %vm395, %v343, 0
      %v409 = vsel %vm395, %v344, 0
      %v412 = vsel %vm395, %v345, 0
      %v415 = vsel %vm395, %v346, 0
      %v418 = vsel %vm395, %v347, 0
      %v421 = vsel %vm395, %v348, 0
      %v424 = vsel %vm395, %v349, 0
      %v427 = vsel %vm395, %v350, 0
      %v430 = vsel %vm395, %v351, 0
      %v433 = vsel %vm395, %v352, 0
      %v436 = vsel %vm395, %v353, 0
      %v439 = vsel %vm395, %v354, 0
      %v442 = vsel %vm395, %v355, 0
      %v445 = vsel %vm395, %v356, 0
      %v448 = vsel %vm395, %v357, 0
      %v451 = vsel %vm395, %v358, 0
      %v454 = vsel %vm395, %v359, 0
      %v457 = vsel %vm395, %v360, 0
      %v460 = vsel %vm395, %v361, 0
      %v463 = vsel %vm395, %v362, 0
      %v466 = vsel %vm395, %v363, 0
      %v469 = vsel %vm395, %v364, 0
      %v472 = vsel %vm395, %v365, 0
      %v475 = vsel %vm395, %v366, 0
      %v478 = vsel %vm395, %v367, 0
      %v481 = vsel %vm395, %v368, 0
      %v484 = vsel %vm395, %v369, 0
      %v487 = vsel %vm395, %v370, 0
      %v490 = vsel %vm395, %v371, 0
      %v493 = vsel %vm395, %v372, 0
      %v496 = vsel %vm395, %v373, 0
      %v499 = vsel %vm395, %v374, 0
      %v502 = vsel %vm395, %v375, 0
      %v505 = vsel %vm395, %v376, 0
      %v508 = vsel %vm395, %v377, 0
      %v511 = vsel %vm395, %v378, 0
      %v514 = vsel %vm395, %v379, 0
      %v517 = vsel %vm395, %v380, 0
      %v520 = vsel %vm395, %v381, 0
      %v523 = vsel %vm395, %v382, 0
      %v526 = vsel %vm395, %v383, 0
      %vm528 = vcmask 1044480
      %vm529 = vcmask 1045504
      %v530 = vsel %vm528, 4294967295, 65535
      %v531 = vsel %vm529, %v530, 0
      %v533 = vand.u32 %v393, %v531
      %535 = vmatpush.bf16.msra.mxu0 0
      %536 = vmatpush.bf16.msra.mxu0 0
      %537 = vmatpush.bf16.msra.mxu0 0
      %538 = vmatpush.bf16.msra.mxu0 0
      %539 = vmatpush.bf16.msra.mxu0 0
      %540 = vmatpush.bf16.msra.mxu0 0
      %541 = vmatpush.bf16.msra.mxu0 %v533
      %542 = vmatpush.bf16.msra.mxu0 %v392
      %543 = vmatmul.bf16.gmra.mxu0 %v397
      %v544 = vpop.f32.mrf.mxu0
      %v545 = vadd.f32 %v162, %v544
      %v546 = vpop.f32.mrf.mxu0
      %v547 = vadd.f32 %v162, %v546
      %548 = vmatmul.bf16.gmra.mxu0 %v400
      %v549 = vpop.f32.mrf.mxu0
      %v550 = vadd.f32 %v162, %v549
      %v551 = vpop.f32.mrf.mxu0
      %v552 = vadd.f32 %v162, %v551
      %553 = vmatmul.bf16.gmra.mxu0 %v403
      %v554 = vpop.f32.mrf.mxu0
      %v555 = vadd.f32 %v162, %v554
      %v556 = vpop.f32.mrf.mxu0
      %v557 = vadd.f32 %v162, %v556
      %558 = vmatmul.bf16.gmra.mxu0 %v406
      %v559 = vpop.f32.mrf.mxu0
      %v560 = vadd.f32 %v162, %v559
      %v561 = vpop.f32.mrf.mxu0
      %v562 = vadd.f32 %v162, %v561
      %563 = vmatmul.bf16.gmra.mxu0 %v409
      %v564 = vpop.f32.mrf.mxu0
      %v565 = vadd.f32 %v162, %v564
      %v566 = vpop.f32.mrf.mxu0
      %v567 = vadd.f32 %v162, %v566
      %568 = vmatmul.bf16.gmra.mxu0 %v412
      %v569 = vpop.f32.mrf.mxu0
      %v570 = vadd.f32 %v162, %v569
      %v571 = vpop.f32.mrf.mxu0
      %v572 = vadd.f32 %v162, %v571
      %573 = vmatmul.bf16.gmra.mxu0 %v415
      %v574 = vpop.f32.mrf.mxu0
      %v575 = vadd.f32 %v162, %v574
      %v576 = vpop.f32.mrf.mxu0
      %v577 = vadd.f32 %v162, %v576
      %578 = vmatmul.bf16.gmra.mxu0 %v418
      %v579 = vpop.f32.mrf.mxu0
      %v580 = vadd.f32 %v162, %v579
      %v581 = vpop.f32.mrf.mxu0
      %v582 = vadd.f32 %v162, %v581
      %583 = vmatmul.bf16.gmra.mxu0 %v421
      %v584 = vpop.f32.mrf.mxu0
      %v585 = vadd.f32 %v162, %v584
      %v586 = vpop.f32.mrf.mxu0
      %v587 = vadd.f32 %v162, %v586
      %588 = vmatmul.bf16.gmra.mxu0 %v424
      %v589 = vpop.f32.mrf.mxu0
      %v590 = vadd.f32 %v162, %v589
      %v591 = vpop.f32.mrf.mxu0
      %v592 = vadd.f32 %v162, %v591
      %593 = vmatmul.bf16.gmra.mxu0 %v427
      %v594 = vpop.f32.mrf.mxu0
      %v595 = vadd.f32 %v162, %v594
      %v596 = vpop.f32.mrf.mxu0
      %v597 = vadd.f32 %v162, %v596
      %598 = vmatmul.bf16.gmra.mxu0 %v430
      %v599 = vpop.f32.mrf.mxu0
      %v600 = vadd.f32 %v162, %v599
      %v601 = vpop.f32.mrf.mxu0
      %v602 = vadd.f32 %v162, %v601
      %603 = vmatmul.bf16.gmra.mxu0 %v433
      %v604 = vpop.f32.mrf.mxu0
      %v605 = vadd.f32 %v162, %v604
      %v606 = vpop.f32.mrf.mxu0
      %v607 = vadd.f32 %v162, %v606
      %608 = vmatmul.bf16.gmra.mxu0 %v436
      %v609 = vpop.f32.mrf.mxu0
      %v610 = vadd.f32 %v162, %v609
      %v611 = vpop.f32.mrf.mxu0
      %v612 = vadd.f32 %v162, %v611
      %613 = vmatmul.bf16.gmra.mxu0 %v439
      %v614 = vpop.f32.mrf.mxu0
      %v615 = vadd.f32 %v162, %v614
      %v616 = vpop.f32.mrf.mxu0
      %v617 = vadd.f32 %v162, %v616
      %618 = vmatmul.bf16.gmra.mxu0 %v442
      %v619 = vpop.f32.mrf.mxu0
      %v620 = vadd.f32 %v162, %v619
      %v621 = vpop.f32.mrf.mxu0
      %v622 = vadd.f32 %v162, %v621
      %623 = vmatmul.bf16.gmra.mxu0 %v445
      %v624 = vpop.f32.mrf.mxu0
      %v625 = vadd.f32 %v162, %v624
      %v626 = vpop.f32.mrf.mxu0
      %v627 = vadd.f32 %v162, %v626
      %628 = vmatmul.bf16.gmra.mxu0 %v448
      %v629 = vpop.f32.mrf.mxu0
      %v630 = vadd.f32 %v162, %v629
      %v631 = vpop.f32.mrf.mxu0
      %v632 = vadd.f32 %v162, %v631
      %633 = vmatmul.bf16.gmra.mxu0 %v451
      %v634 = vpop.f32.mrf.mxu0
      %v635 = vadd.f32 %v162, %v634
      %v636 = vpop.f32.mrf.mxu0
      %v637 = vadd.f32 %v162, %v636
      %638 = vmatmul.bf16.gmra.mxu0 %v454
      %v639 = vpop.f32.mrf.mxu0
      %v640 = vadd.f32 %v162, %v639
      %v641 = vpop.f32.mrf.mxu0
      %v642 = vadd.f32 %v162, %v641
      %643 = vmatmul.bf16.gmra.mxu0 %v457
      %v644 = vpop.f32.mrf.mxu0
      %v645 = vadd.f32 %v162, %v644
      %v646 = vpop.f32.mrf.mxu0
      %v647 = vadd.f32 %v162, %v646
      %648 = vmatmul.bf16.gmra.mxu0 %v460
      %v649 = vpop.f32.mrf.mxu0
      %v650 = vadd.f32 %v162, %v649
      %v651 = vpop.f32.mrf.mxu0
      %v652 = vadd.f32 %v162, %v651
      %653 = vmatmul.bf16.gmra.mxu0 %v463
      %v654 = vpop.f32.mrf.mxu0
      %v655 = vadd.f32 %v162, %v654
      %v656 = vpop.f32.mrf.mxu0
      %v657 = vadd.f32 %v162, %v656
      %658 = vmatmul.bf16.gmra.mxu0 %v466
      %v659 = vpop.f32.mrf.mxu0
      %v660 = vadd.f32 %v162, %v659
      %v661 = vpop.f32.mrf.mxu0
      %v662 = vadd.f32 %v162, %v661
      %663 = vmatmul.bf16.gmra.mxu0 %v469
      %v664 = vpop.f32.mrf.mxu0
      %v665 = vadd.f32 %v162, %v664
      %v666 = vpop.f32.mrf.mxu0
      %v667 = vadd.f32 %v162, %v666
      %668 = vmatmul.bf16.gmra.mxu0 %v472
      %v669 = vpop.f32.mrf.mxu0
      %v670 = vadd.f32 %v162, %v669
      %v671 = vpop.f32.mrf.mxu0
      %v672 = vadd.f32 %v162, %v671
      %673 = vmatmul.bf16.gmra.mxu0 %v475
      %v674 = vpop.f32.mrf.mxu0
      %v675 = vadd.f32 %v162, %v674
      %v676 = vpop.f32.mrf.mxu0
      %v677 = vadd.f32 %v162, %v676
      %678 = vmatmul.bf16.gmra.mxu0 %v478
      %v679 = vpop.f32.mrf.mxu0
      %v680 = vadd.f32 %v162, %v679
      %v681 = vpop.f32.mrf.mxu0
      %v682 = vadd.f32 %v162, %v681
      %683 = vmatmul.bf16.gmra.mxu0 %v481
      %v684 = vpop.f32.mrf.mxu0
      %v685 = vadd.f32 %v162, %v684
      %v686 = vpop.f32.mrf.mxu0
      %v687 = vadd.f32 %v162, %v686
      %688 = vmatmul.bf16.gmra.mxu0 %v484
      %v689 = vpop.f32.mrf.mxu0
      %v690 = vadd.f32 %v162, %v689
      %v691 = vpop.f32.mrf.mxu0
      %v692 = vadd.f32 %v162, %v691
      %693 = vmatmul.bf16.gmra.mxu0 %v487
      %v694 = vpop.f32.mrf.mxu0
      %v695 = vadd.f32 %v162, %v694
      %v696 = vpop.f32.mrf.mxu0
      %v697 = vadd.f32 %v162, %v696
      %698 = vmatmul.bf16.gmra.mxu0 %v490
      %v699 = vpop.f32.mrf.mxu0
      %v700 = vadd.f32 %v162, %v699
      %v701 = vpop.f32.mrf.mxu0
      %v702 = vadd.f32 %v162, %v701
      %703 = vmatmul.bf16.gmra.mxu0 %v493
      %v704 = vpop.f32.mrf.mxu0
      %v705 = vadd.f32 %v162, %v704
      %v706 = vpop.f32.mrf.mxu0
      %v707 = vadd.f32 %v162, %v706
      %708 = vmatmul.bf16.gmra.mxu0 %v496
      %v709 = vpop.f32.mrf.mxu0
      %v710 = vadd.f32 %v162, %v709
      %v711 = vpop.f32.mrf.mxu0
      %v712 = vadd.f32 %v162, %v711
      %713 = vmatmul.bf16.gmra.mxu0 %v499
      %v714 = vpop.f32.mrf.mxu0
      %v715 = vadd.f32 %v162, %v714
      %v716 = vpop.f32.mrf.mxu0
      %v717 = vadd.f32 %v162, %v716
      %718 = vmatmul.bf16.gmra.mxu0 %v502
      %v719 = vpop.f32.mrf.mxu0
      %v720 = vadd.f32 %v162, %v719
      %v721 = vpop.f32.mrf.mxu0
      %v722 = vadd.f32 %v162, %v721
      %723 = vmatmul.bf16.gmra.mxu0 %v505
      %v724 = vpop.f32.mrf.mxu0
      %v725 = vadd.f32 %v162, %v724
      %v726 = vpop.f32.mrf.mxu0
      %v727 = vadd.f32 %v162, %v726
      %728 = vmatmul.bf16.gmra.mxu0 %v508
      %v729 = vpop.f32.mrf.mxu0
      %v730 = vadd.f32 %v162, %v729
      %v731 = vpop.f32.mrf.mxu0
      %v732 = vadd.f32 %v162, %v731
      %733 = vmatmul.bf16.gmra.mxu0 %v511
      %v734 = vpop.f32.mrf.mxu0
      %v735 = vadd.f32 %v162, %v734
      %v736 = vpop.f32.mrf.mxu0
      %v737 = vadd.f32 %v162, %v736
      %738 = vmatmul.bf16.gmra.mxu0 %v514
      %v739 = vpop.f32.mrf.mxu0
      %v740 = vadd.f32 %v162, %v739
      %v741 = vpop.f32.mrf.mxu0
      %v742 = vadd.f32 %v162, %v741
      %743 = vmatmul.bf16.gmra.mxu0 %v517
      %v744 = vpop.f32.mrf.mxu0
      %v745 = vadd.f32 %v162, %v744
      %v746 = vpop.f32.mrf.mxu0
      %v747 = vadd.f32 %v162, %v746
      %748 = vmatmul.bf16.gmra.mxu0 %v520
      %v749 = vpop.f32.mrf.mxu0
      %v750 = vadd.f32 %v162, %v749
      %v751 = vpop.f32.mrf.mxu0
      %v752 = vadd.f32 %v162, %v751
      %753 = vmatmul.bf16.gmra.mxu0 %v523
      %v754 = vpop.f32.mrf.mxu0
      %v755 = vadd.f32 %v162, %v754
      %v756 = vpop.f32.mrf.mxu0
      %v757 = vadd.f32 %v162, %v756
      %758 = vmatmul.bf16.gmra.mxu0 %v526
      %v759 = vpop.f32.mrf.mxu0
      %v760 = vadd.f32 %v162, %v759
      %v761 = vpop.f32.mrf.mxu0
      %v762 = vadd.f32 %v162, %v761
      %763 = vdwg.mxu0
      %vm764 = vcmp.ge.f32.partialorder %v545, 0.0
      %vm765 = vcmp.ge.f32.partialorder %v547, 0.0
      %vm766 = vcmp.ge.f32.partialorder %v550, 0.0
      %vm767 = vcmp.ge.f32.partialorder %v552, 0.0
      %vm768 = vcmp.ge.f32.partialorder %v555, 0.0
      %vm769 = vcmp.ge.f32.partialorder %v557, 0.0
      %vm770 = vcmp.ge.f32.partialorder %v560, 0.0
      %vm771 = vcmp.ge.f32.partialorder %v562, 0.0
      %vm772 = vcmp.ge.f32.partialorder %v565, 0.0
      %vm773 = vcmp.ge.f32.partialorder %v567, 0.0
      %vm774 = vcmp.ge.f32.partialorder %v570, 0.0
      %vm775 = vcmp.ge.f32.partialorder %v572, 0.0
      %vm776 = vcmp.ge.f32.partialorder %v575, 0.0
      %vm777 = vcmp.ge.f32.partialorder %v577, 0.0
      %vm778 = vcmp.ge.f32.partialorder %v580, 0.0
      %vm779 = vcmp.ge.f32.partialorder %v582, 0.0
      %vm780 = vcmp.ge.f32.partialorder %v585, 0.0
      %vm781 = vcmp.ge.f32.partialorder %v587, 0.0
      %vm782 = vcmp.ge.f32.partialorder %v590, 0.0
      %vm783 = vcmp.ge.f32.partialorder %v592, 0.0
      %vm784 = vcmp.ge.f32.partialorder %v595, 0.0
      %vm785 = vcmp.ge.f32.partialorder %v597, 0.0
      %vm786 = vcmp.ge.f32.partialorder %v600, 0.0
      %vm787 = vcmp.ge.f32.partialorder %v602, 0.0
      %vm788 = vcmp.ge.f32.partialorder %v605, 0.0
      %vm789 = vcmp.ge.f32.partialorder %v607, 0.0
      %vm790 = vcmp.ge.f32.partialorder %v610, 0.0
      %vm791 = vcmp.ge.f32.partialorder %v612, 0.0
      %vm792 = vcmp.ge.f32.partialorder %v615, 0.0
      %vm793 = vcmp.ge.f32.partialorder %v617, 0.0
      %vm794 = vcmp.ge.f32.partialorder %v620, 0.0
      %vm795 = vcmp.ge.f32.partialorder %v622, 0.0
      %vm796 = vcmp.ge.f32.partialorder %v625, 0.0
      %vm797 = vcmp.ge.f32.partialorder %v627, 0.0
      %vm798 = vcmp.ge.f32.partialorder %v630, 0.0
      %vm799 = vcmp.ge.f32.partialorder %v632, 0.0
      %vm800 = vcmp.ge.f32.partialorder %v635, 0.0
      %vm801 = vcmp.ge.f32.partialorder %v637, 0.0
      %vm802 = vcmp.ge.f32.partialorder %v640, 0.0
      %vm803 = vcmp.ge.f32.partialorder %v642, 0.0
      %vm804 = vcmp.ge.f32.partialorder %v645, 0.0
      %vm805 = vcmp.ge.f32.partialorder %v647, 0.0
      %vm806 = vcmp.ge.f32.partialorder %v650, 0.0
      %vm807 = vcmp.ge.f32.partialorder %v652, 0.0
      %vm808 = vcmp.ge.f32.partialorder %v655, 0.0
      %vm809 = vcmp.ge.f32.partialorder %v657, 0.0
      %vm810 = vcmp.ge.f32.partialorder %v660, 0.0
      %vm811 = vcmp.ge.f32.partialorder %v662, 0.0
      %vm812 = vcmp.ge.f32.partialorder %v665, 0.0
      %vm813 = vcmp.ge.f32.partialorder %v667, 0.0
      %vm814 = vcmp.ge.f32.partialorder %v670, 0.0
      %vm815 = vcmp.ge.f32.partialorder %v672, 0.0
      %vm816 = vcmp.ge.f32.partialorder %v675, 0.0
      %vm817 = vcmp.ge.f32.partialorder %v677, 0.0
      %vm818 = vcmp.ge.f32.partialorder %v680, 0.0
      %vm819 = vcmp.ge.f32.partialorder %v682, 0.0
      %vm820 = vcmp.ge.f32.partialorder %v685, 0.0
      %vm821 = vcmp.ge.f32.partialorder %v687, 0.0
      %vm822 = vcmp.ge.f32.partialorder %v690, 0.0
      %vm823 = vcmp.ge.f32.partialorder %v692, 0.0
      %vm824 = vcmp.ge.f32.partialorder %v695, 0.0
      %vm825 = vcmp.ge.f32.partialorder %v697, 0.0
      %vm826 = vcmp.ge.f32.partialorder %v700, 0.0
      %vm827 = vcmp.ge.f32.partialorder %v702, 0.0
      %vm828 = vcmp.ge.f32.partialorder %v705, 0.0
      %vm829 = vcmp.ge.f32.partialorder %v707, 0.0
      %vm830 = vcmp.ge.f32.partialorder %v710, 0.0
      %vm831 = vcmp.ge.f32.partialorder %v712, 0.0
      %vm832 = vcmp.ge.f32.partialorder %v715, 0.0
      %vm833 = vcmp.ge.f32.partialorder %v717, 0.0
      %vm834 = vcmp.ge.f32.partialorder %v720, 0.0
      %vm835 = vcmp.ge.f32.partialorder %v722, 0.0
      %vm836 = vcmp.ge.f32.partialorder %v725, 0.0
      %vm837 = vcmp.ge.f32.partialorder %v727, 0.0
      %vm838 = vcmp.ge.f32.partialorder %v730, 0.0
      %vm839 = vcmp.ge.f32.partialorder %v732, 0.0
      %vm840 = vcmp.ge.f32.partialorder %v735, 0.0
      %vm841 = vcmp.ge.f32.partialorder %v737, 0.0
      %vm842 = vcmp.ge.f32.partialorder %v740, 0.0
      %vm843 = vcmp.ge.f32.partialorder %v742, 0.0
      %vm844 = vcmp.ge.f32.partialorder %v745, 0.0
      %vm845 = vcmp.ge.f32.partialorder %v747, 0.0
      %vm846 = vcmp.ge.f32.partialorder %v750, 0.0
      %vm847 = vcmp.ge.f32.partialorder %v752, 0.0
      %vm848 = vcmp.ge.f32.partialorder %v755, 0.0
      %vm849 = vcmp.ge.f32.partialorder %v757, 0.0
      %vm850 = vcmp.ge.f32.partialorder %v760, 0.0
      %vm851 = vcmp.ge.f32.partialorder %v762, 0.0
      %v852 = vstv %s56
      %v853 = vmul.f32 %v852, %v545
      %v854 = vmul.f32 %v852, %v547
      %v855 = vmul.f32 %v852, %v550
      %v856 = vmul.f32 %v852, %v552
      %v857 = vmul.f32 %v852, %v555
      %v858 = vmul.f32 %v852, %v557
      %v859 = vmul.f32 %v852, %v560
      %v860 = vmul.f32 %v852, %v562
      %v861 = vmul.f32 %v852, %v565
      %v862 = vmul.f32 %v852, %v567
      %v863 = vmul.f32 %v852, %v570
      %v864 = vmul.f32 %v852, %v572
      %v865 = vmul.f32 %v852, %v575
      %v866 = vmul.f32 %v852, %v577
      %v867 = vmul.f32 %v852, %v580
      %v868 = vmul.f32 %v852, %v582
      %v869 = vmul.f32 %v852, %v585
      %v870 = vmul.f32 %v852, %v587
      %v871 = vmul.f32 %v852, %v590
      %v872 = vmul.f32 %v852, %v592
      %v873 = vmul.f32 %v852, %v595
      %v874 = vmul.f32 %v852, %v597
      %v875 = vmul.f32 %v852, %v600
      %v876 = vmul.f32 %v852, %v602
      %v877 = vmul.f32 %v852, %v605
      %v878 = vmul.f32 %v852, %v607
      %v879 = vmul.f32 %v852, %v610
      %v880 = vmul.f32 %v852, %v612
      %v881 = vmul.f32 %v852, %v615
      %v882 = vmul.f32 %v852, %v617
      %v883 = vmul.f32 %v852, %v620
      %v884 = vmul.f32 %v852, %v622
      %v885 = vmul.f32 %v852, %v625
      %v886 = vmul.f32 %v852, %v627
      %v887 = vmul.f32 %v852, %v630
      %v888 = vmul.f32 %v852, %v632
      %v889 = vmul.f32 %v852, %v635
      %v890 = vmul.f32 %v852, %v637
      %v891 = vmul.f32 %v852, %v640
      %v892 = vmul.f32 %v852, %v642
      %v893 = vmul.f32 %v852, %v645
      %v894 = vmul.f32 %v852, %v647
      %v895 = vmul.f32 %v852, %v650
      %v896 = vmul.f32 %v852, %v652
      %v897 = vmul.f32 %v852, %v655
      %v898 = vmul.f32 %v852, %v657
      %v899 = vmul.f32 %v852, %v660
      %v900 = vmul.f32 %v852, %v662
      %v901 = vmul.f32 %v852, %v665
      %v902 = vmul.f32 %v852, %v667
      %v903 = vmul.f32 %v852, %v670
      %v904 = vmul.f32 %v852, %v672
      %v905 = vmul.f32 %v852, %v675
      %v906 = vmul.f32 %v852, %v677
      %v907 = vmul.f32 %v852, %v680
      %v908 = vmul.f32 %v852, %v682
      %v909 = vmul.f32 %v852, %v685
      %v910 = vmul.f32 %v852, %v687
      %v911 = vmul.f32 %v852, %v690
      %v912 = vmul.f32 %v852, %v692
      %v913 = vmul.f32 %v852, %v695
      %v914 = vmul.f32 %v852, %v697
      %v915 = vmul.f32 %v852, %v700
      %v916 = vmul.f32 %v852, %v702
      %v917 = vmul.f32 %v852, %v705
      %v918 = vmul.f32 %v852, %v707
      %v919 = vmul.f32 %v852, %v710
      %v920 = vmul.f32 %v852, %v712
      %v921 = vmul.f32 %v852, %v715
      %v922 = vmul.f32 %v852, %v717
      %v923 = vmul.f32 %v852, %v720
      %v924 = vmul.f32 %v852, %v722
      %v925 = vmul.f32 %v852, %v725
      %v926 = vmul.f32 %v852, %v727
      %v927 = vmul.f32 %v852, %v730
      %v928 = vmul.f32 %v852, %v732
      %v929 = vmul.f32 %v852, %v735
      %v930 = vmul.f32 %v852, %v737
      %v931 = vmul.f32 %v852, %v740
      %v932 = vmul.f32 %v852, %v742
      %v933 = vmul.f32 %v852, %v745
      %v934 = vmul.f32 %v852, %v747
      %v935 = vmul.f32 %v852, %v750
      %v936 = vmul.f32 %v852, %v752
      %v937 = vmul.f32 %v852, %v755
      %v938 = vmul.f32 %v852, %v757
      %v939 = vmul.f32 %v852, %v760
      %v940 = vmul.f32 %v852, %v762
      %v941 = vsel %vm764, %v545, %v853
      %v942 = vsel %vm765, %v547, %v854
      %v943 = vsel %vm766, %v550, %v855
      %v944 = vsel %vm767, %v552, %v856
      %v945 = vsel %vm768, %v555, %v857
      %v946 = vsel %vm769, %v557, %v858
      %v947 = vsel %vm770, %v560, %v859
      %v948 = vsel %vm771, %v562, %v860
      %v949 = vsel %vm772, %v565, %v861
      %v950 = vsel %vm773, %v567, %v862
      %v951 = vsel %vm774, %v570, %v863
      %v952 = vsel %vm775, %v572, %v864
      %v953 = vsel %vm776, %v575, %v865
      %v954 = vsel %vm777, %v577, %v866
      %v955 = vsel %vm778, %v580, %v867
      %v956 = vsel %vm779, %v582, %v868
      %v957 = vsel %vm780, %v585, %v869
      %v958 = vsel %vm781, %v587, %v870
      %v959 = vsel %vm782, %v590, %v871
      %v960 = vsel %vm783, %v592, %v872
      %v961 = vsel %vm784, %v595, %v873
      %v962 = vsel %vm785, %v597, %v874
      %v963 = vsel %vm786, %v600, %v875
      %v964 = vsel %vm787, %v602, %v876
      %v965 = vsel %vm788, %v605, %v877
      %v966 = vsel %vm789, %v607, %v878
      %v967 = vsel %vm790, %v610, %v879
      %v968 = vsel %vm791, %v612, %v880
      %v969 = vsel %vm792, %v615, %v881
      %v970 = vsel %vm793, %v617, %v882
      %v971 = vsel %vm794, %v620, %v883
      %v972 = vsel %vm795, %v622, %v884
      %v973 = vsel %vm796, %v625, %v885
      %v974 = vsel %vm797, %v627, %v886
      %v975 = vsel %vm798, %v630, %v887
      %v976 = vsel %vm799, %v632, %v888
      %v977 = vsel %vm800, %v635, %v889
      %v978 = vsel %vm801, %v637, %v890
      %v979 = vsel %vm802, %v640, %v891
      %v980 = vsel %vm803, %v642, %v892
      %v981 = vsel %vm804, %v645, %v893
      %v982 = vsel %vm805, %v647, %v894
      %v983 = vsel %vm806, %v650, %v895
      %v984 = vsel %vm807, %v652, %v896
      %v985 = vsel %vm808, %v655, %v897
      %v986 = vsel %vm809, %v657, %v898
      %v987 = vsel %vm810, %v660, %v899
      %v988 = vsel %vm811, %v662, %v900
      %v989 = vsel %vm812, %v665, %v901
      %v990 = vsel %vm813, %v667, %v902
      %v991 = vsel %vm814, %v670, %v903
      %v992 = vsel %vm815, %v672, %v904
      %v993 = vsel %vm816, %v675, %v905
      %v994 = vsel %vm817, %v677, %v906
      %v995 = vsel %vm818, %v680, %v907
      %v996 = vsel %vm819, %v682, %v908
      %v997 = vsel %vm820, %v685, %v909
      %v998 = vsel %vm821, %v687, %v910
      %v999 = vsel %vm822, %v690, %v911
      %v1000 = vsel %vm823, %v692, %v912
      %v1001 = vsel %vm824, %v695, %v913
      %v1002 = vsel %vm825, %v697, %v914
      %v1003 = vsel %vm826, %v700, %v915
      %v1004 = vsel %vm827, %v702, %v916
      %v1005 = vsel %vm828, %v705, %v917
      %v1006 = vsel %vm829, %v707, %v918
      %v1007 = vsel %vm830, %v710, %v919
      %v1008 = vsel %vm831, %v712, %v920
      %v1009 = vsel %vm832, %v715, %v921
      %v1010 = vsel %vm833, %v717, %v922
      %v1011 = vsel %vm834, %v720, %v923
      %v1012 = vsel %vm835, %v722, %v924
      %v1013 = vsel %vm836, %v725, %v925
      %v1014 = vsel %vm837, %v727, %v926
      %v1015 = vsel %vm838, %v730, %v927
      %v1016 = vsel %vm839, %v732, %v928
      %v1017 = vsel %vm840, %v735, %v929
      %v1018 = vsel %vm841, %v737, %v930
      %v1019 = vsel %vm842, %v740, %v931
      %v1020 = vsel %vm843, %v742, %v932
      %v1021 = vsel %vm844, %v745, %v933
      %v1022 = vsel %vm845, %v747, %v934
      %v1023 = vsel %vm846, %v750, %v935
      %v1024 = vsel %vm847, %v752, %v936
      %v1025 = vsel %vm848, %v755, %v937
      %v1026 = vsel %vm849, %v757, %v938
      %v1027 = vsel %vm850, %v760, %v939
      %v1028 = vsel %vm851, %v762, %v940
      %s1029 = smul.u32 %s65, 704
      %s1030 = scalar_lea.vmem [#allocation2], %s1029
      %vm1031 = vcmask 228352
      %1032 = vst.msk [vmem:[%s1030] sm:$0xff] %vm1031, %v941
      %1033 = vst.msk [vmem:[%s1030 + $0x8] sm:$0xff] %vm1031, %v942
      %1034 = vst.msk [vmem:[%s1030 + $0x10] sm:$0xff] %vm1031, %v943
      %1035 = vst.msk [vmem:[%s1030 + $0x18] sm:$0xff] %vm1031, %v944
      %1036 = vst.msk [vmem:[%s1030 + $0x20] sm:$0xff] %vm1031, %v945
      %1037 = vst.msk [vmem:[%s1030 + $0x28] sm:$0xff] %vm1031, %v946
      %1038 = vst.msk [vmem:[%s1030 + $0x30] sm:$0xff] %vm1031, %v947
      %1039 = vst.msk [vmem:[%s1030 + $0x38] sm:$0xff] %vm1031, %v948
      %1040 = vst.msk [vmem:[%s1030 + $0x40] sm:$0xff] %vm1031, %v949
      %1041 = vst.msk [vmem:[%s1030 + $0x48] sm:$0xff] %vm1031, %v950
      %1042 = vst.msk [vmem:[%s1030 + $0x50] sm:$0xff] %vm1031, %v951
      %1043 = vst.msk [vmem:[%s1030 + $0x58] sm:$0xff] %vm1031, %v952
      %1044 = vst.msk [vmem:[%s1030 + $0x60] sm:$0xff] %vm1031, %v953
      %1045 = vst.msk [vmem:[%s1030 + $0x68] sm:$0xff] %vm1031, %v954
      %1046 = vst.msk [vmem:[%s1030 + $0x70] sm:$0xff] %vm1031, %v955
      %1047 = vst.msk [vmem:[%s1030 + $0x78] sm:$0xff] %vm1031, %v956
      %1048 = vst.msk [vmem:[%s1030 + $0x80] sm:$0xff] %vm1031, %v957
      %1049 = vst.msk [vmem:[%s1030 + $0x88] sm:$0xff] %vm1031, %v958
      %1050 = vst.msk [vmem:[%s1030 + $0x90] sm:$0xff] %vm1031, %v959
      %1051 = vst.msk [vmem:[%s1030 + $0x98] sm:$0xff] %vm1031, %v960
      %1052 = vst.msk [vmem:[%s1030 + $0xa0] sm:$0xff] %vm1031, %v961
      %1053 = vst.msk [vmem:[%s1030 + $0xa8] sm:$0xff] %vm1031, %v962
      %1054 = vst.msk [vmem:[%s1030 + $0xb0] sm:$0xff] %vm1031, %v963
      %1055 = vst.msk [vmem:[%s1030 + $0xb8] sm:$0xff] %vm1031, %v964
      %1056 = vst.msk [vmem:[%s1030 + $0xc0] sm:$0xff] %vm1031, %v965
      %1057 = vst.msk [vmem:[%s1030 + $0xc8] sm:$0xff] %vm1031, %v966
      %1058 = vst.msk [vmem:[%s1030 + $0xd0] sm:$0xff] %vm1031, %v967
      %1059 = vst.msk [vmem:[%s1030 + $0xd8] sm:$0xff] %vm1031, %v968
      %1060 = vst.msk [vmem:[%s1030 + $0xe0] sm:$0xff] %vm1031, %v969
      %1061 = vst.msk [vmem:[%s1030 + $0xe8] sm:$0xff] %vm1031, %v970
      %1062 = vst.msk [vmem:[%s1030 + $0xf0] sm:$0xff] %vm1031, %v971
      %1063 = vst.msk [vmem:[%s1030 + $0xf8] sm:$0xff] %vm1031, %v972
      %1064 = vst.msk [vmem:[%s1030 + $0x100] sm:$0xff] %vm1031, %v973
      %1065 = vst.msk [vmem:[%s1030 + $0x108] sm:$0xff] %vm1031, %v974
      %1066 = vst.msk [vmem:[%s1030 + $0x110] sm:$0xff] %vm1031, %v975
      %1067 = vst.msk [vmem:[%s1030 + $0x118] sm:$0xff] %vm1031, %v976
      %1068 = vst.msk [vmem:[%s1030 + $0x120] sm:$0xff] %vm1031, %v977
      %1069 = vst.msk [vmem:[%s1030 + $0x128] sm:$0xff] %vm1031, %v978
      %1070 = vst.msk [vmem:[%s1030 + $0x130] sm:$0xff] %vm1031, %v979
      %1071 = vst.msk [vmem:[%s1030 + $0x138] sm:$0xff] %vm1031, %v980
      %1072 = vst.msk [vmem:[%s1030 + $0x140] sm:$0xff] %vm1031, %v981
      %1073 = vst.msk [vmem:[%s1030 + $0x148] sm:$0xff] %vm1031, %v982
      %1074 = vst.msk [vmem:[%s1030 + $0x150] sm:$0xff] %vm1031, %v983
      %1075 = vst.msk [vmem:[%s1030 + $0x158] sm:$0xff] %vm1031, %v984
      %1076 = vst.msk [vmem:[%s1030 + $0x160] sm:$0xff] %vm1031, %v985
      %1077 = vst.msk [vmem:[%s1030 + $0x168] sm:$0xff] %vm1031, %v986
      %1078 = vst.msk [vmem:[%s1030 + $0x170] sm:$0xff] %vm1031, %v987
      %1079 = vst.msk [vmem:[%s1030 + $0x178] sm:$0xff] %vm1031, %v988
      %1080 = vst.msk [vmem:[%s1030 + $0x180] sm:$0xff] %vm1031, %v989
      %1081 = vst.msk [vmem:[%s1030 + $0x188] sm:$0xff] %vm1031, %v990
      %1082 = vst.msk [vmem:[%s1030 + $0x190] sm:$0xff] %vm1031, %v991
      %1083 = vst.msk [vmem:[%s1030 + $0x198] sm:$0xff] %vm1031, %v992
      %1084 = vst.msk [vmem:[%s1030 + $0x1a0] sm:$0xff] %vm1031, %v993
      %1085 = vst.msk [vmem:[%s1030 + $0x1a8] sm:$0xff] %vm1031, %v994
      %1086 = vst.msk [vmem:[%s1030 + $0x1b0] sm:$0xff] %vm1031, %v995
      %1087 = vst.msk [vmem:[%s1030 + $0x1b8] sm:$0xff] %vm1031, %v996
      %1088 = vst.msk [vmem:[%s1030 + $0x1c0] sm:$0xff] %vm1031, %v997
      %1089 = vst.msk [vmem:[%s1030 + $0x1c8] sm:$0xff] %vm1031, %v998
      %1090 = vst.msk [vmem:[%s1030 + $0x1d0] sm:$0xff] %vm1031, %v999
      %1091 = vst.msk [vmem:[%s1030 + $0x1d8] sm:$0xff] %vm1031, %v1000
      %1092 = vst.msk [vmem:[%s1030 + $0x1e0] sm:$0xff] %vm1031, %v1001
      %1093 = vst.msk [vmem:[%s1030 + $0x1e8] sm:$0xff] %vm1031, %v1002
      %1094 = vst.msk [vmem:[%s1030 + $0x1f0] sm:$0xff] %vm1031, %v1003
      %1095 = vst.msk [vmem:[%s1030 + $0x1f8] sm:$0xff] %vm1031, %v1004
      %1096 = vst.msk [vmem:[%s1030 + $0x200] sm:$0xff] %vm1031, %v1005
      %1097 = vst.msk [vmem:[%s1030 + $0x208] sm:$0xff] %vm1031, %v1006
      %1098 = vst.msk [vmem:[%s1030 + $0x210] sm:$0xff] %vm1031, %v1007
      %1099 = vst.msk [vmem:[%s1030 + $0x218] sm:$0xff] %vm1031, %v1008
      %1100 = vst.msk [vmem:[%s1030 + $0x220] sm:$0xff] %vm1031, %v1009
      %1101 = vst.msk [vmem:[%s1030 + $0x228] sm:$0xff] %vm1031, %v1010
      %1102 = vst.msk [vmem:[%s1030 + $0x230] sm:$0xff] %vm1031, %v1011
      %1103 = vst.msk [vmem:[%s1030 + $0x238] sm:$0xff] %vm1031, %v1012
      %1104 = vst.msk [vmem:[%s1030 + $0x240] sm:$0xff] %vm1031, %v1013
      %1105 = vst.msk [vmem:[%s1030 + $0x248] sm:$0xff] %vm1031, %v1014
      %1106 = vst.msk [vmem:[%s1030 + $0x250] sm:$0xff] %vm1031, %v1015
      %1107 = vst.msk [vmem:[%s1030 + $0x258] sm:$0xff] %vm1031, %v1016
      %1108 = vst.msk [vmem:[%s1030 + $0x260] sm:$0xff] %vm1031, %v1017
      %1109 = vst.msk [vmem:[%s1030 + $0x268] sm:$0xff] %vm1031, %v1018
      %1110 = vst.msk [vmem:[%s1030 + $0x270] sm:$0xff] %vm1031, %v1019
      %1111 = vst.msk [vmem:[%s1030 + $0x278] sm:$0xff] %vm1031, %v1020
      %1112 = vst.msk [vmem:[%s1030 + $0x280] sm:$0xff] %vm1031, %v1021
      %1113 = vst.msk [vmem:[%s1030 + $0x288] sm:$0xff] %vm1031, %v1022
      %1114 = vst.msk [vmem:[%s1030 + $0x290] sm:$0xff] %vm1031, %v1023
      %1115 = vst.msk [vmem:[%s1030 + $0x298] sm:$0xff] %vm1031, %v1024
      %1116 = vst.msk [vmem:[%s1030 + $0x2a0] sm:$0xff] %vm1031, %v1025
      %1117 = vst.msk [vmem:[%s1030 + $0x2a8] sm:$0xff] %vm1031, %v1026
      %1118 = vst.msk [vmem:[%s1030 + $0x2b0] sm:$0xff] %vm1031, %v1027
      %1119 = vst.msk [vmem:[%s1030 + $0x2b8] sm:$0xff] %vm1031, %v1028
    $region58: #{tpu_custom_call.1} parent=1 // loop_footer
      %s69 = sadd.s32 1, %s65
    $region59: #{tpu_custom_call.1} parent=1 // loop_footer_branch
      %64 = sbr.rel target = $region55
    $region60: #{tpu_custom_call.1} parent=1 // loop_exit
      _
    loop: start=0, step=1, limit=11
    $region61: #{tpu_custom_call.1} parent=1 // loop_pre_header
      _
    $region62: #{tpu_custom_call.1} parent=1 // loop_header
      %s1121 = sphi 0, %s1125
      %p1122 = scmp.ge.s32.totalorder %s1121, 11
    $region63: #{tpu_custom_call.1} parent=1 // loop_header_branch
      %1124 = sbr.rel (%p1122) target = $region67
    $region64: #{tpu_custom_call.1} parent=1 // loop_body
      %s1126 = smul.u32 %s1121, 2
      %s1127 = smul.u32 %s1126, 704
      %s1128 = scalar_lea.vmem [#allocation2], %s1127
      %v1129 = vld [vmem:[%s1128] sm:$0xff]
      %v1130 = vld [vmem:[%s1128 + $0x8] sm:$0xff]
      %v1131 = vld [vmem:[%s1128 + $0x10] sm:$0xff]
      %v1132 = vld [vmem:[%s1128 + $0x18] sm:$0xff]
      %v1133 = vld [vmem:[%s1128 + $0x20] sm:$0xff]
      %v1134 = vld [vmem:[%s1128 + $0x28] sm:$0xff]
      %v1135 = vld [vmem:[%s1128 + $0x30] sm:$0xff]
      %v1136 = vld [vmem:[%s1128 + $0x38] sm:$0xff]
      %v1137 = vld [vmem:[%s1128 + $0x40] sm:$0xff]
      %v1138 = vld [vmem:[%s1128 + $0x48] sm:$0xff]
      %v1139 = vld [vmem:[%s1128 + $0x50] sm:$0xff]
      %v1140 = vld [vmem:[%s1128 + $0x58] sm:$0xff]
      %v1141 = vld [vmem:[%s1128 + $0x60] sm:$0xff]
      %v1142 = vld [vmem:[%s1128 + $0x68] sm:$0xff]
      %v1143 = vld [vmem:[%s1128 + $0x70] sm:$0xff]
      %v1144 = vld [vmem:[%s1128 + $0x78] sm:$0xff]
      %v1145 = vld [vmem:[%s1128 + $0x80] sm:$0xff]
      %v1146 = vld [vmem:[%s1128 + $0x88] sm:$0xff]
      %v1147 = vld [vmem:[%s1128 + $0x90] sm:$0xff]
      %v1148 = vld [vmem:[%s1128 + $0x98] sm:$0xff]
      %v1149 = vld [vmem:[%s1128 + $0xa0] sm:$0xff]
      %v1150 = vld [vmem:[%s1128 + $0xa8] sm:$0xff]
      %v1151 = vld [vmem:[%s1128 + $0xb0] sm:$0xff]
      %v1152 = vld [vmem:[%s1128 + $0xb8] sm:$0xff]
      %v1153 = vld [vmem:[%s1128 + $0xc0] sm:$0xff]
      %v1154 = vld [vmem:[%s1128 + $0xc8] sm:$0xff]
      %v1155 = vld [vmem:[%s1128 + $0xd0] sm:$0xff]
      %v1156 = vld [vmem:[%s1128 + $0xd8] sm:$0xff]
      %v1157 = vld [vmem:[%s1128 + $0xe0] sm:$0xff]
      %v1158 = vld [vmem:[%s1128 + $0xe8] sm:$0xff]
      %v1159 = vld [vmem:[%s1128 + $0xf0] sm:$0xff]
      %v1160 = vld [vmem:[%s1128 + $0xf8] sm:$0xff]
      %v1161 = vld [vmem:[%s1128 + $0x100] sm:$0xff]
      %v1162 = vld [vmem:[%s1128 + $0x108] sm:$0xff]
      %v1163 = vld [vmem:[%s1128 + $0x110] sm:$0xff]
      %v1164 = vld [vmem:[%s1128 + $0x118] sm:$0xff]
      %v1165 = vld [vmem:[%s1128 + $0x120] sm:$0xff]
      %v1166 = vld [vmem:[%s1128 + $0x128] sm:$0xff]
      %v1167 = vld [vmem:[%s1128 + $0x130] sm:$0xff]
      %v1168 = vld [vmem:[%s1128 + $0x138] sm:$0xff]
      %v1169 = vld [vmem:[%s1128 + $0x140] sm:$0xff]
      %v1170 = vld [vmem:[%s1128 + $0x148] sm:$0xff]
      %v1171 = vld [vmem:[%s1128 + $0x150] sm:$0xff]
      %v1172 = vld [vmem:[%s1128 + $0x158] sm:$0xff]
      %v1173 = vld [vmem:[%s1128 + $0x160] sm:$0xff]
      %v1174 = vld [vmem:[%s1128 + $0x168] sm:$0xff]
      %v1175 = vld [vmem:[%s1128 + $0x170] sm:$0xff]
      %v1176 = vld [vmem:[%s1128 + $0x178] sm:$0xff]
      %v1177 = vld [vmem:[%s1128 + $0x180] sm:$0xff]
      %v1178 = vld [vmem:[%s1128 + $0x188] sm:$0xff]
      %v1179 = vld [vmem:[%s1128 + $0x190] sm:$0xff]
      %v1180 = vld [vmem:[%s1128 + $0x198] sm:$0xff]
      %v1181 = vld [vmem:[%s1128 + $0x1a0] sm:$0xff]
      %v1182 = vld [vmem:[%s1128 + $0x1a8] sm:$0xff]
      %v1183 = vld [vmem:[%s1128 + $0x1b0] sm:$0xff]
      %v1184 = vld [vmem:[%s1128 + $0x1b8] sm:$0xff]
      %v1185 = vld [vmem:[%s1128 + $0x1c0] sm:$0xff]
      %v1186 = vld [vmem:[%s1128 + $0x1c8] sm:$0xff]
      %v1187 = vld [vmem:[%s1128 + $0x1d0] sm:$0xff]
      %v1188 = vld [vmem:[%s1128 + $0x1d8] sm:$0xff]
      %v1189 = vld [vmem:[%s1128 + $0x1e0] sm:$0xff]
      %v1190 = vld [vmem:[%s1128 + $0x1e8] sm:$0xff]
      %v1191 = vld [vmem:[%s1128 + $0x1f0] sm:$0xff]
      %v1192 = vld [vmem:[%s1128 + $0x1f8] sm:$0xff]
      %v1193 = vld [vmem:[%s1128 + $0x200] sm:$0xff]
      %v1194 = vld [vmem:[%s1128 + $0x208] sm:$0xff]
      %v1195 = vld [vmem:[%s1128 + $0x210] sm:$0xff]
      %v1196 = vld [vmem:[%s1128 + $0x218] sm:$0xff]
      %v1197 = vld [vmem:[%s1128 + $0x220] sm:$0xff]
      %v1198 = vld [vmem:[%s1128 + $0x228] sm:$0xff]
      %v1199 = vld [vmem:[%s1128 + $0x230] sm:$0xff]
      %v1200 = vld [vmem:[%s1128 + $0x238] sm:$0xff]
      %v1201 = vld [vmem:[%s1128 + $0x240] sm:$0xff]
      %v1202 = vld [vmem:[%s1128 + $0x248] sm:$0xff]
      %v1203 = vld [vmem:[%s1128 + $0x250] sm:$0xff]
      %v1204 = vld [vmem:[%s1128 + $0x258] sm:$0xff]
      %v1205 = vld [vmem:[%s1128 + $0x260] sm:$0xff]
      %v1206 = vld [vmem:[%s1128 + $0x268] sm:$0xff]
      %v1207 = vld [vmem:[%s1128 + $0x270] sm:$0xff]
      %v1208 = vld [vmem:[%s1128 + $0x278] sm:$0xff]
      %v1209 = vld [vmem:[%s1128 + $0x280] sm:$0xff]
      %v1210 = vld [vmem:[%s1128 + $0x288] sm:$0xff]
      %v1211 = vld [vmem:[%s1128 + $0x290] sm:$0xff]
      %v1212 = vld [vmem:[%s1128 + $0x298] sm:$0xff]
      %v1213 = vld [vmem:[%s1128 + $0x2a0] sm:$0xff]
      %v1214 = vld [vmem:[%s1128 + $0x2a8] sm:$0xff]
      %v1215 = vld [vmem:[%s1128 + $0x2b0] sm:$0xff]
      %v1216 = vld [vmem:[%s1128 + $0x2b8] sm:$0xff]
      %s1217 = sadd.s32 %s1126, 1
      %p1218 = scmp.lt.s32.totalorder %s1217, 21
      %s1219 = scalar_select %p1218, %s1217, 21
      %s1220 = smul.u32 %s1219, 704
      %s1221 = scalar_lea.vmem [#allocation2], %s1220
      %v1222 = vld [vmem:[%s1221] sm:$0xff]
      %v1223 = vld [vmem:[%s1221 + $0x8] sm:$0xff]
      %v1224 = vld [vmem:[%s1221 + $0x10] sm:$0xff]
      %v1225 = vld [vmem:[%s1221 + $0x18] sm:$0xff]
      %v1226 = vld [vmem:[%s1221 + $0x20] sm:$0xff]
      %v1227 = vld [vmem:[%s1221 + $0x28] sm:$0xff]
      %v1228 = vld [vmem:[%s1221 + $0x30] sm:$0xff]
      %v1229 = vld [vmem:[%s1221 + $0x38] sm:$0xff]
      %v1230 = vld [vmem:[%s1221 + $0x40] sm:$0xff]
      %v1231 = vld [vmem:[%s1221 + $0x48] sm:$0xff]
      %v1232 = vld [vmem:[%s1221 + $0x50] sm:$0xff]
      %v1233 = vld [vmem:[%s1221 + $0x58] sm:$0xff]
      %v1234 = vld [vmem:[%s1221 + $0x60] sm:$0xff]
      %v1235 = vld [vmem:[%s1221 + $0x68] sm:$0xff]
      %v1236 = vld [vmem:[%s1221 + $0x70] sm:$0xff]
      %v1237 = vld [vmem:[%s1221 + $0x78] sm:$0xff]
      %v1238 = vld [vmem:[%s1221 + $0x80] sm:$0xff]
      %v1239 = vld [vmem:[%s1221 + $0x88] sm:$0xff]
      %v1240 = vld [vmem:[%s1221 + $0x90] sm:$0xff]
      %v1241 = vld [vmem:[%s1221 + $0x98] sm:$0xff]
      %v1242 = vld [vmem:[%s1221 + $0xa0] sm:$0xff]
      %v1243 = vld [vmem:[%s1221 + $0xa8] sm:$0xff]
      %v1244 = vld [vmem:[%s1221 + $0xb0] sm:$0xff]
      %v1245 = vld [vmem:[%s1221 + $0xb8] sm:$0xff]
      %v1246 = vld [vmem:[%s1221 + $0xc0] sm:$0xff]
      %v1247 = vld [vmem:[%s1221 + $0xc8] sm:$0xff]
      %v1248 = vld [vmem:[%s1221 + $0xd0] sm:$0xff]
      %v1249 = vld [vmem:[%s1221 + $0xd8] sm:$0xff]
      %v1250 = vld [vmem:[%s1221 + $0xe0] sm:$0xff]
      %v1251 = vld [vmem:[%s1221 + $0xe8] sm:$0xff]
      %v1252 = vld [vmem:[%s1221 + $0xf0] sm:$0xff]
      %v1253 = vld [vmem:[%s1221 + $0xf8] sm:$0xff]
      %v1254 = vld [vmem:[%s1221 + $0x100] sm:$0xff]
      %v1255 = vld [vmem:[%s1221 + $0x108] sm:$0xff]
      %v1256 = vld [vmem:[%s1221 + $0x110] sm:$0xff]
      %v1257 = vld [vmem:[%s1221 + $0x118] sm:$0xff]
      %v1258 = vld [vmem:[%s1221 + $0x120] sm:$0xff]
      %v1259 = vld [vmem:[%s1221 + $0x128] sm:$0xff]
      %v1260 = vld [vmem:[%s1221 + $0x130] sm:$0xff]
      %v1261 = vld [vmem:[%s1221 + $0x138] sm:$0xff]
      %v1262 = vld [vmem:[%s1221 + $0x140] sm:$0xff]
      %v1263 = vld [vmem:[%s1221 + $0x148] sm:$0xff]
      %v1264 = vld [vmem:[%s1221 + $0x150] sm:$0xff]
      %v1265 = vld [vmem:[%s1221 + $0x158] sm:$0xff]
      %v1266 = vld [vmem:[%s1221 + $0x160] sm:$0xff]
      %v1267 = vld [vmem:[%s1221 + $0x168] sm:$0xff]
      %v1268 = vld [vmem:[%s1221 + $0x170] sm:$0xff]
      %v1269 = vld [vmem:[%s1221 + $0x178] sm:$0xff]
      %v1270 = vld [vmem:[%s1221 + $0x180] sm:$0xff]
      %v1271 = vld [vmem:[%s1221 + $0x188] sm:$0xff]
      %v1272 = vld [vmem:[%s1221 + $0x190] sm:$0xff]
      %v1273 = vld [vmem:[%s1221 + $0x198] sm:$0xff]
      %v1274 = vld [vmem:[%s1221 + $0x1a0] sm:$0xff]
      %v1275 = vld [vmem:[%s1221 + $0x1a8] sm:$0xff]
      %v1276 = vld [vmem:[%s1221 + $0x1b0] sm:$0xff]
      %v1277 = vld [vmem:[%s1221 + $0x1b8] sm:$0xff]
      %v1278 = vld [vmem:[%s1221 + $0x1c0] sm:$0xff]
      %v1279 = vld [vmem:[%s1221 + $0x1c8] sm:$0xff]
      %v1280 = vld [vmem:[%s1221 + $0x1d0] sm:$0xff]
      %v1281 = vld [vmem:[%s1221 + $0x1d8] sm:$0xff]
      %v1282 = vld [vmem:[%s1221 + $0x1e0] sm:$0xff]
      %v1283 = vld [vmem:[%s1221 + $0x1e8] sm:$0xff]
      %v1284 = vld [vmem:[%s1221 + $0x1f0] sm:$0xff]
      %v1285 = vld [vmem:[%s1221 + $0x1f8] sm:$0xff]
      %v1286 = vld [vmem:[%s1221 + $0x200] sm:$0xff]
      %v1287 = vld [vmem:[%s1221 + $0x208] sm:$0xff]
      %v1288 = vld [vmem:[%s1221 + $0x210] sm:$0xff]
      %v1289 = vld [vmem:[%s1221 + $0x218] sm:$0xff]
      %v1290 = vld [vmem:[%s1221 + $0x220] sm:$0xff]
      %v1291 = vld [vmem:[%s1221 + $0x228] sm:$0xff]
      %v1292 = vld [vmem:[%s1221 + $0x230] sm:$0xff]
      %v1293 = vld [vmem:[%s1221 + $0x238] sm:$0xff]
      %v1294 = vld [vmem:[%s1221 + $0x240] sm:$0xff]
      %v1295 = vld [vmem:[%s1221 + $0x248] sm:$0xff]
      %v1296 = vld [vmem:[%s1221 + $0x250] sm:$0xff]
      %v1297 = vld [vmem:[%s1221 + $0x258] sm:$0xff]
      %v1298 = vld [vmem:[%s1221 + $0x260] sm:$0xff]
      %v1299 = vld [vmem:[%s1221 + $0x268] sm:$0xff]
      %v1300 = vld [vmem:[%s1221 + $0x270] sm:$0xff]
      %v1301 = vld [vmem:[%s1221 + $0x278] sm:$0xff]
      %v1302 = vld [vmem:[%s1221 + $0x280] sm:$0xff]
      %v1303 = vld [vmem:[%s1221 + $0x288] sm:$0xff]
      %v1304 = vld [vmem:[%s1221 + $0x290] sm:$0xff]
      %v1305 = vld [vmem:[%s1221 + $0x298] sm:$0xff]
      %v1306 = vld [vmem:[%s1221 + $0x2a0] sm:$0xff]
      %v1307 = vld [vmem:[%s1221 + $0x2a8] sm:$0xff]
      %v1308 = vld [vmem:[%s1221 + $0x2b0] sm:$0xff]
      %v1309 = vld [vmem:[%s1221 + $0x2b8] sm:$0xff]
      %s1310 = sadd.s32 %s1126, 2
      %p1311 = scmp.lt.s32.totalorder %s1310, 21
      %s1312 = scalar_select %p1311, %s1310, 21
      %s1313 = smul.u32 %s1312, 704
      %s1314 = scalar_lea.vmem [#allocation2], %s1313
      %v1315 = vld [vmem:[%s1314] sm:$0xff]
      %v1316 = vld [vmem:[%s1314 + $0x8] sm:$0xff]
      %v1317 = vld [vmem:[%s1314 + $0x10] sm:$0xff]
      %v1318 = vld [vmem:[%s1314 + $0x18] sm:$0xff]
      %v1319 = vld [vmem:[%s1314 + $0x20] sm:$0xff]
      %v1320 = vld [vmem:[%s1314 + $0x28] sm:$0xff]
      %v1321 = vld [vmem:[%s1314 + $0x30] sm:$0xff]
      %v1322 = vld [vmem:[%s1314 + $0x38] sm:$0xff]
      %v1323 = vld [vmem:[%s1314 + $0x40] sm:$0xff]
      %v1324 = vld [vmem:[%s1314 + $0x48] sm:$0xff]
      %v1325 = vld [vmem:[%s1314 + $0x50] sm:$0xff]
      %v1326 = vld [vmem:[%s1314 + $0x58] sm:$0xff]
      %v1327 = vld [vmem:[%s1314 + $0x60] sm:$0xff]
      %v1328 = vld [vmem:[%s1314 + $0x68] sm:$0xff]
      %v1329 = vld [vmem:[%s1314 + $0x70] sm:$0xff]
      %v1330 = vld [vmem:[%s1314 + $0x78] sm:$0xff]
      %v1331 = vld [vmem:[%s1314 + $0x80] sm:$0xff]
      %v1332 = vld [vmem:[%s1314 + $0x88] sm:$0xff]
      %v1333 = vld [vmem:[%s1314 + $0x90] sm:$0xff]
      %v1334 = vld [vmem:[%s1314 + $0x98] sm:$0xff]
      %v1335 = vld [vmem:[%s1314 + $0xa0] sm:$0xff]
      %v1336 = vld [vmem:[%s1314 + $0xa8] sm:$0xff]
      %v1337 = vld [vmem:[%s1314 + $0xb0] sm:$0xff]
      %v1338 = vld [vmem:[%s1314 + $0xb8] sm:$0xff]
      %v1339 = vld [vmem:[%s1314 + $0xc0] sm:$0xff]
      %v1340 = vld [vmem:[%s1314 + $0xc8] sm:$0xff]
      %v1341 = vld [vmem:[%s1314 + $0xd0] sm:$0xff]
      %v1342 = vld [vmem:[%s1314 + $0xd8] sm:$0xff]
      %v1343 = vld [vmem:[%s1314 + $0xe0] sm:$0xff]
      %v1344 = vld [vmem:[%s1314 + $0xe8] sm:$0xff]
      %v1345 = vld [vmem:[%s1314 + $0xf0] sm:$0xff]
      %v1346 = vld [vmem:[%s1314 + $0xf8] sm:$0xff]
      %v1347 = vld [vmem:[%s1314 + $0x100] sm:$0xff]
      %v1348 = vld [vmem:[%s1314 + $0x108] sm:$0xff]
      %v1349 = vld [vmem:[%s1314 + $0x110] sm:$0xff]
      %v1350 = vld [vmem:[%s1314 + $0x118] sm:$0xff]
      %v1351 = vld [vmem:[%s1314 + $0x120] sm:$0xff]
      %v1352 = vld [vmem:[%s1314 + $0x128] sm:$0xff]
      %v1353 = vld [vmem:[%s1314 + $0x130] sm:$0xff]
      %v1354 = vld [vmem:[%s1314 + $0x138] sm:$0xff]
      %v1355 = vld [vmem:[%s1314 + $0x140] sm:$0xff]
      %v1356 = vld [vmem:[%s1314 + $0x148] sm:$0xff]
      %v1357 = vld [vmem:[%s1314 + $0x150] sm:$0xff]
      %v1358 = vld [vmem:[%s1314 + $0x158] sm:$0xff]
      %v1359 = vld [vmem:[%s1314 + $0x160] sm:$0xff]
      %v1360 = vld [vmem:[%s1314 + $0x168] sm:$0xff]
      %v1361 = vld [vmem:[%s1314 + $0x170] sm:$0xff]
      %v1362 = vld [vmem:[%s1314 + $0x178] sm:$0xff]
      %v1363 = vld [vmem:[%s1314 + $0x180] sm:$0xff]
      %v1364 = vld [vmem:[%s1314 + $0x188] sm:$0xff]
      %v1365 = vld [vmem:[%s1314 + $0x190] sm:$0xff]
      %v1366 = vld [vmem:[%s1314 + $0x198] sm:$0xff]
      %v1367 = vld [vmem:[%s1314 + $0x1a0] sm:$0xff]
      %v1368 = vld [vmem:[%s1314 + $0x1a8] sm:$0xff]
      %v1369 = vld [vmem:[%s1314 + $0x1b0] sm:$0xff]
      %v1370 = vld [vmem:[%s1314 + $0x1b8] sm:$0xff]
      %v1371 = vld [vmem:[%s1314 + $0x1c0] sm:$0xff]
      %v1372 = vld [vmem:[%s1314 + $0x1c8] sm:$0xff]
      %v1373 = vld [vmem:[%s1314 + $0x1d0] sm:$0xff]
      %v1374 = vld [vmem:[%s1314 + $0x1d8] sm:$0xff]
      %v1375 = vld [vmem:[%s1314 + $0x1e0] sm:$0xff]
      %v1376 = vld [vmem:[%s1314 + $0x1e8] sm:$0xff]
      %v1377 = vld [vmem:[%s1314 + $0x1f0] sm:$0xff]
      %v1378 = vld [vmem:[%s1314 + $0x1f8] sm:$0xff]
      %v1379 = vld [vmem:[%s1314 + $0x200] sm:$0xff]
      %v1380 = vld [vmem:[%s1314 + $0x208] sm:$0xff]
      %v1381 = vld [vmem:[%s1314 + $0x210] sm:$0xff]
      %v1382 = vld [vmem:[%s1314 + $0x218] sm:$0xff]
      %v1383 = vld [vmem:[%s1314 + $0x220] sm:$0xff]
      %v1384 = vld [vmem:[%s1314 + $0x228] sm:$0xff]
      %v1385 = vld [vmem:[%s1314 + $0x230] sm:$0xff]
      %v1386 = vld [vmem:[%s1314 + $0x238] sm:$0xff]
      %v1387 = vld [vmem:[%s1314 + $0x240] sm:$0xff]
      %v1388 = vld [vmem:[%s1314 + $0x248] sm:$0xff]
      %v1389 = vld [vmem:[%s1314 + $0x250] sm:$0xff]
      %v1390 = vld [vmem:[%s1314 + $0x258] sm:$0xff]
      %v1391 = vld [vmem:[%s1314 + $0x260] sm:$0xff]
      %v1392 = vld [vmem:[%s1314 + $0x268] sm:$0xff]
      %v1393 = vld [vmem:[%s1314 + $0x270] sm:$0xff]
      %v1394 = vld [vmem:[%s1314 + $0x278] sm:$0xff]
      %v1395 = vld [vmem:[%s1314 + $0x280] sm:$0xff]
      %v1396 = vld [vmem:[%s1314 + $0x288] sm:$0xff]
      %v1397 = vld [vmem:[%s1314 + $0x290] sm:$0xff]
      %v1398 = vld [vmem:[%s1314 + $0x298] sm:$0xff]
      %v1399 = vld [vmem:[%s1314 + $0x2a0] sm:$0xff]
      %v1400 = vld [vmem:[%s1314 + $0x2a8] sm:$0xff]
      %v1401 = vld [vmem:[%s1314 + $0x2b0] sm:$0xff]
      %v1402 = vld [vmem:[%s1314 + $0x2b8] sm:$0xff]
      %v1403 = vmax.f32 %v1129, %v1222
      %v1404 = vmax.f32 %v1130, %v1223
      %v1405 = vmax.f32 %v1131, %v1224
      %v1406 = vmax.f32 %v1132, %v1225
      %v1407 = vmax.f32 %v1133, %v1226
      %v1408 = vmax.f32 %v1134, %v1227
      %v1409 = vmax.f32 %v1135, %v1228
      %v1410 = vmax.f32 %v1136, %v1229
      %v1411 = vmax.f32 %v1137, %v1230
      %v1412 = vmax.f32 %v1138, %v1231
      %v1413 = vmax.f32 %v1139, %v1232
      %v1414 = vmax.f32 %v1140, %v1233
      %v1415 = vmax.f32 %v1141, %v1234
      %v1416 = vmax.f32 %v1142, %v1235
      %v1417 = vmax.f32 %v1143, %v1236
      %v1418 = vmax.f32 %v1144, %v1237
      %v1419 = vmax.f32 %v1145, %v1238
      %v1420 = vmax.f32 %v1146, %v1239
      %v1421 = vmax.f32 %v1147, %v1240
      %v1422 = vmax.f32 %v1148, %v1241
      %v1423 = vmax.f32 %v1149, %v1242
      %v1424 = vmax.f32 %v1150, %v1243
      %v1425 = vmax.f32 %v1151, %v1244
      %v1426 = vmax.f32 %v1152, %v1245
      %v1427 = vmax.f32 %v1153, %v1246
      %v1428 = vmax.f32 %v1154, %v1247
      %v1429 = vmax.f32 %v1155, %v1248
      %v1430 = vmax.f32 %v1156, %v1249
      %v1431 = vmax.f32 %v1157, %v1250
      %v1432 = vmax.f32 %v1158, %v1251
      %v1433 = vmax.f32 %v1159, %v1252
      %v1434 = vmax.f32 %v1160, %v1253
      %v1435 = vmax.f32 %v1161, %v1254
      %v1436 = vmax.f32 %v1162, %v1255
      %v1437 = vmax.f32 %v1163, %v1256
      %v1438 = vmax.f32 %v1164, %v1257
      %v1439 = vmax.f32 %v1165, %v1258
      %v1440 = vmax.f32 %v1166, %v1259
      %v1441 = vmax.f32 %v1167, %v1260
      %v1442 = vmax.f32 %v1168, %v1261
      %v1443 = vmax.f32 %v1169, %v1262
      %v1444 = vmax.f32 %v1170, %v1263
      %v1445 = vmax.f32 %v1171, %v1264
      %v1446 = vmax.f32 %v1172, %v1265
      %v1447 = vmax.f32 %v1173, %v1266
      %v1448 = vmax.f32 %v1174, %v1267
      %v1449 = vmax.f32 %v1175, %v1268
      %v1450 = vmax.f32 %v1176, %v1269
      %v1451 = vmax.f32 %v1177, %v1270
      %v1452 = vmax.f32 %v1178, %v1271
      %v1453 = vmax.f32 %v1179, %v1272
      %v1454 = vmax.f32 %v1180, %v1273
      %v1455 = vmax.f32 %v1181, %v1274
      %v1456 = vmax.f32 %v1182, %v1275
      %v1457 = vmax.f32 %v1183, %v1276
      %v1458 = vmax.f32 %v1184, %v1277
      %v1459 = vmax.f32 %v1185, %v1278
      %v1460 = vmax.f32 %v1186, %v1279
      %v1461 = vmax.f32 %v1187, %v1280
      %v1462 = vmax.f32 %v1188, %v1281
      %v1463 = vmax.f32 %v1189, %v1282
      %v1464 = vmax.f32 %v1190, %v1283
      %v1465 = vmax.f32 %v1191, %v1284
      %v1466 = vmax.f32 %v1192, %v1285
      %v1467 = vmax.f32 %v1193, %v1286
      %v1468 = vmax.f32 %v1194, %v1287
      %v1469 = vmax.f32 %v1195, %v1288
      %v1470 = vmax.f32 %v1196, %v1289
      %v1471 = vmax.f32 %v1197, %v1290
      %v1472 = vmax.f32 %v1198, %v1291
      %v1473 = vmax.f32 %v1199, %v1292
      %v1474 = vmax.f32 %v1200, %v1293
      %v1475 = vmax.f32 %v1201, %v1294
      %v1476 = vmax.f32 %v1202, %v1295
      %v1477 = vmax.f32 %v1203, %v1296
      %v1478 = vmax.f32 %v1204, %v1297
      %v1479 = vmax.f32 %v1205, %v1298
      %v1480 = vmax.f32 %v1206, %v1299
      %v1481 = vmax.f32 %v1207, %v1300
      %v1482 = vmax.f32 %v1208, %v1301
      %v1483 = vmax.f32 %v1209, %v1302
      %v1484 = vmax.f32 %v1210, %v1303
      %v1485 = vmax.f32 %v1211, %v1304
      %v1486 = vmax.f32 %v1212, %v1305
      %v1487 = vmax.f32 %v1213, %v1306
      %v1488 = vmax.f32 %v1214, %v1307
      %v1489 = vmax.f32 %v1215, %v1308
      %v1490 = vmax.f32 %v1216, %v1309
      %v1491 = vmax.f32 %v1403, %v1315
      %v1492 = vmax.f32 %v1404, %v1316
      %v1493 = vmax.f32 %v1405, %v1317
      %v1494 = vmax.f32 %v1406, %v1318
      %v1495 = vmax.f32 %v1407, %v1319
      %v1496 = vmax.f32 %v1408, %v1320
      %v1497 = vmax.f32 %v1409, %v1321
      %v1498 = vmax.f32 %v1410, %v1322
      %v1499 = vmax.f32 %v1411, %v1323
      %v1500 = vmax.f32 %v1412, %v1324
      %v1501 = vmax.f32 %v1413, %v1325
      %v1502 = vmax.f32 %v1414, %v1326
      %v1503 = vmax.f32 %v1415, %v1327
      %v1504 = vmax.f32 %v1416, %v1328
      %v1505 = vmax.f32 %v1417, %v1329
      %v1506 = vmax.f32 %v1418, %v1330
      %v1507 = vmax.f32 %v1419, %v1331
      %v1508 = vmax.f32 %v1420, %v1332
      %v1509 = vmax.f32 %v1421, %v1333
      %v1510 = vmax.f32 %v1422, %v1334
      %v1511 = vmax.f32 %v1423, %v1335
      %v1512 = vmax.f32 %v1424, %v1336
      %v1513 = vmax.f32 %v1425, %v1337
      %v1514 = vmax.f32 %v1426, %v1338
      %v1515 = vmax.f32 %v1427, %v1339
      %v1516 = vmax.f32 %v1428, %v1340
      %v1517 = vmax.f32 %v1429, %v1341
      %v1518 = vmax.f32 %v1430, %v1342
      %v1519 = vmax.f32 %v1431, %v1343
      %v1520 = vmax.f32 %v1432, %v1344
      %v1521 = vmax.f32 %v1433, %v1345
      %v1522 = vmax.f32 %v1434, %v1346
      %v1523 = vmax.f32 %v1435, %v1347
      %v1524 = vmax.f32 %v1436, %v1348
      %v1525 = vmax.f32 %v1437, %v1349
      %v1526 = vmax.f32 %v1438, %v1350
      %v1527 = vmax.f32 %v1439, %v1351
      %v1528 = vmax.f32 %v1440, %v1352
      %v1529 = vmax.f32 %v1441, %v1353
      %v1530 = vmax.f32 %v1442, %v1354
      %v1531 = vmax.f32 %v1443, %v1355
      %v1532 = vmax.f32 %v1444, %v1356
      %v1533 = vmax.f32 %v1445, %v1357
      %v1534 = vmax.f32 %v1446, %v1358
      %v1535 = vmax.f32 %v1447, %v1359
      %v1536 = vmax.f32 %v1448, %v1360
      %v1537 = vmax.f32 %v1449, %v1361
      %v1538 = vmax.f32 %v1450, %v1362
      %v1539 = vmax.f32 %v1451, %v1363
      %v1540 = vmax.f32 %v1452, %v1364
      %v1541 = vmax.f32 %v1453, %v1365
      %v1542 = vmax.f32 %v1454, %v1366
      %v1543 = vmax.f32 %v1455, %v1367
      %v1544 = vmax.f32 %v1456, %v1368
      %v1545 = vmax.f32 %v1457, %v1369
      %v1546 = vmax.f32 %v1458, %v1370
      %v1547 = vmax.f32 %v1459, %v1371
      %v1548 = vmax.f32 %v1460, %v1372
      %v1549 = vmax.f32 %v1461, %v1373
      %v1550 = vmax.f32 %v1462, %v1374
      %v1551 = vmax.f32 %v1463, %v1375
      %v1552 = vmax.f32 %v1464, %v1376
      %v1553 = vmax.f32 %v1465, %v1377
      %v1554 = vmax.f32 %v1466, %v1378
      %v1555 = vmax.f32 %v1467, %v1379
      %v1556 = vmax.f32 %v1468, %v1380
      %v1557 = vmax.f32 %v1469, %v1381
      %v1558 = vmax.f32 %v1470, %v1382
      %v1559 = vmax.f32 %v1471, %v1383
      %v1560 = vmax.f32 %v1472, %v1384
      %v1561 = vmax.f32 %v1473, %v1385
      %v1562 = vmax.f32 %v1474, %v1386
      %v1563 = vmax.f32 %v1475, %v1387
      %v1564 = vmax.f32 %v1476, %v1388
      %v1565 = vmax.f32 %v1477, %v1389
      %v1566 = vmax.f32 %v1478, %v1390
      %v1567 = vmax.f32 %v1479, %v1391
      %v1568 = vmax.f32 %v1480, %v1392
      %v1569 = vmax.f32 %v1481, %v1393
      %v1570 = vmax.f32 %v1482, %v1394
      %v1571 = vmax.f32 %v1483, %v1395
      %v1572 = vmax.f32 %v1484, %v1396
      %v1573 = vmax.f32 %v1485, %v1397
      %v1574 = vmax.f32 %v1486, %v1398
      %v1575 = vmax.f32 %v1487, %v1399
      %v1576 = vmax.f32 %v1488, %v1400
      %v1577 = vmax.f32 %v1489, %v1401
      %v1578 = vmax.f32 %v1490, %v1402
      %v1579 = vmax.f32 %v1491, %v1495
      %v1580 = vmax.f32 %v1492, %v1496
      %v1581 = vmax.f32 %v1493, %v1497
      %v1582 = vmax.f32 %v1494, %v1498
      %v1583 = vmax.f32 %v1499, %v1503
      %v1584 = vmax.f32 %v1500, %v1504
      %v1585 = vmax.f32 %v1501, %v1505
      %v1586 = vmax.f32 %v1502, %v1506
      %v1587 = vmax.f32 %v1507, %v1511
      %v1588 = vmax.f32 %v1508, %v1512
      %v1589 = vmax.f32 %v1509, %v1513
      %v1590 = vmax.f32 %v1510, %v1514
      %v1591 = vmax.f32 %v1515, %v1519
      %v1592 = vmax.f32 %v1516, %v1520
      %v1593 = vmax.f32 %v1517, %v1521
      %v1594 = vmax.f32 %v1518, %v1522
      %v1595 = vmax.f32 %v1523, %v1527
      %v1596 = vmax.f32 %v1524, %v1528
      %v1597 = vmax.f32 %v1525, %v1529
      %v1598 = vmax.f32 %v1526, %v1530
      %v1599 = vmax.f32 %v1531, %v1535
      %v1600 = vmax.f32 %v1532, %v1536
      %v1601 = vmax.f32 %v1533, %v1537
      %v1602 = vmax.f32 %v1534, %v1538
      %v1603 = vmax.f32 %v1539, %v1543
      %v1604 = vmax.f32 %v1540, %v1544
      %v1605 = vmax.f32 %v1541, %v1545
      %v1606 = vmax.f32 %v1542, %v1546
      %v1607 = vmax.f32 %v1547, %v1551
      %v1608 = vmax.f32 %v1548, %v1552
      %v1609 = vmax.f32 %v1549, %v1553
      %v1610 = vmax.f32 %v1550, %v1554
      %v1611 = vmax.f32 %v1555, %v1559
      %v1612 = vmax.f32 %v1556, %v1560
      %v1613 = vmax.f32 %v1557, %v1561
      %v1614 = vmax.f32 %v1558, %v1562
      %v1615 = vmax.f32 %v1563, %v1567
      %v1616 = vmax.f32 %v1564, %v1568
      %v1617 = vmax.f32 %v1565, %v1569
      %v1618 = vmax.f32 %v1566, %v1570
      %v1619 = vmax.f32 %v1571, %v1575
      %v1620 = vmax.f32 %v1572, %v1576
      %v1621 = vmax.f32 %v1573, %v1577
      %v1622 = vmax.f32 %v1574, %v1578
      %v1623 = vmax.f32 %v1579, %v1499
      %v1624 = vmax.f32 %v1580, %v1500
      %v1625 = vmax.f32 %v1581, %v1501
      %v1626 = vmax.f32 %v1582, %v1502
      %v1627 = vmax.f32 %v1583, %v1507
      %v1628 = vmax.f32 %v1584, %v1508
      %v1629 = vmax.f32 %v1585, %v1509
      %v1630 = vmax.f32 %v1586, %v1510
      %v1631 = vmax.f32 %v1587, %v1515
      %v1632 = vmax.f32 %v1588, %v1516
      %v1633 = vmax.f32 %v1589, %v1517
      %v1634 = vmax.f32 %v1590, %v1518
      %v1635 = vmax.f32 %v1591, %v1523
      %v1636 = vmax.f32 %v1592, %v1524
      %v1637 = vmax.f32 %v1593, %v1525
      %v1638 = vmax.f32 %v1594, %v1526
      %v1639 = vmax.f32 %v1595, %v1531
      %v1640 = vmax.f32 %v1596, %v1532
      %v1641 = vmax.f32 %v1597, %v1533
      %v1642 = vmax.f32 %v1598, %v1534
      %v1643 = vmax.f32 %v1599, %v1539
      %v1644 = vmax.f32 %v1600, %v1540
      %v1645 = vmax.f32 %v1601, %v1541
      %v1646 = vmax.f32 %v1602, %v1542
      %v1647 = vmax.f32 %v1603, %v1547
      %v1648 = vmax.f32 %v1604, %v1548
      %v1649 = vmax.f32 %v1605, %v1549
      %v1650 = vmax.f32 %v1606, %v1550
      %v1651 = vmax.f32 %v1607, %v1555
      %v1652 = vmax.f32 %v1608, %v1556
      %v1653 = vmax.f32 %v1609, %v1557
      %v1654 = vmax.f32 %v1610, %v1558
      %v1655 = vmax.f32 %v1611, %v1563
      %v1656 = vmax.f32 %v1612, %v1564
      %v1657 = vmax.f32 %v1613, %v1565
      %v1658 = vmax.f32 %v1614, %v1566
      %v1659 = vmax.f32 %v1615, %v1571
      %v1660 = vmax.f32 %v1616, %v1572
      %v1661 = vmax.f32 %v1617, %v1573
      %v1662 = vmax.f32 %v1618, %v1574
      %v1663 = vmax.f32 %v1619, %v1575
      %v1664 = vmax.f32 %v1620, %v1576
      %v1665 = vmax.f32 %v1621, %v1577
      %v1666 = vmax.f32 %v1622, %v1578
      %v1667 = vpack.c.bf16 %v1623, %v1623
      %v1668 = vpack.c.bf16 %v1624, %v1624
      %v1669 = vpack.c.bf16 %v1625, %v1625
      %v1670 = vpack.c.bf16 %v1626, %v1626
      %v1671 = vpack.c.bf16 %v1627, %v1627
      %v1672 = vpack.c.bf16 %v1628, %v1628
      %v1673 = vpack.c.bf16 %v1629, %v1629
      %v1674 = vpack.c.bf16 %v1630, %v1630
      %v1675 = vpack.c.bf16 %v1631, %v1631
      %v1676 = vpack.c.bf16 %v1632, %v1632
      %v1677 = vpack.c.bf16 %v1633, %v1633
      %v1678 = vpack.c.bf16 %v1634, %v1634
      %v1679 = vpack.c.bf16 %v1635, %v1635
      %v1680 = vpack.c.bf16 %v1636, %v1636
      %v1681 = vpack.c.bf16 %v1637, %v1637
      %v1682 = vpack.c.bf16 %v1638, %v1638
      %v1683 = vpack.c.bf16 %v1639, %v1639
      %v1684 = vpack.c.bf16 %v1640, %v1640
      %v1685 = vpack.c.bf16 %v1641, %v1641
      %v1686 = vpack.c.bf16 %v1642, %v1642
      %v1687 = vpack.c.bf16 %v1643, %v1643
      %v1688 = vpack.c.bf16 %v1644, %v1644
      %v1689 = vpack.c.bf16 %v1645, %v1645
      %v1690 = vpack.c.bf16 %v1646, %v1646
      %v1691 = vpack.c.bf16 %v1647, %v1647
      %v1692 = vpack.c.bf16 %v1648, %v1648
      %v1693 = vpack.c.bf16 %v1649, %v1649
      %v1694 = vpack.c.bf16 %v1650, %v1650
      %v1695 = vpack.c.bf16 %v1651, %v1651
      %v1696 = vpack.c.bf16 %v1652, %v1652
      %v1697 = vpack.c.bf16 %v1653, %v1653
      %v1698 = vpack.c.bf16 %v1654, %v1654
      %v1699 = vpack.c.bf16 %v1655, %v1655
      %v1700 = vpack.c.bf16 %v1656, %v1656
      %v1701 = vpack.c.bf16 %v1657, %v1657
      %v1702 = vpack.c.bf16 %v1658, %v1658
      %v1703 = vpack.c.bf16 %v1659, %v1659
      %v1704 = vpack.c.bf16 %v1660, %v1660
      %v1705 = vpack.c.bf16 %v1661, %v1661
      %v1706 = vpack.c.bf16 %v1662, %v1662
      %v1707 = vpack.c.bf16 %v1663, %v1663
      %v1708 = vpack.c.bf16 %v1664, %v1664
      %v1709 = vpack.c.bf16 %v1665, %v1665
      %v1710 = vpack.c.bf16 %v1666, %v1666
      %s1711 = smul.u32 %s1121, 44
      %s1712 = smul.addr %s1711, 4
      %s1713 = scalar_lea.vmem [#allocation3], %s1712
      %vm1714 = vcmask 224256
      %1715 = vst.msk [vmem:[%s1713] sm:$0xf] %vm1714, %v1667
      %1716 = vst.msk [vmem:[%s1713 + $0x4] sm:$0xf] %vm1714, %v1668
      %1717 = vst.msk [vmem:[%s1713 + $0x8] sm:$0xf] %vm1714, %v1669
      %1718 = vst.msk [vmem:[%s1713 + $0xc] sm:$0xf] %vm1714, %v1670
      %1719 = vst.msk [vmem:[%s1713 + $0x10] sm:$0xf] %vm1714, %v1671
      %1720 = vst.msk [vmem:[%s1713 + $0x14] sm:$0xf] %vm1714, %v1672
      %1721 = vst.msk [vmem:[%s1713 + $0x18] sm:$0xf] %vm1714, %v1673
      %1722 = vst.msk [vmem:[%s1713 + $0x1c] sm:$0xf] %vm1714, %v1674
      %1723 = vst.msk [vmem:[%s1713 + $0x20] sm:$0xf] %vm1714, %v1675
      %1724 = vst.msk [vmem:[%s1713 + $0x24] sm:$0xf] %vm1714, %v1676
      %1725 = vst.msk [vmem:[%s1713 + $0x28] sm:$0xf] %vm1714, %v1677
      %1726 = vst.msk [vmem:[%s1713 + $0x2c] sm:$0xf] %vm1714, %v1678
      %1727 = vst.msk [vmem:[%s1713 + $0x30] sm:$0xf] %vm1714, %v1679
      %1728 = vst.msk [vmem:[%s1713 + $0x34] sm:$0xf] %vm1714, %v1680
      %1729 = vst.msk [vmem:[%s1713 + $0x38] sm:$0xf] %vm1714, %v1681
      %1730 = vst.msk [vmem:[%s1713 + $0x3c] sm:$0xf] %vm1714, %v1682
      %1731 = vst.msk [vmem:[%s1713 + $0x40] sm:$0xf] %vm1714, %v1683
      %1732 = vst.msk [vmem:[%s1713 + $0x44] sm:$0xf] %vm1714, %v1684
      %1733 = vst.msk [vmem:[%s1713 + $0x48] sm:$0xf] %vm1714, %v1685
      %1734 = vst.msk [vmem:[%s1713 + $0x4c] sm:$0xf] %vm1714, %v1686
      %1735 = vst.msk [vmem:[%s1713 + $0x50] sm:$0xf] %vm1714, %v1687
      %1736 = vst.msk [vmem:[%s1713 + $0x54] sm:$0xf] %vm1714, %v1688
      %1737 = vst.msk [vmem:[%s1713 + $0x58] sm:$0xf] %vm1714, %v1689
      %1738 = vst.msk [vmem:[%s1713 + $0x5c] sm:$0xf] %vm1714, %v1690
      %1739 = vst.msk [vmem:[%s1713 + $0x60] sm:$0xf] %vm1714, %v1691
      %1740 = vst.msk [vmem:[%s1713 + $0x64] sm:$0xf] %vm1714, %v1692
      %1741 = vst.msk [vmem:[%s1713 + $0x68] sm:$0xf] %vm1714, %v1693
      %1742 = vst.msk [vmem:[%s1713 + $0x6c] sm:$0xf] %vm1714, %v1694
      %1743 = vst.msk [vmem:[%s1713 + $0x70] sm:$0xf] %vm1714, %v1695
      %1744 = vst.msk [vmem:[%s1713 + $0x74] sm:$0xf] %vm1714, %v1696
      %1745 = vst.msk [vmem:[%s1713 + $0x78] sm:$0xf] %vm1714, %v1697
      %1746 = vst.msk [vmem:[%s1713 + $0x7c] sm:$0xf] %vm1714, %v1698
      %1747 = vst.msk [vmem:[%s1713 + $0x80] sm:$0xf] %vm1714, %v1699
      %1748 = vst.msk [vmem:[%s1713 + $0x84] sm:$0xf] %vm1714, %v1700
      %1749 = vst.msk [vmem:[%s1713 + $0x88] sm:$0xf] %vm1714, %v1701
      %1750 = vst.msk [vmem:[%s1713 + $0x8c] sm:$0xf] %vm1714, %v1702
      %1751 = vst.msk [vmem:[%s1713 + $0x90] sm:$0xf] %vm1714, %v1703
      %1752 = vst.msk [vmem:[%s1713 + $0x94] sm:$0xf] %vm1714, %v1704
      %1753 = vst.msk [vmem:[%s1713 + $0x98] sm:$0xf] %vm1714, %v1705
      %1754 = vst.msk [vmem:[%s1713 + $0x9c] sm:$0xf] %vm1714, %v1706
      %1755 = vst.msk [vmem:[%s1713 + $0xa0] sm:$0xf] %vm1714, %v1707
      %1756 = vst.msk [vmem:[%s1713 + $0xa4] sm:$0xf] %vm1714, %v1708
      %1757 = vst.msk [vmem:[%s1713 + $0xa8] sm:$0xf] %vm1714, %v1709
      %1758 = vst.msk [vmem:[%s1713 + $0xac] sm:$0xf] %vm1714, %v1710
    $region65: #{tpu_custom_call.1} parent=1 // loop_footer
      %s1125 = sadd.s32 1, %s1121
    $region66: #{tpu_custom_call.1} parent=1 // loop_footer_branch
      %1120 = sbr.rel target = $region62
    $region67: #{tpu_custom_call.1} parent=1 // loop_exit
      _
    %v1759 = vld [vmem:[%s4] sm:$0xf]
    %v1760 = vld [vmem:[%s4 + $0x4] sm:$0xf]
    %v1761 = vld [vmem:[%s4 + $0x8] sm:$0xf]
    %v1762 = vld [vmem:[%s4 + $0xc] sm:$0x3]
    %s1763 = scalar_lea.vmem %s4, 16
    %v1764 = vld [vmem:[%s1763] sm:$0xf]
    %v1765 = vld [vmem:[%s1763 + $0x4] sm:$0xf]
    %v1766 = vld [vmem:[%s1763 + $0x8] sm:$0xf]
    %v1767 = vld [vmem:[%s1763 + $0xc] sm:$0x3]
    %s1768 = scalar_lea.vmem %s4, 32
    %v1769 = vld [vmem:[%s1768] sm:$0xf]
    %v1770 = vld [vmem:[%s1768 + $0x4] sm:$0xf]
    %v1771 = vld [vmem:[%s1768 + $0x8] sm:$0xf]
    %v1772 = vld [vmem:[%s1768 + $0xc] sm:$0x3]
    %s1773 = scalar_lea.vmem %s4, 48
    %v1774 = vld [vmem:[%s1773] sm:$0xf]
    %v1775 = vld [vmem:[%s1773 + $0x4] sm:$0xf]
    %v1776 = vld [vmem:[%s1773 + $0x8] sm:$0xf]
    %v1777 = vld [vmem:[%s1773 + $0xc] sm:$0x3]
    %s1778 = scalar_lea.vmem %s4, 64
    %v1779 = vld [vmem:[%s1778] sm:$0xf]
    %v1780 = vld [vmem:[%s1778 + $0x4] sm:$0xf]
    %v1781 = vld [vmem:[%s1778 + $0x8] sm:$0xf]
    %v1782 = vld [vmem:[%s1778 + $0xc] sm:$0x3]
    %s1783 = scalar_lea.vmem %s4, 80
    %v1784 = vld [vmem:[%s1783] sm:$0xf]
    %v1785 = vld [vmem:[%s1783 + $0x4] sm:$0xf]
    %v1786 = vld [vmem:[%s1783 + $0x8] sm:$0xf]
    %v1787 = vld [vmem:[%s1783 + $0xc] sm:$0x3]
    %s1788 = scalar_lea.vmem %s4, 96
    %v1789 = vld [vmem:[%s1788] sm:$0xf]
    %v1790 = vld [vmem:[%s1788 + $0x4] sm:$0xf]
    %v1791 = vld [vmem:[%s1788 + $0x8] sm:$0xf]
    %v1792 = vld [vmem:[%s1788 + $0xc] sm:$0x3]
    %s1793 = scalar_lea.vmem %s4, 112
    %v1794 = vld [vmem:[%s1793] sm:$0xf]
    %v1795 = vld [vmem:[%s1793 + $0x4] sm:$0xf]
    %v1796 = vld [vmem:[%s1793 + $0x8] sm:$0xf]
    %v1797 = vld [vmem:[%s1793 + $0xc] sm:$0x3]
    %s1798 = scalar_lea.vmem %s4, 128
    %v1799 = vld [vmem:[%s1798] sm:$0xf]
    %v1800 = vld [vmem:[%s1798 + $0x4] sm:$0xf]
    %v1801 = vld [vmem:[%s1798 + $0x8] sm:$0xf]
    %v1802 = vld [vmem:[%s1798 + $0xc] sm:$0x3]
    %v1803 = vld [vmem:[%s5] sm:$0x1]
    loop: start=0, step=1, limit=9
    $region68: #{tpu_custom_call.1} parent=1 // loop_pre_header
      _
    $region69: #{tpu_custom_call.1} parent=1 // loop_header
      %s1805 = sphi 0, %s1809
      %p1806 = scmp.ge.s32.totalorder %s1805, 9
    $region70: #{tpu_custom_call.1} parent=1 // loop_header_branch
      %1808 = sbr.rel (%p1806) target = $region74
    $region71: #{tpu_custom_call.1} parent=1 // loop_body
      %s1810 = smul.u32 %s1805, 44
      %s1811 = smul.addr %s1810, 4
      %s1812 = scalar_lea.vmem [#allocation3], %s1811
      %v1813 = vld [vmem:[%s1812] sm:$0xf]
      %v1814 = vld [vmem:[%s1812 + $0x4] sm:$0xf]
      %v1815 = vld [vmem:[%s1812 + $0x8] sm:$0xf]
      %v1816 = vld [vmem:[%s1812 + $0xc] sm:$0xf]
      %v1817 = vld [vmem:[%s1812 + $0x10] sm:$0xf]
      %v1818 = vld [vmem:[%s1812 + $0x14] sm:$0xf]
      %v1819 = vld [vmem:[%s1812 + $0x18] sm:$0xf]
      %v1820 = vld [vmem:[%s1812 + $0x1c] sm:$0xf]
      %v1821 = vld [vmem:[%s1812 + $0x20] sm:$0xf]
      %v1822 = vld [vmem:[%s1812 + $0x24] sm:$0xf]
      %v1823 = vld [vmem:[%s1812 + $0x28] sm:$0xf]
      %v1824 = vld [vmem:[%s1812 + $0x2c] sm:$0xf]
      %v1825 = vld [vmem:[%s1812 + $0x30] sm:$0xf]
      %v1826 = vld [vmem:[%s1812 + $0x34] sm:$0xf]
      %v1827 = vld [vmem:[%s1812 + $0x38] sm:$0xf]
      %v1828 = vld [vmem:[%s1812 + $0x3c] sm:$0xf]
      %v1829 = vld [vmem:[%s1812 + $0x40] sm:$0xf]
      %v1830 = vld [vmem:[%s1812 + $0x44] sm:$0xf]
      %v1831 = vld [vmem:[%s1812 + $0x48] sm:$0xf]
      %v1832 = vld [vmem:[%s1812 + $0x4c] sm:$0xf]
      %v1833 = vld [vmem:[%s1812 + $0x50] sm:$0xf]
      %v1834 = vld [vmem:[%s1812 + $0x54] sm:$0xf]
      %v1835 = vld [vmem:[%s1812 + $0x58] sm:$0xf]
      %v1836 = vld [vmem:[%s1812 + $0x5c] sm:$0xf]
      %v1837 = vld [vmem:[%s1812 + $0x60] sm:$0xf]
      %v1838 = vld [vmem:[%s1812 + $0x64] sm:$0xf]
      %v1839 = vld [vmem:[%s1812 + $0x68] sm:$0xf]
      %v1840 = vld [vmem:[%s1812 + $0x6c] sm:$0xf]
      %v1841 = vld [vmem:[%s1812 + $0x70] sm:$0xf]
      %v1842 = vld [vmem:[%s1812 + $0x74] sm:$0xf]
      %v1843 = vld [vmem:[%s1812 + $0x78] sm:$0xf]
      %v1844 = vld [vmem:[%s1812 + $0x7c] sm:$0xf]
      %v1845 = vld [vmem:[%s1812 + $0x80] sm:$0xf]
      %v1846 = vld [vmem:[%s1812 + $0x84] sm:$0xf]
      %v1847 = vld [vmem:[%s1812 + $0x88] sm:$0xf]
      %v1848 = vld [vmem:[%s1812 + $0x8c] sm:$0xf]
      %v1849 = vld [vmem:[%s1812 + $0x90] sm:$0xf]
      %v1850 = vld [vmem:[%s1812 + $0x94] sm:$0xf]
      %v1851 = vld [vmem:[%s1812 + $0x98] sm:$0xf]
      %v1852 = vld [vmem:[%s1812 + $0x9c] sm:$0xf]
      %v1853 = vld [vmem:[%s1812 + $0xa0] sm:$0xf]
      %v1854 = vld [vmem:[%s1812 + $0xa4] sm:$0xf]
      %v1855 = vld [vmem:[%s1812 + $0xa8] sm:$0xf]
      %v1856 = vld [vmem:[%s1812 + $0xac] sm:$0xf]
      %v1893 = vunpack.c.l.b16 %v1817
      %v1894 = vunpack.c.l.b16 %v1818
      %v1895 = vunpack.c.l.b16 %v1819
      %v1896 = vunpack.c.l.b16 %v1820
      %v1897 = vunpack.c.l.b16 %v1821
      %v1898 = vunpack.c.l.b16 %v1822
      %v1899 = vunpack.c.l.b16 %v1823
      %v1900 = vunpack.c.l.b16 %v1824
      %v1901 = vunpack.c.l.b16 %v1825
      %v1902 = vunpack.c.l.b16 %v1826
      %v1903 = vunpack.c.l.b16 %v1827
      %v1904 = vunpack.c.l.b16 %v1828
      %v1905 = vunpack.c.l.b16 %v1829
      %v1906 = vunpack.c.l.b16 %v1830
      %v1907 = vunpack.c.l.b16 %v1831
      %v1908 = vunpack.c.l.b16 %v1832
      %v1909 = vunpack.c.l.b16 %v1833
      %v1910 = vunpack.c.l.b16 %v1834
      %v1911 = vunpack.c.l.b16 %v1835
      %v1912 = vunpack.c.l.b16 %v1836
      %v1913 = vunpack.c.l.b16 %v1837
      %v1914 = vunpack.c.l.b16 %v1838
      %v1915 = vunpack.c.l.b16 %v1839
      %v1916 = vunpack.c.l.b16 %v1840
      %v1917 = vunpack.c.l.b16 %v1841
      %v1918 = vunpack.c.l.b16 %v1842
      %v1919 = vunpack.c.l.b16 %v1843
      %v1920 = vunpack.c.l.b16 %v1844
      %v1921 = vunpack.c.l.b16 %v1845
      %v1922 = vunpack.c.l.b16 %v1846
      %v1923 = vunpack.c.l.b16 %v1847
      %v1924 = vunpack.c.l.b16 %v1848
      %v1925 = vunpack.c.l.b16 %v1849
      %v1926 = vunpack.c.l.b16 %v1850
      %v1927 = vunpack.c.l.b16 %v1851
      %v1928 = vunpack.c.l.b16 %v1852
      %v1929 = vpack.c.b16 %v1894, %v1893
      %v1930 = vpack.c.b16 %v1896, %v1895
      %v1931 = vpack.c.b16 %v1898, %v1897
      %v1932 = vpack.c.b16 %v1900, %v1899
      %v1933 = vpack.c.b16 %v1902, %v1901
      %v1934 = vpack.c.b16 %v1904, %v1903
      %v1935 = vpack.c.b16 %v1906, %v1905
      %v1936 = vpack.c.b16 %v1908, %v1907
      %v1937 = vpack.c.b16 %v1910, %v1909
      %v1938 = vpack.c.b16 %v1912, %v1911
      %v1939 = vpack.c.b16 %v1914, %v1913
      %v1940 = vpack.c.b16 %v1916, %v1915
      %v1941 = vpack.c.b16 %v1918, %v1917
      %v1942 = vpack.c.b16 %v1920, %v1919
      %v1943 = vpack.c.b16 %v1922, %v1921
      %v1944 = vpack.c.b16 %v1924, %v1923
      %v1945 = vpack.c.b16 %v1926, %v1925
      %v1946 = vpack.c.b16 %v1928, %v1927
      %v1951 = vunpack.c.l.b16 %v1764
      %v1952 = vunpack.c.l.b16 %v1765
      %v1953 = vunpack.c.l.b16 %v1766
      %v1954 = vunpack.c.l.b16 %v1767
      %v1955 = vpack.c.b16 %v1952, %v1951
      %v1956 = vpack.c.b16 %v1954, %v1953
      %vm1958 = vcmask 228352
      %v1960 = vsel %vm1958, %v1929, 0
      %v1963 = vsel %vm1958, %v1930, 0
      %v1966 = vsel %vm1958, %v1931, 0
      %v1969 = vsel %vm1958, %v1932, 0
      %v1972 = vsel %vm1958, %v1933, 0
      %v1975 = vsel %vm1958, %v1934, 0
      %v1978 = vsel %vm1958, %v1935, 0
      %v1981 = vsel %vm1958, %v1936, 0
      %v1984 = vsel %vm1958, %v1937, 0
      %v1987 = vsel %vm1958, %v1938, 0
      %v1990 = vsel %vm1958, %v1939, 0
      %v1993 = vsel %vm1958, %v1940, 0
      %v1996 = vsel %vm1958, %v1941, 0
      %v1999 = vsel %vm1958, %v1942, 0
      %v2002 = vsel %vm1958, %v1943, 0
      %v2005 = vsel %vm1958, %v1944, 0
      %v2008 = vsel %vm1958, %v1945, 0
      %v2011 = vsel %vm1958, %v1946, 0
      %vm2013 = vcmask 1045504
      %v2015 = vsel %vm2013, %v1956, 0
      %2017 = vmatpush.bf16.msra.mxu0 0
      %2018 = vmatpush.bf16.msra.mxu0 0
      %2019 = vmatpush.bf16.msra.mxu0 0
      %2020 = vmatpush.bf16.msra.mxu0 0
      %2021 = vmatpush.bf16.msra.mxu0 0
      %2022 = vmatpush.bf16.msra.mxu0 0
      %2023 = vmatpush.bf16.msra.mxu0 %v2015
      %2024 = vmatpush.bf16.msra.mxu0 %v1955
      %2025 = vmatmul.bf16.gmra.mxu0 %v1960
      %v2026 = vpop.f32.mrf.mxu0
      %v2027 = vadd.f32 0.0, %v2026
      %v2028 = vpop.f32.mrf.mxu0
      %v2029 = vadd.f32 0.0, %v2028
      %2030 = vmatmul.bf16.gmra.mxu0 %v1963
      %v2031 = vpop.f32.mrf.mxu0
      %v2032 = vadd.f32 0.0, %v2031
      %v2033 = vpop.f32.mrf.mxu0
      %v2034 = vadd.f32 0.0, %v2033
      %2035 = vmatmul.bf16.gmra.mxu0 %v1966
      %v2036 = vpop.f32.mrf.mxu0
      %v2037 = vadd.f32 0.0, %v2036
      %v2038 = vpop.f32.mrf.mxu0
      %v2039 = vadd.f32 0.0, %v2038
      %2040 = vmatmul.bf16.gmra.mxu0 %v1969
      %v2041 = vpop.f32.mrf.mxu0
      %v2042 = vadd.f32 0.0, %v2041
      %v2043 = vpop.f32.mrf.mxu0
      %v2044 = vadd.f32 0.0, %v2043
      %2045 = vmatmul.bf16.gmra.mxu0 %v1972
      %v2046 = vpop.f32.mrf.mxu0
      %v2047 = vadd.f32 0.0, %v2046
      %v2048 = vpop.f32.mrf.mxu0
      %v2049 = vadd.f32 0.0, %v2048
      %2050 = vmatmul.bf16.gmra.mxu0 %v1975
      %v2051 = vpop.f32.mrf.mxu0
      %v2052 = vadd.f32 0.0, %v2051
      %v2053 = vpop.f32.mrf.mxu0
      %v2054 = vadd.f32 0.0, %v2053
      %2055 = vmatmul.bf16.gmra.mxu0 %v1978
      %v2056 = vpop.f32.mrf.mxu0
      %v2057 = vadd.f32 0.0, %v2056
      %v2058 = vpop.f32.mrf.mxu0
      %v2059 = vadd.f32 0.0, %v2058
      %2060 = vmatmul.bf16.gmra.mxu0 %v1981
      %v2061 = vpop.f32.mrf.mxu0
      %v2062 = vadd.f32 0.0, %v2061
      %v2063 = vpop.f32.mrf.mxu0
      %v2064 = vadd.f32 0.0, %v2063
      %2065 = vmatmul.bf16.gmra.mxu0 %v1984
      %v2066 = vpop.f32.mrf.mxu0
      %v2067 = vadd.f32 0.0, %v2066
      %v2068 = vpop.f32.mrf.mxu0
      %v2069 = vadd.f32 0.0, %v2068
      %2070 = vmatmul.bf16.gmra.mxu0 %v1987
      %v2071 = vpop.f32.mrf.mxu0
      %v2072 = vadd.f32 0.0, %v2071
      %v2073 = vpop.f32.mrf.mxu0
      %v2074 = vadd.f32 0.0, %v2073
      %2075 = vmatmul.bf16.gmra.mxu0 %v1990
      %v2076 = vpop.f32.mrf.mxu0
      %v2077 = vadd.f32 0.0, %v2076
      %v2078 = vpop.f32.mrf.mxu0
      %v2079 = vadd.f32 0.0, %v2078
      %2080 = vmatmul.bf16.gmra.mxu0 %v1993
      %v2081 = vpop.f32.mrf.mxu0
      %v2082 = vadd.f32 0.0, %v2081
      %v2083 = vpop.f32.mrf.mxu0
      %v2084 = vadd.f32 0.0, %v2083
      %2085 = vmatmul.bf16.gmra.mxu0 %v1996
      %v2086 = vpop.f32.mrf.mxu0
      %v2087 = vadd.f32 0.0, %v2086
      %v2088 = vpop.f32.mrf.mxu0
      %v2089 = vadd.f32 0.0, %v2088
      %2090 = vmatmul.bf16.gmra.mxu0 %v1999
      %v2091 = vpop.f32.mrf.mxu0
      %v2092 = vadd.f32 0.0, %v2091
      %v2093 = vpop.f32.mrf.mxu0
      %v2094 = vadd.f32 0.0, %v2093
      %2095 = vmatmul.bf16.gmra.mxu0 %v2002
      %v2096 = vpop.f32.mrf.mxu0
      %v2097 = vadd.f32 0.0, %v2096
      %v2098 = vpop.f32.mrf.mxu0
      %v2099 = vadd.f32 0.0, %v2098
      %2100 = vmatmul.bf16.gmra.mxu0 %v2005
      %v2101 = vpop.f32.mrf.mxu0
      %v2102 = vadd.f32 0.0, %v2101
      %v2103 = vpop.f32.mrf.mxu0
      %v2104 = vadd.f32 0.0, %v2103
      %2105 = vmatmul.bf16.gmra.mxu0 %v2008
      %v2106 = vpop.f32.mrf.mxu0
      %v2107 = vadd.f32 0.0, %v2106
      %v2108 = vpop.f32.mrf.mxu0
      %v2109 = vadd.f32 0.0, %v2108
      %2110 = vmatmul.bf16.gmra.mxu0 %v2011
      %v2111 = vpop.f32.mrf.mxu0
      %v2112 = vadd.f32 0.0, %v2111
      %v2113 = vpop.f32.mrf.mxu0
      %v2114 = vadd.f32 0.0, %v2113
      %2115 = vdwg.mxu0
      %v2120 = vunpack.c.l.b16 %v1813
      %v2121 = vunpack.c.l.b16 %v1814
      %v2122 = vunpack.c.l.b16 %v1815
      %v2123 = vunpack.c.l.b16 %v1816
      %v2124 = vpack.c.b16 %v2121, %v2120
      %v2125 = vpack.c.b16 %v2123, %v2122
      %v2130 = vunpack.c.l.b16 %v1759
      %v2131 = vunpack.c.l.b16 %v1760
      %v2132 = vunpack.c.l.b16 %v1761
      %v2133 = vunpack.c.l.b16 %v1762
      %v2134 = vpack.c.b16 %v2131, %v2130
      %v2135 = vpack.c.b16 %v2133, %v2132
      %v2138 = vsel %vm1958, %v2124, 0
      %v2141 = vsel %vm1958, %v2125, 0
      %v2144 = vsel %vm2013, %v2135, 0
      %2146 = vmatpush.bf16.msra.mxu0 0
      %2147 = vmatpush.bf16.msra.mxu0 0
      %2148 = vmatpush.bf16.msra.mxu0 0
      %2149 = vmatpush.bf16.msra.mxu0 0
      %2150 = vmatpush.bf16.msra.mxu0 0
      %2151 = vmatpush.bf16.msra.mxu0 0
      %2152 = vmatpush.bf16.msra.mxu0 %v2144
      %2153 = vmatpush.bf16.msra.mxu0 %v2134
      %2154 = vmatmul.bf16.gmra.mxu0 %v2138
      %v2155 = vpop.f32.mrf.mxu0
      %v2156 = vadd.f32 %v2027, %v2155
      %v2157 = vpop.f32.mrf.mxu0
      %v2158 = vadd.f32 %v2029, %v2157
      %2159 = vmatmul.bf16.gmra.mxu0 %v2141
      %v2160 = vpop.f32.mrf.mxu0
      %v2161 = vadd.f32 %v2032, %v2160
      %v2162 = vpop.f32.mrf.mxu0
      %v2163 = vadd.f32 %v2034, %v2162
      %2164 = vmatmul.bf16.gmra.mxu0 %v1960
      %v2165 = vpop.f32.mrf.mxu0
      %v2166 = vadd.f32 %v2037, %v2165
      %v2167 = vpop.f32.mrf.mxu0
      %v2168 = vadd.f32 %v2039, %v2167
      %2169 = vmatmul.bf16.gmra.mxu0 %v1963
      %v2170 = vpop.f32.mrf.mxu0
      %v2171 = vadd.f32 %v2042, %v2170
      %v2172 = vpop.f32.mrf.mxu0
      %v2173 = vadd.f32 %v2044, %v2172
      %2174 = vmatmul.bf16.gmra.mxu0 %v1966
      %v2175 = vpop.f32.mrf.mxu0
      %v2176 = vadd.f32 %v2047, %v2175
      %v2177 = vpop.f32.mrf.mxu0
      %v2178 = vadd.f32 %v2049, %v2177
      %2179 = vmatmul.bf16.gmra.mxu0 %v1969
      %v2180 = vpop.f32.mrf.mxu0
      %v2181 = vadd.f32 %v2052, %v2180
      %v2182 = vpop.f32.mrf.mxu0
      %v2183 = vadd.f32 %v2054, %v2182
      %2184 = vmatmul.bf16.gmra.mxu0 %v1972
      %v2185 = vpop.f32.mrf.mxu0
      %v2186 = vadd.f32 %v2057, %v2185
      %v2187 = vpop.f32.mrf.mxu0
      %v2188 = vadd.f32 %v2059, %v2187
      %2189 = vmatmul.bf16.gmra.mxu0 %v1975
      %v2190 = vpop.f32.mrf.mxu0
      %v2191 = vadd.f32 %v2062, %v2190
      %v2192 = vpop.f32.mrf.mxu0
      %v2193 = vadd.f32 %v2064, %v2192
      %2194 = vmatmul.bf16.gmra.mxu0 %v1978
      %v2195 = vpop.f32.mrf.mxu0
      %v2196 = vadd.f32 %v2067, %v2195
      %v2197 = vpop.f32.mrf.mxu0
      %v2198 = vadd.f32 %v2069, %v2197
      %2199 = vmatmul.bf16.gmra.mxu0 %v1981
      %v2200 = vpop.f32.mrf.mxu0
      %v2201 = vadd.f32 %v2072, %v2200
      %v2202 = vpop.f32.mrf.mxu0
      %v2203 = vadd.f32 %v2074, %v2202
      %2204 = vmatmul.bf16.gmra.mxu0 %v1984
      %v2205 = vpop.f32.mrf.mxu0
      %v2206 = vadd.f32 %v2077, %v2205
      %v2207 = vpop.f32.mrf.mxu0
      %v2208 = vadd.f32 %v2079, %v2207
      %2209 = vmatmul.bf16.gmra.mxu0 %v1987
      %v2210 = vpop.f32.mrf.mxu0
      %v2211 = vadd.f32 %v2082, %v2210
      %v2212 = vpop.f32.mrf.mxu0
      %v2213 = vadd.f32 %v2084, %v2212
      %2214 = vmatmul.bf16.gmra.mxu0 %v1990
      %v2215 = vpop.f32.mrf.mxu0
      %v2216 = vadd.f32 %v2087, %v2215
      %v2217 = vpop.f32.mrf.mxu0
      %v2218 = vadd.f32 %v2089, %v2217
      %2219 = vmatmul.bf16.gmra.mxu0 %v1993
      %v2220 = vpop.f32.mrf.mxu0
      %v2221 = vadd.f32 %v2092, %v2220
      %v2222 = vpop.f32.mrf.mxu0
      %v2223 = vadd.f32 %v2094, %v2222
      %2224 = vmatmul.bf16.gmra.mxu0 %v1996
      %v2225 = vpop.f32.mrf.mxu0
      %v2226 = vadd.f32 %v2097, %v2225
      %v2227 = vpop.f32.mrf.mxu0
      %v2228 = vadd.f32 %v2099, %v2227
      %2229 = vmatmul.bf16.gmra.mxu0 %v1999
      %v2230 = vpop.f32.mrf.mxu0
      %v2231 = vadd.f32 %v2102, %v2230
      %v2232 = vpop.f32.mrf.mxu0
      %v2233 = vadd.f32 %v2104, %v2232
      %2234 = vmatmul.bf16.gmra.mxu0 %v2002
      %v2235 = vpop.f32.mrf.mxu0
      %v2236 = vadd.f32 %v2107, %v2235
      %v2237 = vpop.f32.mrf.mxu0
      %v2238 = vadd.f32 %v2109, %v2237
      %2239 = vmatmul.bf16.gmra.mxu0 %v2005
      %v2240 = vpop.f32.mrf.mxu0
      %v2241 = vadd.f32 %v2112, %v2240
      %v2242 = vpop.f32.mrf.mxu0
      %v2243 = vadd.f32 %v2114, %v2242
      %2244 = vdwg.mxu0
      %v2249 = vunpack.c.l.b16 %v1853
      %v2250 = vunpack.c.l.b16 %v1854
      %v2251 = vunpack.c.l.b16 %v1855
      %v2252 = vunpack.c.l.b16 %v1856
      %v2253 = vpack.c.b16 %v2250, %v2249
      %v2254 = vpack.c.b16 %v2252, %v2251
      %v2259 = vunpack.c.l.b16 %v1769
      %v2260 = vunpack.c.l.b16 %v1770
      %v2261 = vunpack.c.l.b16 %v1771
      %v2262 = vunpack.c.l.b16 %v1772
      %v2263 = vpack.c.b16 %v2260, %v2259
      %v2264 = vpack.c.b16 %v2262, %v2261
      %v2267 = vsel %vm1958, %v2253, 0
      %v2270 = vsel %vm1958, %v2254, 0
      %v2273 = vsel %vm2013, %v2264, 0
      %2275 = vmatpush.bf16.msra.mxu0 0
      %2276 = vmatpush.bf16.msra.mxu0 0
      %2277 = vmatpush.bf16.msra.mxu0 0
      %2278 = vmatpush.bf16.msra.mxu0 0
      %2279 = vmatpush.bf16.msra.mxu0 0
      %2280 = vmatpush.bf16.msra.mxu0 0
      %2281 = vmatpush.bf16.msra.mxu0 %v2273
      %2282 = vmatpush.bf16.msra.mxu0 %v2263
      %2283 = vmatmul.bf16.gmra.mxu0 %v1966
      %v2284 = vpop.f32.mrf.mxu0
      %v2285 = vadd.f32 0.0, %v2284
      %v2286 = vpop.f32.mrf.mxu0
      %v2287 = vadd.f32 0.0, %v2286
      %2288 = vmatmul.bf16.gmra.mxu0 %v1969
      %v2289 = vpop.f32.mrf.mxu0
      %v2290 = vadd.f32 0.0, %v2289
      %v2291 = vpop.f32.mrf.mxu0
      %v2292 = vadd.f32 0.0, %v2291
      %2293 = vmatmul.bf16.gmra.mxu0 %v1972
      %v2294 = vpop.f32.mrf.mxu0
      %v2295 = vadd.f32 0.0, %v2294
      %v2296 = vpop.f32.mrf.mxu0
      %v2297 = vadd.f32 0.0, %v2296
      %2298 = vmatmul.bf16.gmra.mxu0 %v1975
      %v2299 = vpop.f32.mrf.mxu0
      %v2300 = vadd.f32 0.0, %v2299
      %v2301 = vpop.f32.mrf.mxu0
      %v2302 = vadd.f32 0.0, %v2301
      %2303 = vmatmul.bf16.gmra.mxu0 %v1978
      %v2304 = vpop.f32.mrf.mxu0
      %v2305 = vadd.f32 0.0, %v2304
      %v2306 = vpop.f32.mrf.mxu0
      %v2307 = vadd.f32 0.0, %v2306
      %2308 = vmatmul.bf16.gmra.mxu0 %v1981
      %v2309 = vpop.f32.mrf.mxu0
      %v2310 = vadd.f32 0.0, %v2309
      %v2311 = vpop.f32.mrf.mxu0
      %v2312 = vadd.f32 0.0, %v2311
      %2313 = vmatmul.bf16.gmra.mxu0 %v1984
      %v2314 = vpop.f32.mrf.mxu0
      %v2315 = vadd.f32 0.0, %v2314
      %v2316 = vpop.f32.mrf.mxu0
      %v2317 = vadd.f32 0.0, %v2316
      %2318 = vmatmul.bf16.gmra.mxu0 %v1987
      %v2319 = vpop.f32.mrf.mxu0
      %v2320 = vadd.f32 0.0, %v2319
      %v2321 = vpop.f32.mrf.mxu0
      %v2322 = vadd.f32 0.0, %v2321
      %2323 = vmatmul.bf16.gmra.mxu0 %v1990
      %v2324 = vpop.f32.mrf.mxu0
      %v2325 = vadd.f32 0.0, %v2324
      %v2326 = vpop.f32.mrf.mxu0
      %v2327 = vadd.f32 0.0, %v2326
      %2328 = vmatmul.bf16.gmra.mxu0 %v1993
      %v2329 = vpop.f32.mrf.mxu0
      %v2330 = vadd.f32 0.0, %v2329
      %v2331 = vpop.f32.mrf.mxu0
      %v2332 = vadd.f32 0.0, %v2331
      %2333 = vmatmul.bf16.gmra.mxu0 %v1996
      %v2334 = vpop.f32.mrf.mxu0
      %v2335 = vadd.f32 0.0, %v2334
      %v2336 = vpop.f32.mrf.mxu0
      %v2337 = vadd.f32 0.0, %v2336
      %2338 = vmatmul.bf16.gmra.mxu0 %v1999
      %v2339 = vpop.f32.mrf.mxu0
      %v2340 = vadd.f32 0.0, %v2339
      %v2341 = vpop.f32.mrf.mxu0
      %v2342 = vadd.f32 0.0, %v2341
      %2343 = vmatmul.bf16.gmra.mxu0 %v2002
      %v2344 = vpop.f32.mrf.mxu0
      %v2345 = vadd.f32 0.0, %v2344
      %v2346 = vpop.f32.mrf.mxu0
      %v2347 = vadd.f32 0.0, %v2346
      %2348 = vmatmul.bf16.gmra.mxu0 %v2005
      %v2349 = vpop.f32.mrf.mxu0
      %v2350 = vadd.f32 0.0, %v2349
      %v2351 = vpop.f32.mrf.mxu0
      %v2352 = vadd.f32 0.0, %v2351
      %2353 = vmatmul.bf16.gmra.mxu0 %v2008
      %v2354 = vpop.f32.mrf.mxu0
      %v2355 = vadd.f32 0.0, %v2354
      %v2356 = vpop.f32.mrf.mxu0
      %v2357 = vadd.f32 0.0, %v2356
      %2358 = vmatmul.bf16.gmra.mxu0 %v2011
      %v2359 = vpop.f32.mrf.mxu0
      %v2360 = vadd.f32 0.0, %v2359
      %v2361 = vpop.f32.mrf.mxu0
      %v2362 = vadd.f32 0.0, %v2361
      %2363 = vmatmul.bf16.gmra.mxu0 %v2267
      %v2364 = vpop.f32.mrf.mxu0
      %v2365 = vadd.f32 0.0, %v2364
      %v2366 = vpop.f32.mrf.mxu0
      %v2367 = vadd.f32 0.0, %v2366
      %2368 = vmatmul.bf16.gmra.mxu0 %v2270
      %v2369 = vpop.f32.mrf.mxu0
      %v2370 = vadd.f32 0.0, %v2369
      %v2371 = vpop.f32.mrf.mxu0
      %v2372 = vadd.f32 0.0, %v2371
      %2373 = vdwg.mxu0
      %v2374 = vadd.f32 %v2156, %v2285
      %v2375 = vadd.f32 %v2158, %v2287
      %v2376 = vadd.f32 %v2161, %v2290
      %v2377 = vadd.f32 %v2163, %v2292
      %v2378 = vadd.f32 %v2166, %v2295
      %v2379 = vadd.f32 %v2168, %v2297
      %v2380 = vadd.f32 %v2171, %v2300
      %v2381 = vadd.f32 %v2173, %v2302
      %v2382 = vadd.f32 %v2176, %v2305
      %v2383 = vadd.f32 %v2178, %v2307
      %v2384 = vadd.f32 %v2181, %v2310
      %v2385 = vadd.f32 %v2183, %v2312
      %v2386 = vadd.f32 %v2186, %v2315
      %v2387 = vadd.f32 %v2188, %v2317
      %v2388 = vadd.f32 %v2191, %v2320
      %v2389 = vadd.f32 %v2193, %v2322
      %v2390 = vadd.f32 %v2196, %v2325
      %v2391 = vadd.f32 %v2198, %v2327
      %v2392 = vadd.f32 %v2201, %v2330
      %v2393 = vadd.f32 %v2203, %v2332
      %v2394 = vadd.f32 %v2206, %v2335
      %v2395 = vadd.f32 %v2208, %v2337
      %v2396 = vadd.f32 %v2211, %v2340
      %v2397 = vadd.f32 %v2213, %v2342
      %v2398 = vadd.f32 %v2216, %v2345
      %v2399 = vadd.f32 %v2218, %v2347
      %v2400 = vadd.f32 %v2221, %v2350
      %v2401 = vadd.f32 %v2223, %v2352
      %v2402 = vadd.f32 %v2226, %v2355
      %v2403 = vadd.f32 %v2228, %v2357
      %v2404 = vadd.f32 %v2231, %v2360
      %v2405 = vadd.f32 %v2233, %v2362
      %v2406 = vadd.f32 %v2236, %v2365
      %v2407 = vadd.f32 %v2238, %v2367
      %v2408 = vadd.f32 %v2241, %v2370
      %v2409 = vadd.f32 %v2243, %v2372
      %s2410 = sadd.s32 %s1805, 1
      %s2411 = smul.u32 %s2410, 44
      %s2412 = smul.addr %s2411, 4
      %s2413 = scalar_lea.vmem [#allocation3], %s2412
      %v2414 = vld [vmem:[%s2413] sm:$0xf]
      %v2415 = vld [vmem:[%s2413 + $0x4] sm:$0xf]
      %v2416 = vld [vmem:[%s2413 + $0x8] sm:$0xf]
      %v2417 = vld [vmem:[%s2413 + $0xc] sm:$0xf]
      %v2418 = vld [vmem:[%s2413 + $0x10] sm:$0xf]
      %v2419 = vld [vmem:[%s2413 + $0x14] sm:$0xf]
      %v2420 = vld [vmem:[%s2413 + $0x18] sm:$0xf]
      %v2421 = vld [vmem:[%s2413 + $0x1c] sm:$0xf]
      %v2422 = vld [vmem:[%s2413 + $0x20] sm:$0xf]
      %v2423 = vld [vmem:[%s2413 + $0x24] sm:$0xf]
      %v2424 = vld [vmem:[%s2413 + $0x28] sm:$0xf]
      %v2425 = vld [vmem:[%s2413 + $0x2c] sm:$0xf]
      %v2426 = vld [vmem:[%s2413 + $0x30] sm:$0xf]
      %v2427 = vld [vmem:[%s2413 + $0x34] sm:$0xf]
      %v2428 = vld [vmem:[%s2413 + $0x38] sm:$0xf]
      %v2429 = vld [vmem:[%s2413 + $0x3c] sm:$0xf]
      %v2430 = vld [vmem:[%s2413 + $0x40] sm:$0xf]
      %v2431 = vld [vmem:[%s2413 + $0x44] sm:$0xf]
      %v2432 = vld [vmem:[%s2413 + $0x48] sm:$0xf]
      %v2433 = vld [vmem:[%s2413 + $0x4c] sm:$0xf]
      %v2434 = vld [vmem:[%s2413 + $0x50] sm:$0xf]
      %v2435 = vld [vmem:[%s2413 + $0x54] sm:$0xf]
      %v2436 = vld [vmem:[%s2413 + $0x58] sm:$0xf]
      %v2437 = vld [vmem:[%s2413 + $0x5c] sm:$0xf]
      %v2438 = vld [vmem:[%s2413 + $0x60] sm:$0xf]
      %v2439 = vld [vmem:[%s2413 + $0x64] sm:$0xf]
      %v2440 = vld [vmem:[%s2413 + $0x68] sm:$0xf]
      %v2441 = vld [vmem:[%s2413 + $0x6c] sm:$0xf]
      %v2442 = vld [vmem:[%s2413 + $0x70] sm:$0xf]
      %v2443 = vld [vmem:[%s2413 + $0x74] sm:$0xf]
      %v2444 = vld [vmem:[%s2413 + $0x78] sm:$0xf]
      %v2445 = vld [vmem:[%s2413 + $0x7c] sm:$0xf]
      %v2446 = vld [vmem:[%s2413 + $0x80] sm:$0xf]
      %v2447 = vld [vmem:[%s2413 + $0x84] sm:$0xf]
      %v2448 = vld [vmem:[%s2413 + $0x88] sm:$0xf]
      %v2449 = vld [vmem:[%s2413 + $0x8c] sm:$0xf]
      %v2450 = vld [vmem:[%s2413 + $0x90] sm:$0xf]
      %v2451 = vld [vmem:[%s2413 + $0x94] sm:$0xf]
      %v2452 = vld [vmem:[%s2413 + $0x98] sm:$0xf]
      %v2453 = vld [vmem:[%s2413 + $0x9c] sm:$0xf]
      %v2454 = vld [vmem:[%s2413 + $0xa0] sm:$0xf]
      %v2455 = vld [vmem:[%s2413 + $0xa4] sm:$0xf]
      %v2456 = vld [vmem:[%s2413 + $0xa8] sm:$0xf]
      %v2457 = vld [vmem:[%s2413 + $0xac] sm:$0xf]
      %v2494 = vunpack.c.l.b16 %v2414
      %v2495 = vunpack.c.l.b16 %v2415
      %v2496 = vunpack.c.l.b16 %v2416
      %v2497 = vunpack.c.l.b16 %v2417
      %v2498 = vunpack.c.l.b16 %v2418
      %v2499 = vunpack.c.l.b16 %v2419
      %v2500 = vunpack.c.l.b16 %v2420
      %v2501 = vunpack.c.l.b16 %v2421
      %v2502 = vunpack.c.l.b16 %v2422
      %v2503 = vunpack.c.l.b16 %v2423
      %v2504 = vunpack.c.l.b16 %v2424
      %v2505 = vunpack.c.l.b16 %v2425
      %v2506 = vunpack.c.l.b16 %v2426
      %v2507 = vunpack.c.l.b16 %v2427
      %v2508 = vunpack.c.l.b16 %v2428
      %v2509 = vunpack.c.l.b16 %v2429
      %v2510 = vunpack.c.l.b16 %v2430
      %v2511 = vunpack.c.l.b16 %v2431
      %v2512 = vunpack.c.l.b16 %v2432
      %v2513 = vunpack.c.l.b16 %v2433
      %v2514 = vunpack.c.l.b16 %v2434
      %v2515 = vunpack.c.l.b16 %v2435
      %v2516 = vunpack.c.l.b16 %v2436
      %v2517 = vunpack.c.l.b16 %v2437
      %v2518 = vunpack.c.l.b16 %v2438
      %v2519 = vunpack.c.l.b16 %v2439
      %v2520 = vunpack.c.l.b16 %v2440
      %v2521 = vunpack.c.l.b16 %v2441
      %v2522 = vunpack.c.l.b16 %v2442
      %v2523 = vunpack.c.l.b16 %v2443
      %v2524 = vunpack.c.l.b16 %v2444
      %v2525 = vunpack.c.l.b16 %v2445
      %v2526 = vunpack.c.l.b16 %v2446
      %v2527 = vunpack.c.l.b16 %v2447
      %v2528 = vunpack.c.l.b16 %v2448
      %v2529 = vunpack.c.l.b16 %v2449
      %v2530 = vpack.c.b16 %v2495, %v2494
      %v2531 = vpack.c.b16 %v2497, %v2496
      %v2532 = vpack.c.b16 %v2499, %v2498
      %v2533 = vpack.c.b16 %v2501, %v2500
      %v2534 = vpack.c.b16 %v2503, %v2502
      %v2535 = vpack.c.b16 %v2505, %v2504
      %v2536 = vpack.c.b16 %v2507, %v2506
      %v2537 = vpack.c.b16 %v2509, %v2508
      %v2538 = vpack.c.b16 %v2511, %v2510
      %v2539 = vpack.c.b16 %v2513, %v2512
      %v2540 = vpack.c.b16 %v2515, %v2514
      %v2541 = vpack.c.b16 %v2517, %v2516
      %v2542 = vpack.c.b16 %v2519, %v2518
      %v2543 = vpack.c.b16 %v2521, %v2520
      %v2544 = vpack.c.b16 %v2523, %v2522
      %v2545 = vpack.c.b16 %v2525, %v2524
      %v2546 = vpack.c.b16 %v2527, %v2526
      %v2547 = vpack.c.b16 %v2529, %v2528
      %v2552 = vunpack.c.l.b16 %v1774
      %v2553 = vunpack.c.l.b16 %v1775
      %v2554 = vunpack.c.l.b16 %v1776
      %v2555 = vunpack.c.l.b16 %v1777
      %v2556 = vpack.c.b16 %v2553, %v2552
      %v2557 = vpack.c.b16 %v2555, %v2554
      %v2560 = vsel %vm1958, %v2530, 0
      %v2563 = vsel %vm1958, %v2531, 0
      %v2566 = vsel %vm1958, %v2532, 0
      %v2569 = vsel %vm1958, %v2533, 0
      %v2572 = vsel %vm1958, %v2534, 0
      %v2575 = vsel %vm1958, %v2535, 0
      %v2578 = vsel %vm1958, %v2536, 0
      %v2581 = vsel %vm1958, %v2537, 0
      %v2584 = vsel %vm1958, %v2538, 0
      %v2587 = vsel %vm1958, %v2539, 0
      %v2590 = vsel %vm1958, %v2540, 0
      %v2593 = vsel %vm1958, %v2541, 0
      %v2596 = vsel %vm1958, %v2542, 0
      %v2599 = vsel %vm1958, %v2543, 0
      %v2602 = vsel %vm1958, %v2544, 0
      %v2605 = vsel %vm1958, %v2545, 0
      %v2608 = vsel %vm1958, %v2546, 0
      %v2611 = vsel %vm1958, %v2547, 0
      %v2614 = vsel %vm2013, %v2557, 0
      %2616 = vmatpush.bf16.msra.mxu0 0
      %2617 = vmatpush.bf16.msra.mxu0 0
      %2618 = vmatpush.bf16.msra.mxu0 0
      %2619 = vmatpush.bf16.msra.mxu0 0
      %2620 = vmatpush.bf16.msra.mxu0 0
      %2621 = vmatpush.bf16.msra.mxu0 0
      %2622 = vmatpush.bf16.msra.mxu0 %v2614
      %2623 = vmatpush.bf16.msra.mxu0 %v2556
      %2624 = vmatmul.bf16.gmra.mxu0 %v2560
      %v2625 = vpop.f32.mrf.mxu0
      %v2626 = vadd.f32 0.0, %v2625
      %v2627 = vpop.f32.mrf.mxu0
      %v2628 = vadd.f32 0.0, %v2627
      %2629 = vmatmul.bf16.gmra.mxu0 %v2563
      %v2630 = vpop.f32.mrf.mxu0
      %v2631 = vadd.f32 0.0, %v2630
      %v2632 = vpop.f32.mrf.mxu0
      %v2633 = vadd.f32 0.0, %v2632
      %2634 = vmatmul.bf16.gmra.mxu0 %v2566
      %v2635 = vpop.f32.mrf.mxu0
      %v2636 = vadd.f32 0.0, %v2635
      %v2637 = vpop.f32.mrf.mxu0
      %v2638 = vadd.f32 0.0, %v2637
      %2639 = vmatmul.bf16.gmra.mxu0 %v2569
      %v2640 = vpop.f32.mrf.mxu0
      %v2641 = vadd.f32 0.0, %v2640
      %v2642 = vpop.f32.mrf.mxu0
      %v2643 = vadd.f32 0.0, %v2642
      %2644 = vmatmul.bf16.gmra.mxu0 %v2572
      %v2645 = vpop.f32.mrf.mxu0
      %v2646 = vadd.f32 0.0, %v2645
      %v2647 = vpop.f32.mrf.mxu0
      %v2648 = vadd.f32 0.0, %v2647
      %2649 = vmatmul.bf16.gmra.mxu0 %v2575
      %v2650 = vpop.f32.mrf.mxu0
      %v2651 = vadd.f32 0.0, %v2650
      %v2652 = vpop.f32.mrf.mxu0
      %v2653 = vadd.f32 0.0, %v2652
      %2654 = vmatmul.bf16.gmra.mxu0 %v2578
      %v2655 = vpop.f32.mrf.mxu0
      %v2656 = vadd.f32 0.0, %v2655
      %v2657 = vpop.f32.mrf.mxu0
      %v2658 = vadd.f32 0.0, %v2657
      %2659 = vmatmul.bf16.gmra.mxu0 %v2581
      %v2660 = vpop.f32.mrf.mxu0
      %v2661 = vadd.f32 0.0, %v2660
      %v2662 = vpop.f32.mrf.mxu0
      %v2663 = vadd.f32 0.0, %v2662
      %2664 = vmatmul.bf16.gmra.mxu0 %v2584
      %v2665 = vpop.f32.mrf.mxu0
      %v2666 = vadd.f32 0.0, %v2665
      %v2667 = vpop.f32.mrf.mxu0
      %v2668 = vadd.f32 0.0, %v2667
      %2669 = vmatmul.bf16.gmra.mxu0 %v2587
      %v2670 = vpop.f32.mrf.mxu0
      %v2671 = vadd.f32 0.0, %v2670
      %v2672 = vpop.f32.mrf.mxu0
      %v2673 = vadd.f32 0.0, %v2672
      %2674 = vmatmul.bf16.gmra.mxu0 %v2590
      %v2675 = vpop.f32.mrf.mxu0
      %v2676 = vadd.f32 0.0, %v2675
      %v2677 = vpop.f32.mrf.mxu0
      %v2678 = vadd.f32 0.0, %v2677
      %2679 = vmatmul.bf16.gmra.mxu0 %v2593
      %v2680 = vpop.f32.mrf.mxu0
      %v2681 = vadd.f32 0.0, %v2680
      %v2682 = vpop.f32.mrf.mxu0
      %v2683 = vadd.f32 0.0, %v2682
      %2684 = vmatmul.bf16.gmra.mxu0 %v2596
      %v2685 = vpop.f32.mrf.mxu0
      %v2686 = vadd.f32 0.0, %v2685
      %v2687 = vpop.f32.mrf.mxu0
      %v2688 = vadd.f32 0.0, %v2687
      %2689 = vmatmul.bf16.gmra.mxu0 %v2599
      %v2690 = vpop.f32.mrf.mxu0
      %v2691 = vadd.f32 0.0, %v2690
      %v2692 = vpop.f32.mrf.mxu0
      %v2693 = vadd.f32 0.0, %v2692
      %2694 = vmatmul.bf16.gmra.mxu0 %v2602
      %v2695 = vpop.f32.mrf.mxu0
      %v2696 = vadd.f32 0.0, %v2695
      %v2697 = vpop.f32.mrf.mxu0
      %v2698 = vadd.f32 0.0, %v2697
      %2699 = vmatmul.bf16.gmra.mxu0 %v2605
      %v2700 = vpop.f32.mrf.mxu0
      %v2701 = vadd.f32 0.0, %v2700
      %v2702 = vpop.f32.mrf.mxu0
      %v2703 = vadd.f32 0.0, %v2702
      %2704 = vmatmul.bf16.gmra.mxu0 %v2608
      %v2705 = vpop.f32.mrf.mxu0
      %v2706 = vadd.f32 0.0, %v2705
      %v2707 = vpop.f32.mrf.mxu0
      %v2708 = vadd.f32 0.0, %v2707
      %2709 = vmatmul.bf16.gmra.mxu0 %v2611
      %v2710 = vpop.f32.mrf.mxu0
      %v2711 = vadd.f32 0.0, %v2710
      %v2712 = vpop.f32.mrf.mxu0
      %v2713 = vadd.f32 0.0, %v2712
      %2714 = vdwg.mxu0
      %v2715 = vadd.f32 %v2374, %v2626
      %v2716 = vadd.f32 %v2375, %v2628
      %v2717 = vadd.f32 %v2376, %v2631
      %v2718 = vadd.f32 %v2377, %v2633
      %v2719 = vadd.f32 %v2378, %v2636
      %v2720 = vadd.f32 %v2379, %v2638
      %v2721 = vadd.f32 %v2380, %v2641
      %v2722 = vadd.f32 %v2381, %v2643
      %v2723 = vadd.f32 %v2382, %v2646
      %v2724 = vadd.f32 %v2383, %v2648
      %v2725 = vadd.f32 %v2384, %v2651
      %v2726 = vadd.f32 %v2385, %v2653
      %v2727 = vadd.f32 %v2386, %v2656
      %v2728 = vadd.f32 %v2387, %v2658
      %v2729 = vadd.f32 %v2388, %v2661
      %v2730 = vadd.f32 %v2389, %v2663
      %v2731 = vadd.f32 %v2390, %v2666
      %v2732 = vadd.f32 %v2391, %v2668
      %v2733 = vadd.f32 %v2392, %v2671
      %v2734 = vadd.f32 %v2393, %v2673
      %v2735 = vadd.f32 %v2394, %v2676
      %v2736 = vadd.f32 %v2395, %v2678
      %v2737 = vadd.f32 %v2396, %v2681
      %v2738 = vadd.f32 %v2397, %v2683
      %v2739 = vadd.f32 %v2398, %v2686
      %v2740 = vadd.f32 %v2399, %v2688
      %v2741 = vadd.f32 %v2400, %v2691
      %v2742 = vadd.f32 %v2401, %v2693
      %v2743 = vadd.f32 %v2402, %v2696
      %v2744 = vadd.f32 %v2403, %v2698
      %v2745 = vadd.f32 %v2404, %v2701
      %v2746 = vadd.f32 %v2405, %v2703
      %v2747 = vadd.f32 %v2406, %v2706
      %v2748 = vadd.f32 %v2407, %v2708
      %v2749 = vadd.f32 %v2408, %v2711
      %v2750 = vadd.f32 %v2409, %v2713
      %v2755 = vunpack.c.l.b16 %v2450
      %v2756 = vunpack.c.l.b16 %v2451
      %v2757 = vunpack.c.l.b16 %v2452
      %v2758 = vunpack.c.l.b16 %v2453
      %v2759 = vpack.c.b16 %v2756, %v2755
      %v2760 = vpack.c.b16 %v2758, %v2757
      %v2765 = vunpack.c.l.b16 %v1779
      %v2766 = vunpack.c.l.b16 %v1780
      %v2767 = vunpack.c.l.b16 %v1781
      %v2768 = vunpack.c.l.b16 %v1782
      %v2769 = vpack.c.b16 %v2766, %v2765
      %v2770 = vpack.c.b16 %v2768, %v2767
      %v2773 = vsel %vm1958, %v2759, 0
      %v2776 = vsel %vm1958, %v2760, 0
      %v2779 = vsel %vm2013, %v2770, 0
      %2781 = vmatpush.bf16.msra.mxu0 0
      %2782 = vmatpush.bf16.msra.mxu0 0
      %2783 = vmatpush.bf16.msra.mxu0 0
      %2784 = vmatpush.bf16.msra.mxu0 0
      %2785 = vmatpush.bf16.msra.mxu0 0
      %2786 = vmatpush.bf16.msra.mxu0 0
      %2787 = vmatpush.bf16.msra.mxu0 %v2779
      %2788 = vmatpush.bf16.msra.mxu0 %v2769
      %2789 = vmatmul.bf16.gmra.mxu0 %v2566
      %v2790 = vpop.f32.mrf.mxu0
      %v2791 = vadd.f32 0.0, %v2790
      %v2792 = vpop.f32.mrf.mxu0
      %v2793 = vadd.f32 0.0, %v2792
      %2794 = vmatmul.bf16.gmra.mxu0 %v2569
      %v2795 = vpop.f32.mrf.mxu0
      %v2796 = vadd.f32 0.0, %v2795
      %v2797 = vpop.f32.mrf.mxu0
      %v2798 = vadd.f32 0.0, %v2797
      %2799 = vmatmul.bf16.gmra.mxu0 %v2572
      %v2800 = vpop.f32.mrf.mxu0
      %v2801 = vadd.f32 0.0, %v2800
      %v2802 = vpop.f32.mrf.mxu0
      %v2803 = vadd.f32 0.0, %v2802
      %2804 = vmatmul.bf16.gmra.mxu0 %v2575
      %v2805 = vpop.f32.mrf.mxu0
      %v2806 = vadd.f32 0.0, %v2805
      %v2807 = vpop.f32.mrf.mxu0
      %v2808 = vadd.f32 0.0, %v2807
      %2809 = vmatmul.bf16.gmra.mxu0 %v2578
      %v2810 = vpop.f32.mrf.mxu0
      %v2811 = vadd.f32 0.0, %v2810
      %v2812 = vpop.f32.mrf.mxu0
      %v2813 = vadd.f32 0.0, %v2812
      %2814 = vmatmul.bf16.gmra.mxu0 %v2581
      %v2815 = vpop.f32.mrf.mxu0
      %v2816 = vadd.f32 0.0, %v2815
      %v2817 = vpop.f32.mrf.mxu0
      %v2818 = vadd.f32 0.0, %v2817
      %2819 = vmatmul.bf16.gmra.mxu0 %v2584
      %v2820 = vpop.f32.mrf.mxu0
      %v2821 = vadd.f32 0.0, %v2820
      %v2822 = vpop.f32.mrf.mxu0
      %v2823 = vadd.f32 0.0, %v2822
      %2824 = vmatmul.bf16.gmra.mxu0 %v2587
      %v2825 = vpop.f32.mrf.mxu0
      %v2826 = vadd.f32 0.0, %v2825
      %v2827 = vpop.f32.mrf.mxu0
      %v2828 = vadd.f32 0.0, %v2827
      %2829 = vmatmul.bf16.gmra.mxu0 %v2590
      %v2830 = vpop.f32.mrf.mxu0
      %v2831 = vadd.f32 0.0, %v2830
      %v2832 = vpop.f32.mrf.mxu0
      %v2833 = vadd.f32 0.0, %v2832
      %2834 = vmatmul.bf16.gmra.mxu0 %v2593
      %v2835 = vpop.f32.mrf.mxu0
      %v2836 = vadd.f32 0.0, %v2835
      %v2837 = vpop.f32.mrf.mxu0
      %v2838 = vadd.f32 0.0, %v2837
      %2839 = vmatmul.bf16.gmra.mxu0 %v2596
      %v2840 = vpop.f32.mrf.mxu0
      %v2841 = vadd.f32 0.0, %v2840
      %v2842 = vpop.f32.mrf.mxu0
      %v2843 = vadd.f32 0.0, %v2842
      %2844 = vmatmul.bf16.gmra.mxu0 %v2599
      %v2845 = vpop.f32.mrf.mxu0
      %v2846 = vadd.f32 0.0, %v2845
      %v2847 = vpop.f32.mrf.mxu0
      %v2848 = vadd.f32 0.0, %v2847
      %2849 = vmatmul.bf16.gmra.mxu0 %v2602
      %v2850 = vpop.f32.mrf.mxu0
      %v2851 = vadd.f32 0.0, %v2850
      %v2852 = vpop.f32.mrf.mxu0
      %v2853 = vadd.f32 0.0, %v2852
      %2854 = vmatmul.bf16.gmra.mxu0 %v2605
      %v2855 = vpop.f32.mrf.mxu0
      %v2856 = vadd.f32 0.0, %v2855
      %v2857 = vpop.f32.mrf.mxu0
      %v2858 = vadd.f32 0.0, %v2857
      %2859 = vmatmul.bf16.gmra.mxu0 %v2608
      %v2860 = vpop.f32.mrf.mxu0
      %v2861 = vadd.f32 0.0, %v2860
      %v2862 = vpop.f32.mrf.mxu0
      %v2863 = vadd.f32 0.0, %v2862
      %2864 = vmatmul.bf16.gmra.mxu0 %v2611
      %v2865 = vpop.f32.mrf.mxu0
      %v2866 = vadd.f32 0.0, %v2865
      %v2867 = vpop.f32.mrf.mxu0
      %v2868 = vadd.f32 0.0, %v2867
      %2869 = vmatmul.bf16.gmra.mxu0 %v2773
      %v2870 = vpop.f32.mrf.mxu0
      %v2871 = vadd.f32 0.0, %v2870
      %v2872 = vpop.f32.mrf.mxu0
      %v2873 = vadd.f32 0.0, %v2872
      %2874 = vmatmul.bf16.gmra.mxu0 %v2776
      %v2875 = vpop.f32.mrf.mxu0
      %v2876 = vadd.f32 0.0, %v2875
      %v2877 = vpop.f32.mrf.mxu0
      %v2878 = vadd.f32 0.0, %v2877
      %2879 = vdwg.mxu0
      %v2880 = vadd.f32 %v2715, %v2791
      %v2881 = vadd.f32 %v2716, %v2793
      %v2882 = vadd.f32 %v2717, %v2796
      %v2883 = vadd.f32 %v2718, %v2798
      %v2884 = vadd.f32 %v2719, %v2801
      %v2885 = vadd.f32 %v2720, %v2803
      %v2886 = vadd.f32 %v2721, %v2806
      %v2887 = vadd.f32 %v2722, %v2808
      %v2888 = vadd.f32 %v2723, %v2811
      %v2889 = vadd.f32 %v2724, %v2813
      %v2890 = vadd.f32 %v2725, %v2816
      %v2891 = vadd.f32 %v2726, %v2818
      %v2892 = vadd.f32 %v2727, %v2821
      %v2893 = vadd.f32 %v2728, %v2823
      %v2894 = vadd.f32 %v2729, %v2826
      %v2895 = vadd.f32 %v2730, %v2828
      %v2896 = vadd.f32 %v2731, %v2831
      %v2897 = vadd.f32 %v2732, %v2833
      %v2898 = vadd.f32 %v2733, %v2836
      %v2899 = vadd.f32 %v2734, %v2838
      %v2900 = vadd.f32 %v2735, %v2841
      %v2901 = vadd.f32 %v2736, %v2843
      %v2902 = vadd.f32 %v2737, %v2846
      %v2903 = vadd.f32 %v2738, %v2848
      %v2904 = vadd.f32 %v2739, %v2851
      %v2905 = vadd.f32 %v2740, %v2853
      %v2906 = vadd.f32 %v2741, %v2856
      %v2907 = vadd.f32 %v2742, %v2858
      %v2908 = vadd.f32 %v2743, %v2861
      %v2909 = vadd.f32 %v2744, %v2863
      %v2910 = vadd.f32 %v2745, %v2866
      %v2911 = vadd.f32 %v2746, %v2868
      %v2912 = vadd.f32 %v2747, %v2871
      %v2913 = vadd.f32 %v2748, %v2873
      %v2914 = vadd.f32 %v2749, %v2876
      %v2915 = vadd.f32 %v2750, %v2878
      %v2920 = vunpack.c.l.b16 %v2454
      %v2921 = vunpack.c.l.b16 %v2455
      %v2922 = vunpack.c.l.b16 %v2456
      %v2923 = vunpack.c.l.b16 %v2457
      %v2924 = vpack.c.b16 %v2921, %v2920
      %v2925 = vpack.c.b16 %v2923, %v2922
      %v2930 = vunpack.c.l.b16 %v1784
      %v2931 = vunpack.c.l.b16 %v1785
      %v2932 = vunpack.c.l.b16 %v1786
      %v2933 = vunpack.c.l.b16 %v1787
      %v2934 = vpack.c.b16 %v2931, %v2930
      %v2935 = vpack.c.b16 %v2933, %v2932
      %v2938 = vsel %vm1958, %v2924, 0
      %v2941 = vsel %vm1958, %v2925, 0
      %v2944 = vsel %vm2013, %v2935, 0
      %2946 = vmatpush.bf16.msra.mxu0 0
      %2947 = vmatpush.bf16.msra.mxu0 0
      %2948 = vmatpush.bf16.msra.mxu0 0
      %2949 = vmatpush.bf16.msra.mxu0 0
      %2950 = vmatpush.bf16.msra.mxu0 0
      %2951 = vmatpush.bf16.msra.mxu0 0
      %2952 = vmatpush.bf16.msra.mxu0 %v2944
      %2953 = vmatpush.bf16.msra.mxu0 %v2934
      %2954 = vmatmul.bf16.gmra.mxu0 %v2572
      %v2955 = vpop.f32.mrf.mxu0
      %v2956 = vadd.f32 0.0, %v2955
      %v2957 = vpop.f32.mrf.mxu0
      %v2958 = vadd.f32 0.0, %v2957
      %2959 = vmatmul.bf16.gmra.mxu0 %v2575
      %v2960 = vpop.f32.mrf.mxu0
      %v2961 = vadd.f32 0.0, %v2960
      %v2962 = vpop.f32.mrf.mxu0
      %v2963 = vadd.f32 0.0, %v2962
      %2964 = vmatmul.bf16.gmra.mxu0 %v2578
      %v2965 = vpop.f32.mrf.mxu0
      %v2966 = vadd.f32 0.0, %v2965
      %v2967 = vpop.f32.mrf.mxu0
      %v2968 = vadd.f32 0.0, %v2967
      %2969 = vmatmul.bf16.gmra.mxu0 %v2581
      %v2970 = vpop.f32.mrf.mxu0
      %v2971 = vadd.f32 0.0, %v2970
      %v2972 = vpop.f32.mrf.mxu0
      %v2973 = vadd.f32 0.0, %v2972
      %2974 = vmatmul.bf16.gmra.mxu0 %v2584
      %v2975 = vpop.f32.mrf.mxu0
      %v2976 = vadd.f32 0.0, %v2975
      %v2977 = vpop.f32.mrf.mxu0
      %v2978 = vadd.f32 0.0, %v2977
      %2979 = vmatmul.bf16.gmra.mxu0 %v2587
      %v2980 = vpop.f32.mrf.mxu0
      %v2981 = vadd.f32 0.0, %v2980
      %v2982 = vpop.f32.mrf.mxu0
      %v2983 = vadd.f32 0.0, %v2982
      %2984 = vmatmul.bf16.gmra.mxu0 %v2590
      %v2985 = vpop.f32.mrf.mxu0
      %v2986 = vadd.f32 0.0, %v2985
      %v2987 = vpop.f32.mrf.mxu0
      %v2988 = vadd.f32 0.0, %v2987
      %2989 = vmatmul.bf16.gmra.mxu0 %v2593
      %v2990 = vpop.f32.mrf.mxu0
      %v2991 = vadd.f32 0.0, %v2990
      %v2992 = vpop.f32.mrf.mxu0
      %v2993 = vadd.f32 0.0, %v2992
      %2994 = vmatmul.bf16.gmra.mxu0 %v2596
      %v2995 = vpop.f32.mrf.mxu0
      %v2996 = vadd.f32 0.0, %v2995
      %v2997 = vpop.f32.mrf.mxu0
      %v2998 = vadd.f32 0.0, %v2997
      %2999 = vmatmul.bf16.gmra.mxu0 %v2599
      %v3000 = vpop.f32.mrf.mxu0
      %v3001 = vadd.f32 0.0, %v3000
      %v3002 = vpop.f32.mrf.mxu0
      %v3003 = vadd.f32 0.0, %v3002
      %3004 = vmatmul.bf16.gmra.mxu0 %v2602
      %v3005 = vpop.f32.mrf.mxu0
      %v3006 = vadd.f32 0.0, %v3005
      %v3007 = vpop.f32.mrf.mxu0
      %v3008 = vadd.f32 0.0, %v3007
      %3009 = vmatmul.bf16.gmra.mxu0 %v2605
      %v3010 = vpop.f32.mrf.mxu0
      %v3011 = vadd.f32 0.0, %v3010
      %v3012 = vpop.f32.mrf.mxu0
      %v3013 = vadd.f32 0.0, %v3012
      %3014 = vmatmul.bf16.gmra.mxu0 %v2608
      %v3015 = vpop.f32.mrf.mxu0
      %v3016 = vadd.f32 0.0, %v3015
      %v3017 = vpop.f32.mrf.mxu0
      %v3018 = vadd.f32 0.0, %v3017
      %3019 = vmatmul.bf16.gmra.mxu0 %v2611
      %v3020 = vpop.f32.mrf.mxu0
      %v3021 = vadd.f32 0.0, %v3020
      %v3022 = vpop.f32.mrf.mxu0
      %v3023 = vadd.f32 0.0, %v3022
      %3024 = vmatmul.bf16.gmra.mxu0 %v2773
      %v3025 = vpop.f32.mrf.mxu0
      %v3026 = vadd.f32 0.0, %v3025
      %v3027 = vpop.f32.mrf.mxu0
      %v3028 = vadd.f32 0.0, %v3027
      %3029 = vmatmul.bf16.gmra.mxu0 %v2776
      %v3030 = vpop.f32.mrf.mxu0
      %v3031 = vadd.f32 0.0, %v3030
      %v3032 = vpop.f32.mrf.mxu0
      %v3033 = vadd.f32 0.0, %v3032
      %3034 = vmatmul.bf16.gmra.mxu0 %v2938
      %v3035 = vpop.f32.mrf.mxu0
      %v3036 = vadd.f32 0.0, %v3035
      %v3037 = vpop.f32.mrf.mxu0
      %v3038 = vadd.f32 0.0, %v3037
      %3039 = vmatmul.bf16.gmra.mxu0 %v2941
      %v3040 = vpop.f32.mrf.mxu0
      %v3041 = vadd.f32 0.0, %v3040
      %v3042 = vpop.f32.mrf.mxu0
      %v3043 = vadd.f32 0.0, %v3042
      %3044 = vdwg.mxu0
      %v3045 = vadd.f32 %v2880, %v2956
      %v3046 = vadd.f32 %v2881, %v2958
      %v3047 = vadd.f32 %v2882, %v2961
      %v3048 = vadd.f32 %v2883, %v2963
      %v3049 = vadd.f32 %v2884, %v2966
      %v3050 = vadd.f32 %v2885, %v2968
      %v3051 = vadd.f32 %v2886, %v2971
      %v3052 = vadd.f32 %v2887, %v2973
      %v3053 = vadd.f32 %v2888, %v2976
      %v3054 = vadd.f32 %v2889, %v2978
      %v3055 = vadd.f32 %v2890, %v2981
      %v3056 = vadd.f32 %v2891, %v2983
      %v3057 = vadd.f32 %v2892, %v2986
      %v3058 = vadd.f32 %v2893, %v2988
      %v3059 = vadd.f32 %v2894, %v2991
      %v3060 = vadd.f32 %v2895, %v2993
      %v3061 = vadd.f32 %v2896, %v2996
      %v3062 = vadd.f32 %v2897, %v2998
      %v3063 = vadd.f32 %v2898, %v3001
      %v3064 = vadd.f32 %v2899, %v3003
      %v3065 = vadd.f32 %v2900, %v3006
      %v3066 = vadd.f32 %v2901, %v3008
      %v3067 = vadd.f32 %v2902, %v3011
      %v3068 = vadd.f32 %v2903, %v3013
      %v3069 = vadd.f32 %v2904, %v3016
      %v3070 = vadd.f32 %v2905, %v3018
      %v3071 = vadd.f32 %v2906, %v3021
      %v3072 = vadd.f32 %v2907, %v3023
      %v3073 = vadd.f32 %v2908, %v3026
      %v3074 = vadd.f32 %v2909, %v3028
      %v3075 = vadd.f32 %v2910, %v3031
      %v3076 = vadd.f32 %v2911, %v3033
      %v3077 = vadd.f32 %v2912, %v3036
      %v3078 = vadd.f32 %v2913, %v3038
      %v3079 = vadd.f32 %v2914, %v3041
      %v3080 = vadd.f32 %v2915, %v3043
      %s3081 = sadd.s32 %s1805, 2
      %s3082 = smul.u32 %s3081, 44
      %s3083 = smul.addr %s3082, 4
      %s3084 = scalar_lea.vmem [#allocation3], %s3083
      %v3085 = vld [vmem:[%s3084] sm:$0xf]
      %v3086 = vld [vmem:[%s3084 + $0x4] sm:$0xf]
      %v3087 = vld [vmem:[%s3084 + $0x8] sm:$0xf]
      %v3088 = vld [vmem:[%s3084 + $0xc] sm:$0xf]
      %v3089 = vld [vmem:[%s3084 + $0x10] sm:$0xf]
      %v3090 = vld [vmem:[%s3084 + $0x14] sm:$0xf]
      %v3091 = vld [vmem:[%s3084 + $0x18] sm:$0xf]
      %v3092 = vld [vmem:[%s3084 + $0x1c] sm:$0xf]
      %v3093 = vld [vmem:[%s3084 + $0x20] sm:$0xf]
      %v3094 = vld [vmem:[%s3084 + $0x24] sm:$0xf]
      %v3095 = vld [vmem:[%s3084 + $0x28] sm:$0xf]
      %v3096 = vld [vmem:[%s3084 + $0x2c] sm:$0xf]
      %v3097 = vld [vmem:[%s3084 + $0x30] sm:$0xf]
      %v3098 = vld [vmem:[%s3084 + $0x34] sm:$0xf]
      %v3099 = vld [vmem:[%s3084 + $0x38] sm:$0xf]
      %v3100 = vld [vmem:[%s3084 + $0x3c] sm:$0xf]
      %v3101 = vld [vmem:[%s3084 + $0x40] sm:$0xf]
      %v3102 = vld [vmem:[%s3084 + $0x44] sm:$0xf]
      %v3103 = vld [vmem:[%s3084 + $0x48] sm:$0xf]
      %v3104 = vld [vmem:[%s3084 + $0x4c] sm:$0xf]
      %v3105 = vld [vmem:[%s3084 + $0x50] sm:$0xf]
      %v3106 = vld [vmem:[%s3084 + $0x54] sm:$0xf]
      %v3107 = vld [vmem:[%s3084 + $0x58] sm:$0xf]
      %v3108 = vld [vmem:[%s3084 + $0x5c] sm:$0xf]
      %v3109 = vld [vmem:[%s3084 + $0x60] sm:$0xf]
      %v3110 = vld [vmem:[%s3084 + $0x64] sm:$0xf]
      %v3111 = vld [vmem:[%s3084 + $0x68] sm:$0xf]
      %v3112 = vld [vmem:[%s3084 + $0x6c] sm:$0xf]
      %v3113 = vld [vmem:[%s3084 + $0x70] sm:$0xf]
      %v3114 = vld [vmem:[%s3084 + $0x74] sm:$0xf]
      %v3115 = vld [vmem:[%s3084 + $0x78] sm:$0xf]
      %v3116 = vld [vmem:[%s3084 + $0x7c] sm:$0xf]
      %v3117 = vld [vmem:[%s3084 + $0x80] sm:$0xf]
      %v3118 = vld [vmem:[%s3084 + $0x84] sm:$0xf]
      %v3119 = vld [vmem:[%s3084 + $0x88] sm:$0xf]
      %v3120 = vld [vmem:[%s3084 + $0x8c] sm:$0xf]
      %v3121 = vld [vmem:[%s3084 + $0x90] sm:$0xf]
      %v3122 = vld [vmem:[%s3084 + $0x94] sm:$0xf]
      %v3123 = vld [vmem:[%s3084 + $0x98] sm:$0xf]
      %v3124 = vld [vmem:[%s3084 + $0x9c] sm:$0xf]
      %v3125 = vld [vmem:[%s3084 + $0xa0] sm:$0xf]
      %v3126 = vld [vmem:[%s3084 + $0xa4] sm:$0xf]
      %v3127 = vld [vmem:[%s3084 + $0xa8] sm:$0xf]
      %v3128 = vld [vmem:[%s3084 + $0xac] sm:$0xf]
      %v3165 = vunpack.c.l.b16 %v3085
      %v3166 = vunpack.c.l.b16 %v3086
      %v3167 = vunpack.c.l.b16 %v3087
      %v3168 = vunpack.c.l.b16 %v3088
      %v3169 = vunpack.c.l.b16 %v3089
      %v3170 = vunpack.c.l.b16 %v3090
      %v3171 = vunpack.c.l.b16 %v3091
      %v3172 = vunpack.c.l.b16 %v3092
      %v3173 = vunpack.c.l.b16 %v3093
      %v3174 = vunpack.c.l.b16 %v3094
      %v3175 = vunpack.c.l.b16 %v3095
      %v3176 = vunpack.c.l.b16 %v3096
      %v3177 = vunpack.c.l.b16 %v3097
      %v3178 = vunpack.c.l.b16 %v3098
      %v3179 = vunpack.c.l.b16 %v3099
      %v3180 = vunpack.c.l.b16 %v3100
      %v3181 = vunpack.c.l.b16 %v3101
      %v3182 = vunpack.c.l.b16 %v3102
      %v3183 = vunpack.c.l.b16 %v3103
      %v3184 = vunpack.c.l.b16 %v3104
      %v3185 = vunpack.c.l.b16 %v3105
      %v3186 = vunpack.c.l.b16 %v3106
      %v3187 = vunpack.c.l.b16 %v3107
      %v3188 = vunpack.c.l.b16 %v3108
      %v3189 = vunpack.c.l.b16 %v3109
      %v3190 = vunpack.c.l.b16 %v3110
      %v3191 = vunpack.c.l.b16 %v3111
      %v3192 = vunpack.c.l.b16 %v3112
      %v3193 = vunpack.c.l.b16 %v3113
      %v3194 = vunpack.c.l.b16 %v3114
      %v3195 = vunpack.c.l.b16 %v3115
      %v3196 = vunpack.c.l.b16 %v3116
      %v3197 = vunpack.c.l.b16 %v3117
      %v3198 = vunpack.c.l.b16 %v3118
      %v3199 = vunpack.c.l.b16 %v3119
      %v3200 = vunpack.c.l.b16 %v3120
      %v3201 = vpack.c.b16 %v3166, %v3165
      %v3202 = vpack.c.b16 %v3168, %v3167
      %v3203 = vpack.c.b16 %v3170, %v3169
      %v3204 = vpack.c.b16 %v3172, %v3171
      %v3205 = vpack.c.b16 %v3174, %v3173
      %v3206 = vpack.c.b16 %v3176, %v3175
      %v3207 = vpack.c.b16 %v3178, %v3177
      %v3208 = vpack.c.b16 %v3180, %v3179
      %v3209 = vpack.c.b16 %v3182, %v3181
      %v3210 = vpack.c.b16 %v3184, %v3183
      %v3211 = vpack.c.b16 %v3186, %v3185
      %v3212 = vpack.c.b16 %v3188, %v3187
      %v3213 = vpack.c.b16 %v3190, %v3189
      %v3214 = vpack.c.b16 %v3192, %v3191
      %v3215 = vpack.c.b16 %v3194, %v3193
      %v3216 = vpack.c.b16 %v3196, %v3195
      %v3217 = vpack.c.b16 %v3198, %v3197
      %v3218 = vpack.c.b16 %v3200, %v3199
      %v3223 = vunpack.c.l.b16 %v1789
      %v3224 = vunpack.c.l.b16 %v1790
      %v3225 = vunpack.c.l.b16 %v1791
      %v3226 = vunpack.c.l.b16 %v1792
      %v3227 = vpack.c.b16 %v3224, %v3223
      %v3228 = vpack.c.b16 %v3226, %v3225
      %v3231 = vsel %vm1958, %v3201, 0
      %v3234 = vsel %vm1958, %v3202, 0
      %v3237 = vsel %vm1958, %v3203, 0
      %v3240 = vsel %vm1958, %v3204, 0
      %v3243 = vsel %vm1958, %v3205, 0
      %v3246 = vsel %vm1958, %v3206, 0
      %v3249 = vsel %vm1958, %v3207, 0
      %v3252 = vsel %vm1958, %v3208, 0
      %v3255 = vsel %vm1958, %v3209, 0
      %v3258 = vsel %vm1958, %v3210, 0
      %v3261 = vsel %vm1958, %v3211, 0
      %v3264 = vsel %vm1958, %v3212, 0
      %v3267 = vsel %vm1958, %v3213, 0
      %v3270 = vsel %vm1958, %v3214, 0
      %v3273 = vsel %vm1958, %v3215, 0
      %v3276 = vsel %vm1958, %v3216, 0
      %v3279 = vsel %vm1958, %v3217, 0
      %v3282 = vsel %vm1958, %v3218, 0
      %v3285 = vsel %vm2013, %v3228, 0
      %3287 = vmatpush.bf16.msra.mxu0 0
      %3288 = vmatpush.bf16.msra.mxu0 0
      %3289 = vmatpush.bf16.msra.mxu0 0
      %3290 = vmatpush.bf16.msra.mxu0 0
      %3291 = vmatpush.bf16.msra.mxu0 0
      %3292 = vmatpush.bf16.msra.mxu0 0
      %3293 = vmatpush.bf16.msra.mxu0 %v3285
      %3294 = vmatpush.bf16.msra.mxu0 %v3227
      %3295 = vmatmul.bf16.gmra.mxu0 %v3231
      %v3296 = vpop.f32.mrf.mxu0
      %v3297 = vadd.f32 0.0, %v3296
      %v3298 = vpop.f32.mrf.mxu0
      %v3299 = vadd.f32 0.0, %v3298
      %3300 = vmatmul.bf16.gmra.mxu0 %v3234
      %v3301 = vpop.f32.mrf.mxu0
      %v3302 = vadd.f32 0.0, %v3301
      %v3303 = vpop.f32.mrf.mxu0
      %v3304 = vadd.f32 0.0, %v3303
      %3305 = vmatmul.bf16.gmra.mxu0 %v3237
      %v3306 = vpop.f32.mrf.mxu0
      %v3307 = vadd.f32 0.0, %v3306
      %v3308 = vpop.f32.mrf.mxu0
      %v3309 = vadd.f32 0.0, %v3308
      %3310 = vmatmul.bf16.gmra.mxu0 %v3240
      %v3311 = vpop.f32.mrf.mxu0
      %v3312 = vadd.f32 0.0, %v3311
      %v3313 = vpop.f32.mrf.mxu0
      %v3314 = vadd.f32 0.0, %v3313
      %3315 = vmatmul.bf16.gmra.mxu0 %v3243
      %v3316 = vpop.f32.mrf.mxu0
      %v3317 = vadd.f32 0.0, %v3316
      %v3318 = vpop.f32.mrf.mxu0
      %v3319 = vadd.f32 0.0, %v3318
      %3320 = vmatmul.bf16.gmra.mxu0 %v3246
      %v3321 = vpop.f32.mrf.mxu0
      %v3322 = vadd.f32 0.0, %v3321
      %v3323 = vpop.f32.mrf.mxu0
      %v3324 = vadd.f32 0.0, %v3323
      %3325 = vmatmul.bf16.gmra.mxu0 %v3249
      %v3326 = vpop.f32.mrf.mxu0
      %v3327 = vadd.f32 0.0, %v3326
      %v3328 = vpop.f32.mrf.mxu0
      %v3329 = vadd.f32 0.0, %v3328
      %3330 = vmatmul.bf16.gmra.mxu0 %v3252
      %v3331 = vpop.f32.mrf.mxu0
      %v3332 = vadd.f32 0.0, %v3331
      %v3333 = vpop.f32.mrf.mxu0
      %v3334 = vadd.f32 0.0, %v3333
      %3335 = vmatmul.bf16.gmra.mxu0 %v3255
      %v3336 = vpop.f32.mrf.mxu0
      %v3337 = vadd.f32 0.0, %v3336
      %v3338 = vpop.f32.mrf.mxu0
      %v3339 = vadd.f32 0.0, %v3338
      %3340 = vmatmul.bf16.gmra.mxu0 %v3258
      %v3341 = vpop.f32.mrf.mxu0
      %v3342 = vadd.f32 0.0, %v3341
      %v3343 = vpop.f32.mrf.mxu0
      %v3344 = vadd.f32 0.0, %v3343
      %3345 = vmatmul.bf16.gmra.mxu0 %v3261
      %v3346 = vpop.f32.mrf.mxu0
      %v3347 = vadd.f32 0.0, %v3346
      %v3348 = vpop.f32.mrf.mxu0
      %v3349 = vadd.f32 0.0, %v3348
      %3350 = vmatmul.bf16.gmra.mxu0 %v3264
      %v3351 = vpop.f32.mrf.mxu0
      %v3352 = vadd.f32 0.0, %v3351
      %v3353 = vpop.f32.mrf.mxu0
      %v3354 = vadd.f32 0.0, %v3353
      %3355 = vmatmul.bf16.gmra.mxu0 %v3267
      %v3356 = vpop.f32.mrf.mxu0
      %v3357 = vadd.f32 0.0, %v3356
      %v3358 = vpop.f32.mrf.mxu0
      %v3359 = vadd.f32 0.0, %v3358
      %3360 = vmatmul.bf16.gmra.mxu0 %v3270
      %v3361 = vpop.f32.mrf.mxu0
      %v3362 = vadd.f32 0.0, %v3361
      %v3363 = vpop.f32.mrf.mxu0
      %v3364 = vadd.f32 0.0, %v3363
      %3365 = vmatmul.bf16.gmra.mxu0 %v3273
      %v3366 = vpop.f32.mrf.mxu0
      %v3367 = vadd.f32 0.0, %v3366
      %v3368 = vpop.f32.mrf.mxu0
      %v3369 = vadd.f32 0.0, %v3368
      %3370 = vmatmul.bf16.gmra.mxu0 %v3276
      %v3371 = vpop.f32.mrf.mxu0
      %v3372 = vadd.f32 0.0, %v3371
      %v3373 = vpop.f32.mrf.mxu0
      %v3374 = vadd.f32 0.0, %v3373
      %3375 = vmatmul.bf16.gmra.mxu0 %v3279
      %v3376 = vpop.f32.mrf.mxu0
      %v3377 = vadd.f32 0.0, %v3376
      %v3378 = vpop.f32.mrf.mxu0
      %v3379 = vadd.f32 0.0, %v3378
      %3380 = vmatmul.bf16.gmra.mxu0 %v3282
      %v3381 = vpop.f32.mrf.mxu0
      %v3382 = vadd.f32 0.0, %v3381
      %v3383 = vpop.f32.mrf.mxu0
      %v3384 = vadd.f32 0.0, %v3383
      %3385 = vdwg.mxu0
      %v3386 = vadd.f32 %v3045, %v3297
      %v3387 = vadd.f32 %v3046, %v3299
      %v3388 = vadd.f32 %v3047, %v3302
      %v3389 = vadd.f32 %v3048, %v3304
      %v3390 = vadd.f32 %v3049, %v3307
      %v3391 = vadd.f32 %v3050, %v3309
      %v3392 = vadd.f32 %v3051, %v3312
      %v3393 = vadd.f32 %v3052, %v3314
      %v3394 = vadd.f32 %v3053, %v3317
      %v3395 = vadd.f32 %v3054, %v3319
      %v3396 = vadd.f32 %v3055, %v3322
      %v3397 = vadd.f32 %v3056, %v3324
      %v3398 = vadd.f32 %v3057, %v3327
      %v3399 = vadd.f32 %v3058, %v3329
      %v3400 = vadd.f32 %v3059, %v3332
      %v3401 = vadd.f32 %v3060, %v3334
      %v3402 = vadd.f32 %v3061, %v3337
      %v3403 = vadd.f32 %v3062, %v3339
      %v3404 = vadd.f32 %v3063, %v3342
      %v3405 = vadd.f32 %v3064, %v3344
      %v3406 = vadd.f32 %v3065, %v3347
      %v3407 = vadd.f32 %v3066, %v3349
      %v3408 = vadd.f32 %v3067, %v3352
      %v3409 = vadd.f32 %v3068, %v3354
      %v3410 = vadd.f32 %v3069, %v3357
      %v3411 = vadd.f32 %v3070, %v3359
      %v3412 = vadd.f32 %v3071, %v3362
      %v3413 = vadd.f32 %v3072, %v3364
      %v3414 = vadd.f32 %v3073, %v3367
      %v3415 = vadd.f32 %v3074, %v3369
      %v3416 = vadd.f32 %v3075, %v3372
      %v3417 = vadd.f32 %v3076, %v3374
      %v3418 = vadd.f32 %v3077, %v3377
      %v3419 = vadd.f32 %v3078, %v3379
      %v3420 = vadd.f32 %v3079, %v3382
      %v3421 = vadd.f32 %v3080, %v3384
      %v3426 = vunpack.c.l.b16 %v3121
      %v3427 = vunpack.c.l.b16 %v3122
      %v3428 = vunpack.c.l.b16 %v3123
      %v3429 = vunpack.c.l.b16 %v3124
      %v3430 = vpack.c.b16 %v3427, %v3426
      %v3431 = vpack.c.b16 %v3429, %v3428
      %v3436 = vunpack.c.l.b16 %v1794
      %v3437 = vunpack.c.l.b16 %v1795
      %v3438 = vunpack.c.l.b16 %v1796
      %v3439 = vunpack.c.l.b16 %v1797
      %v3440 = vpack.c.b16 %v3437, %v3436
      %v3441 = vpack.c.b16 %v3439, %v3438
      %v3444 = vsel %vm1958, %v3430, 0
      %v3447 = vsel %vm1958, %v3431, 0
      %v3450 = vsel %vm2013, %v3441, 0
      %3452 = vmatpush.bf16.msra.mxu0 0
      %3453 = vmatpush.bf16.msra.mxu0 0
      %3454 = vmatpush.bf16.msra.mxu0 0
      %3455 = vmatpush.bf16.msra.mxu0 0
      %3456 = vmatpush.bf16.msra.mxu0 0
      %3457 = vmatpush.bf16.msra.mxu0 0
      %3458 = vmatpush.bf16.msra.mxu0 %v3450
      %3459 = vmatpush.bf16.msra.mxu0 %v3440
      %3460 = vmatmul.bf16.gmra.mxu0 %v3237
      %v3461 = vpop.f32.mrf.mxu0
      %v3462 = vadd.f32 0.0, %v3461
      %v3463 = vpop.f32.mrf.mxu0
      %v3464 = vadd.f32 0.0, %v3463
      %3465 = vmatmul.bf16.gmra.mxu0 %v3240
      %v3466 = vpop.f32.mrf.mxu0
      %v3467 = vadd.f32 0.0, %v3466
      %v3468 = vpop.f32.mrf.mxu0
      %v3469 = vadd.f32 0.0, %v3468
      %3470 = vmatmul.bf16.gmra.mxu0 %v3243
      %v3471 = vpop.f32.mrf.mxu0
      %v3472 = vadd.f32 0.0, %v3471
      %v3473 = vpop.f32.mrf.mxu0
      %v3474 = vadd.f32 0.0, %v3473
      %3475 = vmatmul.bf16.gmra.mxu0 %v3246
      %v3476 = vpop.f32.mrf.mxu0
      %v3477 = vadd.f32 0.0, %v3476
      %v3478 = vpop.f32.mrf.mxu0
      %v3479 = vadd.f32 0.0, %v3478
      %3480 = vmatmul.bf16.gmra.mxu0 %v3249
      %v3481 = vpop.f32.mrf.mxu0
      %v3482 = vadd.f32 0.0, %v3481
      %v3483 = vpop.f32.mrf.mxu0
      %v3484 = vadd.f32 0.0, %v3483
      %3485 = vmatmul.bf16.gmra.mxu0 %v3252
      %v3486 = vpop.f32.mrf.mxu0
      %v3487 = vadd.f32 0.0, %v3486
      %v3488 = vpop.f32.mrf.mxu0
      %v3489 = vadd.f32 0.0, %v3488
      %3490 = vmatmul.bf16.gmra.mxu0 %v3255
      %v3491 = vpop.f32.mrf.mxu0
      %v3492 = vadd.f32 0.0, %v3491
      %v3493 = vpop.f32.mrf.mxu0
      %v3494 = vadd.f32 0.0, %v3493
      %3495 = vmatmul.bf16.gmra.mxu0 %v3258
      %v3496 = vpop.f32.mrf.mxu0
      %v3497 = vadd.f32 0.0, %v3496
      %v3498 = vpop.f32.mrf.mxu0
      %v3499 = vadd.f32 0.0, %v3498
      %3500 = vmatmul.bf16.gmra.mxu0 %v3261
      %v3501 = vpop.f32.mrf.mxu0
      %v3502 = vadd.f32 0.0, %v3501
      %v3503 = vpop.f32.mrf.mxu0
      %v3504 = vadd.f32 0.0, %v3503
      %3505 = vmatmul.bf16.gmra.mxu0 %v3264
      %v3506 = vpop.f32.mrf.mxu0
      %v3507 = vadd.f32 0.0, %v3506
      %v3508 = vpop.f32.mrf.mxu0
      %v3509 = vadd.f32 0.0, %v3508
      %3510 = vmatmul.bf16.gmra.mxu0 %v3267
      %v3511 = vpop.f32.mrf.mxu0
      %v3512 = vadd.f32 0.0, %v3511
      %v3513 = vpop.f32.mrf.mxu0
      %v3514 = vadd.f32 0.0, %v3513
      %3515 = vmatmul.bf16.gmra.mxu0 %v3270
      %v3516 = vpop.f32.mrf.mxu0
      %v3517 = vadd.f32 0.0, %v3516
      %v3518 = vpop.f32.mrf.mxu0
      %v3519 = vadd.f32 0.0, %v3518
      %3520 = vmatmul.bf16.gmra.mxu0 %v3273
      %v3521 = vpop.f32.mrf.mxu0
      %v3522 = vadd.f32 0.0, %v3521
      %v3523 = vpop.f32.mrf.mxu0
      %v3524 = vadd.f32 0.0, %v3523
      %3525 = vmatmul.bf16.gmra.mxu0 %v3276
      %v3526 = vpop.f32.mrf.mxu0
      %v3527 = vadd.f32 0.0, %v3526
      %v3528 = vpop.f32.mrf.mxu0
      %v3529 = vadd.f32 0.0, %v3528
      %3530 = vmatmul.bf16.gmra.mxu0 %v3279
      %v3531 = vpop.f32.mrf.mxu0
      %v3532 = vadd.f32 0.0, %v3531
      %v3533 = vpop.f32.mrf.mxu0
      %v3534 = vadd.f32 0.0, %v3533
      %3535 = vmatmul.bf16.gmra.mxu0 %v3282
      %v3536 = vpop.f32.mrf.mxu0
      %v3537 = vadd.f32 0.0, %v3536
      %v3538 = vpop.f32.mrf.mxu0
      %v3539 = vadd.f32 0.0, %v3538
      %3540 = vmatmul.bf16.gmra.mxu0 %v3444
      %v3541 = vpop.f32.mrf.mxu0
      %v3542 = vadd.f32 0.0, %v3541
      %v3543 = vpop.f32.mrf.mxu0
      %v3544 = vadd.f32 0.0, %v3543
      %3545 = vmatmul.bf16.gmra.mxu0 %v3447
      %v3546 = vpop.f32.mrf.mxu0
      %v3547 = vadd.f32 0.0, %v3546
      %v3548 = vpop.f32.mrf.mxu0
      %v3549 = vadd.f32 0.0, %v3548
      %3550 = vdwg.mxu0
      %v3551 = vadd.f32 %v3386, %v3462
      %v3552 = vadd.f32 %v3387, %v3464
      %v3553 = vadd.f32 %v3388, %v3467
      %v3554 = vadd.f32 %v3389, %v3469
      %v3555 = vadd.f32 %v3390, %v3472
      %v3556 = vadd.f32 %v3391, %v3474
      %v3557 = vadd.f32 %v3392, %v3477
      %v3558 = vadd.f32 %v3393, %v3479
      %v3559 = vadd.f32 %v3394, %v3482
      %v3560 = vadd.f32 %v3395, %v3484
      %v3561 = vadd.f32 %v3396, %v3487
      %v3562 = vadd.f32 %v3397, %v3489
      %v3563 = vadd.f32 %v3398, %v3492
      %v3564 = vadd.f32 %v3399, %v3494
      %v3565 = vadd.f32 %v3400, %v3497
      %v3566 = vadd.f32 %v3401, %v3499
      %v3567 = vadd.f32 %v3402, %v3502
      %v3568 = vadd.f32 %v3403, %v3504
      %v3569 = vadd.f32 %v3404, %v3507
      %v3570 = vadd.f32 %v3405, %v3509
      %v3571 = vadd.f32 %v3406, %v3512
      %v3572 = vadd.f32 %v3407, %v3514
      %v3573 = vadd.f32 %v3408, %v3517
      %v3574 = vadd.f32 %v3409, %v3519
      %v3575 = vadd.f32 %v3410, %v3522
      %v3576 = vadd.f32 %v3411, %v3524
      %v3577 = vadd.f32 %v3412, %v3527
      %v3578 = vadd.f32 %v3413, %v3529
      %v3579 = vadd.f32 %v3414, %v3532
      %v3580 = vadd.f32 %v3415, %v3534
      %v3581 = vadd.f32 %v3416, %v3537
      %v3582 = vadd.f32 %v3417, %v3539
      %v3583 = vadd.f32 %v3418, %v3542
      %v3584 = vadd.f32 %v3419, %v3544
      %v3585 = vadd.f32 %v3420, %v3547
      %v3586 = vadd.f32 %v3421, %v3549
      %v3591 = vunpack.c.l.b16 %v3125
      %v3592 = vunpack.c.l.b16 %v3126
      %v3593 = vunpack.c.l.b16 %v3127
      %v3594 = vunpack.c.l.b16 %v3128
      %v3595 = vpack.c.b16 %v3592, %v3591
      %v3596 = vpack.c.b16 %v3594, %v3593
      %v3601 = vunpack.c.l.b16 %v1799
      %v3602 = vunpack.c.l.b16 %v1800
      %v3603 = vunpack.c.l.b16 %v1801
      %v3604 = vunpack.c.l.b16 %v1802
      %v3605 = vpack.c.b16 %v3602, %v3601
      %v3606 = vpack.c.b16 %v3604, %v3603
      %v3609 = vsel %vm1958, %v3595, 0
      %v3612 = vsel %vm1958, %v3596, 0
      %v3615 = vsel %vm2013, %v3606, 0
      %3617 = vmatpush.bf16.msra.mxu0 0
      %3618 = vmatpush.bf16.msra.mxu0 0
      %3619 = vmatpush.bf16.msra.mxu0 0
      %3620 = vmatpush.bf16.msra.mxu0 0
      %3621 = vmatpush.bf16.msra.mxu0 0
      %3622 = vmatpush.bf16.msra.mxu0 0
      %3623 = vmatpush.bf16.msra.mxu0 %v3615
      %3624 = vmatpush.bf16.msra.mxu0 %v3605
      %3625 = vmatmul.bf16.gmra.mxu0 %v3243
      %v3626 = vpop.f32.mrf.mxu0
      %v3627 = vadd.f32 0.0, %v3626
      %v3628 = vpop.f32.mrf.mxu0
      %v3629 = vadd.f32 0.0, %v3628
      %3630 = vmatmul.bf16.gmra.mxu0 %v3246
      %v3631 = vpop.f32.mrf.mxu0
      %v3632 = vadd.f32 0.0, %v3631
      %v3633 = vpop.f32.mrf.mxu0
      %v3634 = vadd.f32 0.0, %v3633
      %3635 = vmatmul.bf16.gmra.mxu0 %v3249
      %v3636 = vpop.f32.mrf.mxu0
      %v3637 = vadd.f32 0.0, %v3636
      %v3638 = vpop.f32.mrf.mxu0
      %v3639 = vadd.f32 0.0, %v3638
      %3640 = vmatmul.bf16.gmra.mxu0 %v3252
      %v3641 = vpop.f32.mrf.mxu0
      %v3642 = vadd.f32 0.0, %v3641
      %v3643 = vpop.f32.mrf.mxu0
      %v3644 = vadd.f32 0.0, %v3643
      %3645 = vmatmul.bf16.gmra.mxu0 %v3255
      %v3646 = vpop.f32.mrf.mxu0
      %v3647 = vadd.f32 0.0, %v3646
      %v3648 = vpop.f32.mrf.mxu0
      %v3649 = vadd.f32 0.0, %v3648
      %3650 = vmatmul.bf16.gmra.mxu0 %v3258
      %v3651 = vpop.f32.mrf.mxu0
      %v3652 = vadd.f32 0.0, %v3651
      %v3653 = vpop.f32.mrf.mxu0
      %v3654 = vadd.f32 0.0, %v3653
      %3655 = vmatmul.bf16.gmra.mxu0 %v3261
      %v3656 = vpop.f32.mrf.mxu0
      %v3657 = vadd.f32 0.0, %v3656
      %v3658 = vpop.f32.mrf.mxu0
      %v3659 = vadd.f32 0.0, %v3658
      %3660 = vmatmul.bf16.gmra.mxu0 %v3264
      %v3661 = vpop.f32.mrf.mxu0
      %v3662 = vadd.f32 0.0, %v3661
      %v3663 = vpop.f32.mrf.mxu0
      %v3664 = vadd.f32 0.0, %v3663
      %3665 = vmatmul.bf16.gmra.mxu0 %v3267
      %v3666 = vpop.f32.mrf.mxu0
      %v3667 = vadd.f32 0.0, %v3666
      %v3668 = vpop.f32.mrf.mxu0
      %v3669 = vadd.f32 0.0, %v3668
      %3670 = vmatmul.bf16.gmra.mxu0 %v3270
      %v3671 = vpop.f32.mrf.mxu0
      %v3672 = vadd.f32 0.0, %v3671
      %v3673 = vpop.f32.mrf.mxu0
      %v3674 = vadd.f32 0.0, %v3673
      %3675 = vmatmul.bf16.gmra.mxu0 %v3273
      %v3676 = vpop.f32.mrf.mxu0
      %v3677 = vadd.f32 0.0, %v3676
      %v3678 = vpop.f32.mrf.mxu0
      %v3679 = vadd.f32 0.0, %v3678
      %3680 = vmatmul.bf16.gmra.mxu0 %v3276
      %v3681 = vpop.f32.mrf.mxu0
      %v3682 = vadd.f32 0.0, %v3681
      %v3683 = vpop.f32.mrf.mxu0
      %v3684 = vadd.f32 0.0, %v3683
      %3685 = vmatmul.bf16.gmra.mxu0 %v3279
      %v3686 = vpop.f32.mrf.mxu0
      %v3687 = vadd.f32 0.0, %v3686
      %v3688 = vpop.f32.mrf.mxu0
      %v3689 = vadd.f32 0.0, %v3688
      %3690 = vmatmul.bf16.gmra.mxu0 %v3282
      %v3691 = vpop.f32.mrf.mxu0
      %v3692 = vadd.f32 0.0, %v3691
      %v3693 = vpop.f32.mrf.mxu0
      %v3694 = vadd.f32 0.0, %v3693
      %3695 = vmatmul.bf16.gmra.mxu0 %v3444
      %v3696 = vpop.f32.mrf.mxu0
      %v3697 = vadd.f32 0.0, %v3696
      %v3698 = vpop.f32.mrf.mxu0
      %v3699 = vadd.f32 0.0, %v3698
      %3700 = vmatmul.bf16.gmra.mxu0 %v3447
      %v3701 = vpop.f32.mrf.mxu0
      %v3702 = vadd.f32 0.0, %v3701
      %v3703 = vpop.f32.mrf.mxu0
      %v3704 = vadd.f32 0.0, %v3703
      %3705 = vmatmul.bf16.gmra.mxu0 %v3609
      %v3706 = vpop.f32.mrf.mxu0
      %v3707 = vadd.f32 0.0, %v3706
      %v3708 = vpop.f32.mrf.mxu0
      %v3709 = vadd.f32 0.0, %v3708
      %3710 = vmatmul.bf16.gmra.mxu0 %v3612
      %v3711 = vpop.f32.mrf.mxu0
      %v3712 = vadd.f32 0.0, %v3711
      %v3713 = vpop.f32.mrf.mxu0
      %v3714 = vadd.f32 0.0, %v3713
      %3715 = vdwg.mxu0
      %v3716 = vadd.f32 %v3551, %v3627
      %v3717 = vadd.f32 %v3552, %v3629
      %v3718 = vadd.f32 %v3553, %v3632
      %v3719 = vadd.f32 %v3554, %v3634
      %v3720 = vadd.f32 %v3555, %v3637
      %v3721 = vadd.f32 %v3556, %v3639
      %v3722 = vadd.f32 %v3557, %v3642
      %v3723 = vadd.f32 %v3558, %v3644
      %v3724 = vadd.f32 %v3559, %v3647
      %v3725 = vadd.f32 %v3560, %v3649
      %v3726 = vadd.f32 %v3561, %v3652
      %v3727 = vadd.f32 %v3562, %v3654
      %v3728 = vadd.f32 %v3563, %v3657
      %v3729 = vadd.f32 %v3564, %v3659
      %v3730 = vadd.f32 %v3565, %v3662
      %v3731 = vadd.f32 %v3566, %v3664
      %v3732 = vadd.f32 %v3567, %v3667
      %v3733 = vadd.f32 %v3568, %v3669
      %v3734 = vadd.f32 %v3569, %v3672
      %v3735 = vadd.f32 %v3570, %v3674
      %v3736 = vadd.f32 %v3571, %v3677
      %v3737 = vadd.f32 %v3572, %v3679
      %v3738 = vadd.f32 %v3573, %v3682
      %v3739 = vadd.f32 %v3574, %v3684
      %v3740 = vadd.f32 %v3575, %v3687
      %v3741 = vadd.f32 %v3576, %v3689
      %v3742 = vadd.f32 %v3577, %v3692
      %v3743 = vadd.f32 %v3578, %v3694
      %v3744 = vadd.f32 %v3579, %v3697
      %v3745 = vadd.f32 %v3580, %v3699
      %v3746 = vadd.f32 %v3581, %v3702
      %v3747 = vadd.f32 %v3582, %v3704
      %v3748 = vadd.f32 %v3583, %v3707
      %v3749 = vadd.f32 %v3584, %v3709
      %v3750 = vadd.f32 %v3585, %v3712
      %v3751 = vadd.f32 %v3586, %v3714
      %v3753 = vperm.slane %v1803, 0
      %v3755 = vadd.f32 %v3716, %v3753
      %v3756 = vadd.f32 %v3717, %v3753
      %v3757 = vadd.f32 %v3718, %v3753
      %v3758 = vadd.f32 %v3719, %v3753
      %v3759 = vadd.f32 %v3720, %v3753
      %v3760 = vadd.f32 %v3721, %v3753
      %v3761 = vadd.f32 %v3722, %v3753
      %v3762 = vadd.f32 %v3723, %v3753
      %v3763 = vadd.f32 %v3724, %v3753
      %v3764 = vadd.f32 %v3725, %v3753
      %v3765 = vadd.f32 %v3726, %v3753
      %v3766 = vadd.f32 %v3727, %v3753
      %v3767 = vadd.f32 %v3728, %v3753
      %v3768 = vadd.f32 %v3729, %v3753
      %v3769 = vadd.f32 %v3730, %v3753
      %v3770 = vadd.f32 %v3731, %v3753
      %v3771 = vadd.f32 %v3732, %v3753
      %v3772 = vadd.f32 %v3733, %v3753
      %v3773 = vadd.f32 %v3734, %v3753
      %v3774 = vadd.f32 %v3735, %v3753
      %v3775 = vadd.f32 %v3736, %v3753
      %v3776 = vadd.f32 %v3737, %v3753
      %v3777 = vadd.f32 %v3738, %v3753
      %v3778 = vadd.f32 %v3739, %v3753
      %v3779 = vadd.f32 %v3740, %v3753
      %v3780 = vadd.f32 %v3741, %v3753
      %v3781 = vadd.f32 %v3742, %v3753
      %v3782 = vadd.f32 %v3743, %v3753
      %v3783 = vadd.f32 %v3744, %v3753
      %v3784 = vadd.f32 %v3745, %v3753
      %v3785 = vadd.f32 %v3746, %v3753
      %v3786 = vadd.f32 %v3747, %v3753
      %v3787 = vadd.f32 %v3748, %v3753
      %v3788 = vadd.f32 %v3749, %v3753
      %v3789 = vadd.f32 %v3750, %v3753
      %v3790 = vadd.f32 %v3751, %v3753
      %vm3791 = vcmp.ge.f32.partialorder %v3755, 0.0
      %vm3792 = vcmp.ge.f32.partialorder %v3756, 0.0
      %vm3793 = vcmp.ge.f32.partialorder %v3757, 0.0
      %vm3794 = vcmp.ge.f32.partialorder %v3758, 0.0
      %vm3795 = vcmp.ge.f32.partialorder %v3759, 0.0
      %vm3796 = vcmp.ge.f32.partialorder %v3760, 0.0
      %vm3797 = vcmp.ge.f32.partialorder %v3761, 0.0
      %vm3798 = vcmp.ge.f32.partialorder %v3762, 0.0
      %vm3799 = vcmp.ge.f32.partialorder %v3763, 0.0
      %vm3800 = vcmp.ge.f32.partialorder %v3764, 0.0
      %vm3801 = vcmp.ge.f32.partialorder %v3765, 0.0
      %vm3802 = vcmp.ge.f32.partialorder %v3766, 0.0
      %vm3803 = vcmp.ge.f32.partialorder %v3767, 0.0
      %vm3804 = vcmp.ge.f32.partialorder %v3768, 0.0
      %vm3805 = vcmp.ge.f32.partialorder %v3769, 0.0
      %vm3806 = vcmp.ge.f32.partialorder %v3770, 0.0
      %vm3807 = vcmp.ge.f32.partialorder %v3771, 0.0
      %vm3808 = vcmp.ge.f32.partialorder %v3772, 0.0
      %vm3809 = vcmp.ge.f32.partialorder %v3773, 0.0
      %vm3810 = vcmp.ge.f32.partialorder %v3774, 0.0
      %vm3811 = vcmp.ge.f32.partialorder %v3775, 0.0
      %vm3812 = vcmp.ge.f32.partialorder %v3776, 0.0
      %vm3813 = vcmp.ge.f32.partialorder %v3777, 0.0
      %vm3814 = vcmp.ge.f32.partialorder %v3778, 0.0
      %vm3815 = vcmp.ge.f32.partialorder %v3779, 0.0
      %vm3816 = vcmp.ge.f32.partialorder %v3780, 0.0
      %vm3817 = vcmp.ge.f32.partialorder %v3781, 0.0
      %vm3818 = vcmp.ge.f32.partialorder %v3782, 0.0
      %vm3819 = vcmp.ge.f32.partialorder %v3783, 0.0
      %vm3820 = vcmp.ge.f32.partialorder %v3784, 0.0
      %vm3821 = vcmp.ge.f32.partialorder %v3785, 0.0
      %vm3822 = vcmp.ge.f32.partialorder %v3786, 0.0
      %vm3823 = vcmp.ge.f32.partialorder %v3787, 0.0
      %vm3824 = vcmp.ge.f32.partialorder %v3788, 0.0
      %vm3825 = vcmp.ge.f32.partialorder %v3789, 0.0
      %vm3826 = vcmp.ge.f32.partialorder %v3790, 0.0
      %v3827 = vstv %s57
      %v3828 = vmul.f32 %v3827, %v3755
      %v3829 = vmul.f32 %v3827, %v3756
      %v3830 = vmul.f32 %v3827, %v3757
      %v3831 = vmul.f32 %v3827, %v3758
      %v3832 = vmul.f32 %v3827, %v3759
      %v3833 = vmul.f32 %v3827, %v3760
      %v3834 = vmul.f32 %v3827, %v3761
      %v3835 = vmul.f32 %v3827, %v3762
      %v3836 = vmul.f32 %v3827, %v3763
      %v3837 = vmul.f32 %v3827, %v3764
      %v3838 = vmul.f32 %v3827, %v3765
      %v3839 = vmul.f32 %v3827, %v3766
      %v3840 = vmul.f32 %v3827, %v3767
      %v3841 = vmul.f32 %v3827, %v3768
      %v3842 = vmul.f32 %v3827, %v3769
      %v3843 = vmul.f32 %v3827, %v3770
      %v3844 = vmul.f32 %v3827, %v3771
      %v3845 = vmul.f32 %v3827, %v3772
      %v3846 = vmul.f32 %v3827, %v3773
      %v3847 = vmul.f32 %v3827, %v3774
      %v3848 = vmul.f32 %v3827, %v3775
      %v3849 = vmul.f32 %v3827, %v3776
      %v3850 = vmul.f32 %v3827, %v3777
      %v3851 = vmul.f32 %v3827, %v3778
      %v3852 = vmul.f32 %v3827, %v3779
      %v3853 = vmul.f32 %v3827, %v3780
      %v3854 = vmul.f32 %v3827, %v3781
      %v3855 = vmul.f32 %v3827, %v3782
      %v3856 = vmul.f32 %v3827, %v3783
      %v3857 = vmul.f32 %v3827, %v3784
      %v3858 = vmul.f32 %v3827, %v3785
      %v3859 = vmul.f32 %v3827, %v3786
      %v3860 = vmul.f32 %v3827, %v3787
      %v3861 = vmul.f32 %v3827, %v3788
      %v3862 = vmul.f32 %v3827, %v3789
      %v3863 = vmul.f32 %v3827, %v3790
      %v3864 = vsel %vm3791, %v3755, %v3828
      %v3865 = vsel %vm3792, %v3756, %v3829
      %v3866 = vsel %vm3793, %v3757, %v3830
      %v3867 = vsel %vm3794, %v3758, %v3831
      %v3868 = vsel %vm3795, %v3759, %v3832
      %v3869 = vsel %vm3796, %v3760, %v3833
      %v3870 = vsel %vm3797, %v3761, %v3834
      %v3871 = vsel %vm3798, %v3762, %v3835
      %v3872 = vsel %vm3799, %v3763, %v3836
      %v3873 = vsel %vm3800, %v3764, %v3837
      %v3874 = vsel %vm3801, %v3765, %v3838
      %v3875 = vsel %vm3802, %v3766, %v3839
      %v3876 = vsel %vm3803, %v3767, %v3840
      %v3877 = vsel %vm3804, %v3768, %v3841
      %v3878 = vsel %vm3805, %v3769, %v3842
      %v3879 = vsel %vm3806, %v3770, %v3843
      %v3880 = vsel %vm3807, %v3771, %v3844
      %v3881 = vsel %vm3808, %v3772, %v3845
      %v3882 = vsel %vm3809, %v3773, %v3846
      %v3883 = vsel %vm3810, %v3774, %v3847
      %v3884 = vsel %vm3811, %v3775, %v3848
      %v3885 = vsel %vm3812, %v3776, %v3849
      %v3886 = vsel %vm3813, %v3777, %v3850
      %v3887 = vsel %vm3814, %v3778, %v3851
      %v3888 = vsel %vm3815, %v3779, %v3852
      %v3889 = vsel %vm3816, %v3780, %v3853
      %v3890 = vsel %vm3817, %v3781, %v3854
      %v3891 = vsel %vm3818, %v3782, %v3855
      %v3892 = vsel %vm3819, %v3783, %v3856
      %v3893 = vsel %vm3820, %v3784, %v3857
      %v3894 = vsel %vm3821, %v3785, %v3858
      %v3895 = vsel %vm3822, %v3786, %v3859
      %v3896 = vsel %vm3823, %v3787, %v3860
      %v3897 = vsel %vm3824, %v3788, %v3861
      %v3898 = vsel %vm3825, %v3789, %v3862
      %v3899 = vsel %vm3826, %v3790, %v3863
      %s3900 = smul.u32 %s1805, 288
      %s3901 = scalar_lea.vmem [#allocation4], %s3900
      %vm3902 = vcmask 392192
      %3903 = vst.msk [vmem:[%s3901] sm:$0xff] %vm3902, %v3864
      %3904 = vst.msk [vmem:[%s3901 + $0x8] sm:$0xff] %vm3902, %v3865
      %3905 = vst.msk [vmem:[%s3901 + $0x10] sm:$0xff] %vm3902, %v3866
      %3906 = vst.msk [vmem:[%s3901 + $0x18] sm:$0xff] %vm3902, %v3867
      %3907 = vst.msk [vmem:[%s3901 + $0x20] sm:$0xff] %vm3902, %v3868
      %3908 = vst.msk [vmem:[%s3901 + $0x28] sm:$0xff] %vm3902, %v3869
      %3909 = vst.msk [vmem:[%s3901 + $0x30] sm:$0xff] %vm3902, %v3870
      %3910 = vst.msk [vmem:[%s3901 + $0x38] sm:$0xff] %vm3902, %v3871
      %3911 = vst.msk [vmem:[%s3901 + $0x40] sm:$0xff] %vm3902, %v3872
      %3912 = vst.msk [vmem:[%s3901 + $0x48] sm:$0xff] %vm3902, %v3873
      %3913 = vst.msk [vmem:[%s3901 + $0x50] sm:$0xff] %vm3902, %v3874
      %3914 = vst.msk [vmem:[%s3901 + $0x58] sm:$0xff] %vm3902, %v3875
      %3915 = vst.msk [vmem:[%s3901 + $0x60] sm:$0xff] %vm3902, %v3876
      %3916 = vst.msk [vmem:[%s3901 + $0x68] sm:$0xff] %vm3902, %v3877
      %3917 = vst.msk [vmem:[%s3901 + $0x70] sm:$0xff] %vm3902, %v3878
      %3918 = vst.msk [vmem:[%s3901 + $0x78] sm:$0xff] %vm3902, %v3879
      %3919 = vst.msk [vmem:[%s3901 + $0x80] sm:$0xff] %vm3902, %v3880
      %3920 = vst.msk [vmem:[%s3901 + $0x88] sm:$0xff] %vm3902, %v3881
      %3921 = vst.msk [vmem:[%s3901 + $0x90] sm:$0xff] %vm3902, %v3882
      %3922 = vst.msk [vmem:[%s3901 + $0x98] sm:$0xff] %vm3902, %v3883
      %3923 = vst.msk [vmem:[%s3901 + $0xa0] sm:$0xff] %vm3902, %v3884
      %3924 = vst.msk [vmem:[%s3901 + $0xa8] sm:$0xff] %vm3902, %v3885
      %3925 = vst.msk [vmem:[%s3901 + $0xb0] sm:$0xff] %vm3902, %v3886
      %3926 = vst.msk [vmem:[%s3901 + $0xb8] sm:$0xff] %vm3902, %v3887
      %3927 = vst.msk [vmem:[%s3901 + $0xc0] sm:$0xff] %vm3902, %v3888
      %3928 = vst.msk [vmem:[%s3901 + $0xc8] sm:$0xff] %vm3902, %v3889
      %3929 = vst.msk [vmem:[%s3901 + $0xd0] sm:$0xff] %vm3902, %v3890
      %3930 = vst.msk [vmem:[%s3901 + $0xd8] sm:$0xff] %vm3902, %v3891
      %3931 = vst.msk [vmem:[%s3901 + $0xe0] sm:$0xff] %vm3902, %v3892
      %3932 = vst.msk [vmem:[%s3901 + $0xe8] sm:$0xff] %vm3902, %v3893
      %3933 = vst.msk [vmem:[%s3901 + $0xf0] sm:$0xff] %vm3902, %v3894
      %3934 = vst.msk [vmem:[%s3901 + $0xf8] sm:$0xff] %vm3902, %v3895
      %3935 = vst.msk [vmem:[%s3901 + $0x100] sm:$0xff] %vm3902, %v3896
      %3936 = vst.msk [vmem:[%s3901 + $0x108] sm:$0xff] %vm3902, %v3897
      %3937 = vst.msk [vmem:[%s3901 + $0x110] sm:$0xff] %vm3902, %v3898
      %3938 = vst.msk [vmem:[%s3901 + $0x118] sm:$0xff] %vm3902, %v3899
    $region72: #{tpu_custom_call.1} parent=1 // loop_footer
      %s1809 = sadd.s32 1, %s1805
    $region73: #{tpu_custom_call.1} parent=1 // loop_footer_branch
      %1804 = sbr.rel target = $region69
    $region74: #{tpu_custom_call.1} parent=1 // loop_exit
      _
    loop: start=0, step=1, limit=4
    $region75: #{tpu_custom_call.1} parent=1 // loop_pre_header
      _
    $region76: #{tpu_custom_call.1} parent=1 // loop_header
      %s3940 = sphi 0, %s3944
      %p3941 = scmp.ge.s32.totalorder %s3940, 4
    $region77: #{tpu_custom_call.1} parent=1 // loop_header_branch
      %3943 = sbr.rel (%p3941) target = $region81
    $region78: #{tpu_custom_call.1} parent=1 // loop_body
      %s3945 = smul.u32 %s3940, 2
      %s3946 = smul.u32 %s3945, 288
      %s3947 = scalar_lea.vmem [#allocation4], %s3946
      %v3948 = vld [vmem:[%s3947] sm:$0xff]
      %v3949 = vld [vmem:[%s3947 + $0x8] sm:$0xff]
      %v3950 = vld [vmem:[%s3947 + $0x10] sm:$0xff]
      %v3951 = vld [vmem:[%s3947 + $0x18] sm:$0xff]
      %v3952 = vld [vmem:[%s3947 + $0x20] sm:$0xff]
      %v3953 = vld [vmem:[%s3947 + $0x28] sm:$0xff]
      %v3954 = vld [vmem:[%s3947 + $0x30] sm:$0xff]
      %v3955 = vld [vmem:[%s3947 + $0x38] sm:$0xff]
      %v3956 = vld [vmem:[%s3947 + $0x40] sm:$0xff]
      %v3957 = vld [vmem:[%s3947 + $0x48] sm:$0xff]
      %v3958 = vld [vmem:[%s3947 + $0x50] sm:$0xff]
      %v3959 = vld [vmem:[%s3947 + $0x58] sm:$0xff]
      %v3960 = vld [vmem:[%s3947 + $0x60] sm:$0xff]
      %v3961 = vld [vmem:[%s3947 + $0x68] sm:$0xff]
      %v3962 = vld [vmem:[%s3947 + $0x70] sm:$0xff]
      %v3963 = vld [vmem:[%s3947 + $0x78] sm:$0xff]
      %v3964 = vld [vmem:[%s3947 + $0x80] sm:$0xff]
      %v3965 = vld [vmem:[%s3947 + $0x88] sm:$0xff]
      %v3966 = vld [vmem:[%s3947 + $0x90] sm:$0xff]
      %v3967 = vld [vmem:[%s3947 + $0x98] sm:$0xff]
      %v3968 = vld [vmem:[%s3947 + $0xa0] sm:$0xff]
      %v3969 = vld [vmem:[%s3947 + $0xa8] sm:$0xff]
      %v3970 = vld [vmem:[%s3947 + $0xb0] sm:$0xff]
      %v3971 = vld [vmem:[%s3947 + $0xb8] sm:$0xff]
      %v3972 = vld [vmem:[%s3947 + $0xc0] sm:$0xff]
      %v3973 = vld [vmem:[%s3947 + $0xc8] sm:$0xff]
      %v3974 = vld [vmem:[%s3947 + $0xd0] sm:$0xff]
      %v3975 = vld [vmem:[%s3947 + $0xd8] sm:$0xff]
      %v3976 = vld [vmem:[%s3947 + $0xe0] sm:$0xff]
      %v3977 = vld [vmem:[%s3947 + $0xe8] sm:$0xff]
      %v3978 = vld [vmem:[%s3947 + $0xf0] sm:$0xff]
      %v3979 = vld [vmem:[%s3947 + $0xf8] sm:$0xff]
      %v3980 = vld [vmem:[%s3947 + $0x100] sm:$0xff]
      %v3981 = vld [vmem:[%s3947 + $0x108] sm:$0xff]
      %v3982 = vld [vmem:[%s3947 + $0x110] sm:$0xff]
      %v3983 = vld [vmem:[%s3947 + $0x118] sm:$0xff]
      %s3984 = sadd.s32 %s3945, 1
      %p3985 = scmp.lt.s32.totalorder %s3984, 8
      %s3986 = scalar_select %p3985, %s3984, 8
      %s3987 = smul.u32 %s3986, 288
      %s3988 = scalar_lea.vmem [#allocation4], %s3987
      %v3989 = vld [vmem:[%s3988] sm:$0xff]
      %v3990 = vld [vmem:[%s3988 + $0x8] sm:$0xff]
      %v3991 = vld [vmem:[%s3988 + $0x10] sm:$0xff]
      %v3992 = vld [vmem:[%s3988 + $0x18] sm:$0xff]
      %v3993 = vld [vmem:[%s3988 + $0x20] sm:$0xff]
      %v3994 = vld [vmem:[%s3988 + $0x28] sm:$0xff]
      %v3995 = vld [vmem:[%s3988 + $0x30] sm:$0xff]
      %v3996 = vld [vmem:[%s3988 + $0x38] sm:$0xff]
      %v3997 = vld [vmem:[%s3988 + $0x40] sm:$0xff]
      %v3998 = vld [vmem:[%s3988 + $0x48] sm:$0xff]
      %v3999 = vld [vmem:[%s3988 + $0x50] sm:$0xff]
      %v4000 = vld [vmem:[%s3988 + $0x58] sm:$0xff]
      %v4001 = vld [vmem:[%s3988 + $0x60] sm:$0xff]
      %v4002 = vld [vmem:[%s3988 + $0x68] sm:$0xff]
      %v4003 = vld [vmem:[%s3988 + $0x70] sm:$0xff]
      %v4004 = vld [vmem:[%s3988 + $0x78] sm:$0xff]
      %v4005 = vld [vmem:[%s3988 + $0x80] sm:$0xff]
      %v4006 = vld [vmem:[%s3988 + $0x88] sm:$0xff]
      %v4007 = vld [vmem:[%s3988 + $0x90] sm:$0xff]
      %v4008 = vld [vmem:[%s3988 + $0x98] sm:$0xff]
      %v4009 = vld [vmem:[%s3988 + $0xa0] sm:$0xff]
      %v4010 = vld [vmem:[%s3988 + $0xa8] sm:$0xff]
      %v4011 = vld [vmem:[%s3988 + $0xb0] sm:$0xff]
      %v4012 = vld [vmem:[%s3988 + $0xb8] sm:$0xff]
      %v4013 = vld [vmem:[%s3988 + $0xc0] sm:$0xff]
      %v4014 = vld [vmem:[%s3988 + $0xc8] sm:$0xff]
      %v4015 = vld [vmem:[%s3988 + $0xd0] sm:$0xff]
      %v4016 = vld [vmem:[%s3988 + $0xd8] sm:$0xff]
      %v4017 = vld [vmem:[%s3988 + $0xe0] sm:$0xff]
      %v4018 = vld [vmem:[%s3988 + $0xe8] sm:$0xff]
      %v4019 = vld [vmem:[%s3988 + $0xf0] sm:$0xff]
      %v4020 = vld [vmem:[%s3988 + $0xf8] sm:$0xff]
      %v4021 = vld [vmem:[%s3988 + $0x100] sm:$0xff]
      %v4022 = vld [vmem:[%s3988 + $0x108] sm:$0xff]
      %v4023 = vld [vmem:[%s3988 + $0x110] sm:$0xff]
      %v4024 = vld [vmem:[%s3988 + $0x118] sm:$0xff]
      %s4025 = sadd.s32 %s3945, 2
      %p4026 = scmp.lt.s32.totalorder %s4025, 8
      %s4027 = scalar_select %p4026, %s4025, 8
      %s4028 = smul.u32 %s4027, 288
      %s4029 = scalar_lea.vmem [#allocation4], %s4028
      %v4030 = vld [vmem:[%s4029] sm:$0xff]
      %v4031 = vld [vmem:[%s4029 + $0x8] sm:$0xff]
      %v4032 = vld [vmem:[%s4029 + $0x10] sm:$0xff]
      %v4033 = vld [vmem:[%s4029 + $0x18] sm:$0xff]
      %v4034 = vld [vmem:[%s4029 + $0x20] sm:$0xff]
      %v4035 = vld [vmem:[%s4029 + $0x28] sm:$0xff]
      %v4036 = vld [vmem:[%s4029 + $0x30] sm:$0xff]
      %v4037 = vld [vmem:[%s4029 + $0x38] sm:$0xff]
      %v4038 = vld [vmem:[%s4029 + $0x40] sm:$0xff]
      %v4039 = vld [vmem:[%s4029 + $0x48] sm:$0xff]
      %v4040 = vld [vmem:[%s4029 + $0x50] sm:$0xff]
      %v4041 = vld [vmem:[%s4029 + $0x58] sm:$0xff]
      %v4042 = vld [vmem:[%s4029 + $0x60] sm:$0xff]
      %v4043 = vld [vmem:[%s4029 + $0x68] sm:$0xff]
      %v4044 = vld [vmem:[%s4029 + $0x70] sm:$0xff]
      %v4045 = vld [vmem:[%s4029 + $0x78] sm:$0xff]
      %v4046 = vld [vmem:[%s4029 + $0x80] sm:$0xff]
      %v4047 = vld [vmem:[%s4029 + $0x88] sm:$0xff]
      %v4048 = vld [vmem:[%s4029 + $0x90] sm:$0xff]
      %v4049 = vld [vmem:[%s4029 + $0x98] sm:$0xff]
      %v4050 = vld [vmem:[%s4029 + $0xa0] sm:$0xff]
      %v4051 = vld [vmem:[%s4029 + $0xa8] sm:$0xff]
      %v4052 = vld [vmem:[%s4029 + $0xb0] sm:$0xff]
      %v4053 = vld [vmem:[%s4029 + $0xb8] sm:$0xff]
      %v4054 = vld [vmem:[%s4029 + $0xc0] sm:$0xff]
      %v4055 = vld [vmem:[%s4029 + $0xc8] sm:$0xff]
      %v4056 = vld [vmem:[%s4029 + $0xd0] sm:$0xff]
      %v4057 = vld [vmem:[%s4029 + $0xd8] sm:$0xff]
      %v4058 = vld [vmem:[%s4029 + $0xe0] sm:$0xff]
      %v4059 = vld [vmem:[%s4029 + $0xe8] sm:$0xff]
      %v4060 = vld [vmem:[%s4029 + $0xf0] sm:$0xff]
      %v4061 = vld [vmem:[%s4029 + $0xf8] sm:$0xff]
      %v4062 = vld [vmem:[%s4029 + $0x100] sm:$0xff]
      %v4063 = vld [vmem:[%s4029 + $0x108] sm:$0xff]
      %v4064 = vld [vmem:[%s4029 + $0x110] sm:$0xff]
      %v4065 = vld [vmem:[%s4029 + $0x118] sm:$0xff]
      %v4066 = vmax.f32 %v3948, %v3989
      %v4067 = vmax.f32 %v3949, %v3990
      %v4068 = vmax.f32 %v3950, %v3991
      %v4069 = vmax.f32 %v3951, %v3992
      %v4070 = vmax.f32 %v3952, %v3993
      %v4071 = vmax.f32 %v3953, %v3994
      %v4072 = vmax.f32 %v3954, %v3995
      %v4073 = vmax.f32 %v3955, %v3996
      %v4074 = vmax.f32 %v3956, %v3997
      %v4075 = vmax.f32 %v3957, %v3998
      %v4076 = vmax.f32 %v3958, %v3999
      %v4077 = vmax.f32 %v3959, %v4000
      %v4078 = vmax.f32 %v3960, %v4001
      %v4079 = vmax.f32 %v3961, %v4002
      %v4080 = vmax.f32 %v3962, %v4003
      %v4081 = vmax.f32 %v3963, %v4004
      %v4082 = vmax.f32 %v3964, %v4005
      %v4083 = vmax.f32 %v3965, %v4006
      %v4084 = vmax.f32 %v3966, %v4007
      %v4085 = vmax.f32 %v3967, %v4008
      %v4086 = vmax.f32 %v3968, %v4009
      %v4087 = vmax.f32 %v3969, %v4010
      %v4088 = vmax.f32 %v3970, %v4011
      %v4089 = vmax.f32 %v3971, %v4012
      %v4090 = vmax.f32 %v3972, %v4013
      %v4091 = vmax.f32 %v3973, %v4014
      %v4092 = vmax.f32 %v3974, %v4015
      %v4093 = vmax.f32 %v3975, %v4016
      %v4094 = vmax.f32 %v3976, %v4017
      %v4095 = vmax.f32 %v3977, %v4018
      %v4096 = vmax.f32 %v3978, %v4019
      %v4097 = vmax.f32 %v3979, %v4020
      %v4098 = vmax.f32 %v3980, %v4021
      %v4099 = vmax.f32 %v3981, %v4022
      %v4100 = vmax.f32 %v3982, %v4023
      %v4101 = vmax.f32 %v3983, %v4024
      %v4102 = vmax.f32 %v4066, %v4030
      %v4103 = vmax.f32 %v4067, %v4031
      %v4104 = vmax.f32 %v4068, %v4032
      %v4105 = vmax.f32 %v4069, %v4033
      %v4106 = vmax.f32 %v4070, %v4034
      %v4107 = vmax.f32 %v4071, %v4035
      %v4108 = vmax.f32 %v4072, %v4036
      %v4109 = vmax.f32 %v4073, %v4037
      %v4110 = vmax.f32 %v4074, %v4038
      %v4111 = vmax.f32 %v4075, %v4039
      %v4112 = vmax.f32 %v4076, %v4040
      %v4113 = vmax.f32 %v4077, %v4041
      %v4114 = vmax.f32 %v4078, %v4042
      %v4115 = vmax.f32 %v4079, %v4043
      %v4116 = vmax.f32 %v4080, %v4044
      %v4117 = vmax.f32 %v4081, %v4045
      %v4118 = vmax.f32 %v4082, %v4046
      %v4119 = vmax.f32 %v4083, %v4047
      %v4120 = vmax.f32 %v4084, %v4048
      %v4121 = vmax.f32 %v4085, %v4049
      %v4122 = vmax.f32 %v4086, %v4050
      %v4123 = vmax.f32 %v4087, %v4051
      %v4124 = vmax.f32 %v4088, %v4052
      %v4125 = vmax.f32 %v4089, %v4053
      %v4126 = vmax.f32 %v4090, %v4054
      %v4127 = vmax.f32 %v4091, %v4055
      %v4128 = vmax.f32 %v4092, %v4056
      %v4129 = vmax.f32 %v4093, %v4057
      %v4130 = vmax.f32 %v4094, %v4058
      %v4131 = vmax.f32 %v4095, %v4059
      %v4132 = vmax.f32 %v4096, %v4060
      %v4133 = vmax.f32 %v4097, %v4061
      %v4134 = vmax.f32 %v4098, %v4062
      %v4135 = vmax.f32 %v4099, %v4063
      %v4136 = vmax.f32 %v4100, %v4064
      %v4137 = vmax.f32 %v4101, %v4065
      %v4138 = vmax.f32 %v4102, %v4106
      %v4139 = vmax.f32 %v4103, %v4107
      %v4140 = vmax.f32 %v4104, %v4108
      %v4141 = vmax.f32 %v4105, %v4109
      %v4142 = vmax.f32 %v4110, %v4114
      %v4143 = vmax.f32 %v4111, %v4115
      %v4144 = vmax.f32 %v4112, %v4116
      %v4145 = vmax.f32 %v4113, %v4117
      %v4146 = vmax.f32 %v4118, %v4122
      %v4147 = vmax.f32 %v4119, %v4123
      %v4148 = vmax.f32 %v4120, %v4124
      %v4149 = vmax.f32 %v4121, %v4125
      %v4150 = vmax.f32 %v4126, %v4130
      %v4151 = vmax.f32 %v4127, %v4131
      %v4152 = vmax.f32 %v4128, %v4132
      %v4153 = vmax.f32 %v4129, %v4133
      %v4154 = vmax.f32 %v4138, %v4110
      %v4155 = vmax.f32 %v4139, %v4111
      %v4156 = vmax.f32 %v4140, %v4112
      %v4157 = vmax.f32 %v4141, %v4113
      %v4158 = vmax.f32 %v4142, %v4118
      %v4159 = vmax.f32 %v4143, %v4119
      %v4160 = vmax.f32 %v4144, %v4120
      %v4161 = vmax.f32 %v4145, %v4121
      %v4162 = vmax.f32 %v4146, %v4126
      %v4163 = vmax.f32 %v4147, %v4127
      %v4164 = vmax.f32 %v4148, %v4128
      %v4165 = vmax.f32 %v4149, %v4129
      %v4166 = vmax.f32 %v4150, %v4134
      %v4167 = vmax.f32 %v4151, %v4135
      %v4168 = vmax.f32 %v4152, %v4136
      %v4169 = vmax.f32 %v4153, %v4137
      %v4170 = vpack.c.bf16 %v4154, %v4154
      %v4171 = vpack.c.bf16 %v4155, %v4155
      %v4172 = vpack.c.bf16 %v4156, %v4156
      %v4173 = vpack.c.bf16 %v4157, %v4157
      %v4174 = vpack.c.bf16 %v4158, %v4158
      %v4175 = vpack.c.bf16 %v4159, %v4159
      %v4176 = vpack.c.bf16 %v4160, %v4160
      %v4177 = vpack.c.bf16 %v4161, %v4161
      %v4178 = vpack.c.bf16 %v4162, %v4162
      %v4179 = vpack.c.bf16 %v4163, %v4163
      %v4180 = vpack.c.bf16 %v4164, %v4164
      %v4181 = vpack.c.bf16 %v4165, %v4165
      %v4182 = vpack.c.bf16 %v4166, %v4166
      %v4183 = vpack.c.bf16 %v4167, %v4167
      %v4184 = vpack.c.bf16 %v4168, %v4168
      %v4185 = vpack.c.bf16 %v4169, %v4169
      %s4186 = smul.u32 %s3940, 16
      %s4187 = smul.addr %s4186, 4
      %s4188 = scalar_lea.vmem [#allocation5], %s4187
      %vm4189 = vcmask 388096
      %4190 = vst.msk [vmem:[%s4188] sm:$0xf] %vm4189, %v4170
      %4191 = vst.msk [vmem:[%s4188 + $0x4] sm:$0xf] %vm4189, %v4171
      %4192 = vst.msk [vmem:[%s4188 + $0x8] sm:$0xf] %vm4189, %v4172
      %4193 = vst.msk [vmem:[%s4188 + $0xc] sm:$0xf] %vm4189, %v4173
      %4194 = vst.msk [vmem:[%s4188 + $0x10] sm:$0xf] %vm4189, %v4174
      %4195 = vst.msk [vmem:[%s4188 + $0x14] sm:$0xf] %vm4189, %v4175
      %4196 = vst.msk [vmem:[%s4188 + $0x18] sm:$0xf] %vm4189, %v4176
      %4197 = vst.msk [vmem:[%s4188 + $0x1c] sm:$0xf] %vm4189, %v4177
      %4198 = vst.msk [vmem:[%s4188 + $0x20] sm:$0xf] %vm4189, %v4178
      %4199 = vst.msk [vmem:[%s4188 + $0x24] sm:$0xf] %vm4189, %v4179
      %4200 = vst.msk [vmem:[%s4188 + $0x28] sm:$0xf] %vm4189, %v4180
      %4201 = vst.msk [vmem:[%s4188 + $0x2c] sm:$0xf] %vm4189, %v4181
      %4202 = vst.msk [vmem:[%s4188 + $0x30] sm:$0xf] %vm4189, %v4182
      %4203 = vst.msk [vmem:[%s4188 + $0x34] sm:$0xf] %vm4189, %v4183
      %4204 = vst.msk [vmem:[%s4188 + $0x38] sm:$0xf] %vm4189, %v4184
      %4205 = vst.msk [vmem:[%s4188 + $0x3c] sm:$0xf] %vm4189, %v4185
    $region79: #{tpu_custom_call.1} parent=1 // loop_footer
      %s3944 = sadd.s32 1, %s3940
    $region80: #{tpu_custom_call.1} parent=1 // loop_footer_branch
      %3939 = sbr.rel target = $region76
    $region81: #{tpu_custom_call.1} parent=1 // loop_exit
      _
    %v4206 = vld [vmem:[%s6] sm:$0xf]
    %v4207 = vld [vmem:[%s6 + $0x4] sm:$0xf]
    %v4208 = vld [vmem:[%s6 + $0x8] sm:$0xf]
    %v4209 = vld [vmem:[%s6 + $0xc] sm:$0xf]
    %v4210 = vld [vmem:[%s6 + $0x10] sm:$0xf]
    %v4211 = vld [vmem:[%s6 + $0x14] sm:$0xf]
    %s4212 = scalar_lea.vmem %s6, 24
    %v4213 = vld [vmem:[%s4212] sm:$0xf]
    %v4214 = vld [vmem:[%s4212 + $0x4] sm:$0xf]
    %v4215 = vld [vmem:[%s4212 + $0x8] sm:$0xf]
    %v4216 = vld [vmem:[%s4212 + $0xc] sm:$0xf]
    %v4217 = vld [vmem:[%s4212 + $0x10] sm:$0xf]
    %v4218 = vld [vmem:[%s4212 + $0x14] sm:$0xf]
    %s4219 = scalar_lea.vmem %s6, 48
    %v4220 = vld [vmem:[%s4219] sm:$0xf]
    %v4221 = vld [vmem:[%s4219 + $0x4] sm:$0xf]
    %v4222 = vld [vmem:[%s4219 + $0x8] sm:$0xf]
    %v4223 = vld [vmem:[%s4219 + $0xc] sm:$0xf]
    %v4224 = vld [vmem:[%s4219 + $0x10] sm:$0xf]
    %v4225 = vld [vmem:[%s4219 + $0x14] sm:$0xf]
    %s4226 = scalar_lea.vmem %s6, 72
    %v4227 = vld [vmem:[%s4226] sm:$0xf]
    %v4228 = vld [vmem:[%s4226 + $0x4] sm:$0xf]
    %v4229 = vld [vmem:[%s4226 + $0x8] sm:$0xf]
    %v4230 = vld [vmem:[%s4226 + $0xc] sm:$0xf]
    %v4231 = vld [vmem:[%s4226 + $0x10] sm:$0xf]
    %v4232 = vld [vmem:[%s4226 + $0x14] sm:$0xf]
    %v4233 = vld [vmem:[%s7] sm:$0x1]
    loop: start=0, step=1, limit=3
    $region82: #{tpu_custom_call.1} parent=1 // loop_pre_header
      _
    $region83: #{tpu_custom_call.1} parent=1 // loop_header
      %s4235 = sphi 0, %s4239
      %p4236 = scmp.ge.s32.totalorder %s4235, 3
    $region84: #{tpu_custom_call.1} parent=1 // loop_header_branch
      %4238 = sbr.rel (%p4236) target = $region88
    $region85: #{tpu_custom_call.1} parent=1 // loop_body
      %s4240 = smul.u32 %s4235, 16
      %s4241 = smul.addr %s4240, 4
      %s4242 = scalar_lea.vmem [#allocation5], %s4241
      %v4243 = vld [vmem:[%s4242] sm:$0xf]
      %v4244 = vld [vmem:[%s4242 + $0x4] sm:$0xf]
      %v4245 = vld [vmem:[%s4242 + $0x8] sm:$0xf]
      %v4246 = vld [vmem:[%s4242 + $0xc] sm:$0xf]
      %v4247 = vld [vmem:[%s4242 + $0x10] sm:$0xf]
      %v4248 = vld [vmem:[%s4242 + $0x14] sm:$0xf]
      %v4249 = vld [vmem:[%s4242 + $0x18] sm:$0xf]
      %v4250 = vld [vmem:[%s4242 + $0x1c] sm:$0xf]
      %v4251 = vld [vmem:[%s4242 + $0x20] sm:$0xf]
      %v4252 = vld [vmem:[%s4242 + $0x24] sm:$0xf]
      %v4253 = vld [vmem:[%s4242 + $0x28] sm:$0xf]
      %v4254 = vld [vmem:[%s4242 + $0x2c] sm:$0xf]
      %v4255 = vld [vmem:[%s4242 + $0x30] sm:$0xf]
      %v4256 = vld [vmem:[%s4242 + $0x34] sm:$0xf]
      %v4257 = vld [vmem:[%s4242 + $0x38] sm:$0xf]
      %v4258 = vld [vmem:[%s4242 + $0x3c] sm:$0xf]
      %v4271 = vunpack.c.l.b16 %v4247
      %v4272 = vunpack.c.l.b16 %v4248
      %v4273 = vunpack.c.l.b16 %v4249
      %v4274 = vunpack.c.l.b16 %v4250
      %v4275 = vunpack.c.l.b16 %v4251
      %v4276 = vunpack.c.l.b16 %v4252
      %v4277 = vunpack.c.l.b16 %v4253
      %v4278 = vunpack.c.l.b16 %v4254
      %v4279 = vunpack.c.l.b16 %v4255
      %v4280 = vunpack.c.l.b16 %v4256
      %v4281 = vunpack.c.l.b16 %v4257
      %v4282 = vunpack.c.l.b16 %v4258
      %v4283 = vpack.c.b16 %v4272, %v4271
      %v4284 = vpack.c.b16 %v4274, %v4273
      %v4285 = vpack.c.b16 %v4276, %v4275
      %v4286 = vpack.c.b16 %v4278, %v4277
      %v4287 = vpack.c.b16 %v4280, %v4279
      %v4288 = vpack.c.b16 %v4282, %v4281
      %v4295 = vunpack.c.l.b16 %v4213
      %v4296 = vunpack.c.l.b16 %v4214
      %v4297 = vunpack.c.l.b16 %v4215
      %v4298 = vunpack.c.l.b16 %v4216
      %v4299 = vunpack.c.l.b16 %v4217
      %v4300 = vunpack.c.l.b16 %v4218
      %v4301 = vpack.c.b16 %v4296, %v4295
      %v4302 = vpack.c.b16 %v4298, %v4297
      %v4303 = vpack.c.b16 %v4300, %v4299
      %vm4307 = vcmask 392192
      %v4309 = vsel %vm4307, %v4283, 0
      %v4312 = vsel %vm4307, %v4284, 0
      %v4315 = vsel %vm4307, %v4285, 0
      %v4318 = vsel %vm4307, %v4286, 0
      %v4321 = vsel %vm4307, %v4287, 0
      %v4324 = vsel %vm4307, %v4288, 0
      %4326 = vmatpush.bf16.msra.mxu0 0
      %4327 = vmatpush.bf16.msra.mxu0 0
      %4328 = vmatpush.bf16.msra.mxu0 0
      %4329 = vmatpush.bf16.msra.mxu0 0
      %4330 = vmatpush.bf16.msra.mxu0 0
      %4331 = vmatpush.bf16.msra.mxu0 %v4303
      %4332 = vmatpush.bf16.msra.mxu0 %v4302
      %4333 = vmatpush.bf16.msra.mxu0 %v4301
      %4334 = vmatmul.bf16.gmra.mxu0 %v4309
      %v4335 = vpop.f32.mrf.mxu0
      %v4336 = vadd.f32 0.0, %v4335
      %v4337 = vpop.f32.mrf.mxu0
      %v4338 = vadd.f32 0.0, %v4337
      %4339 = vmatmul.bf16.gmra.mxu0 %v4312
      %v4340 = vpop.f32.mrf.mxu0
      %v4341 = vadd.f32 0.0, %v4340
      %v4342 = vpop.f32.mrf.mxu0
      %v4343 = vadd.f32 0.0, %v4342
      %4344 = vmatmul.bf16.gmra.mxu0 %v4315
      %v4345 = vpop.f32.mrf.mxu0
      %v4346 = vadd.f32 0.0, %v4345
      %v4347 = vpop.f32.mrf.mxu0
      %v4348 = vadd.f32 0.0, %v4347
      %4349 = vmatmul.bf16.gmra.mxu0 %v4318
      %v4350 = vpop.f32.mrf.mxu0
      %v4351 = vadd.f32 0.0, %v4350
      %v4352 = vpop.f32.mrf.mxu0
      %v4353 = vadd.f32 0.0, %v4352
      %4354 = vmatmul.bf16.gmra.mxu0 %v4321
      %v4355 = vpop.f32.mrf.mxu0
      %v4356 = vadd.f32 0.0, %v4355
      %v4357 = vpop.f32.mrf.mxu0
      %v4358 = vadd.f32 0.0, %v4357
      %4359 = vmatmul.bf16.gmra.mxu0 %v4324
      %v4360 = vpop.f32.mrf.mxu0
      %v4361 = vadd.f32 0.0, %v4360
      %v4362 = vpop.f32.mrf.mxu0
      %v4363 = vadd.f32 0.0, %v4362
      %4364 = vdwg.mxu0
      %v4369 = vunpack.c.l.b16 %v4243
      %v4370 = vunpack.c.l.b16 %v4244
      %v4371 = vunpack.c.l.b16 %v4245
      %v4372 = vunpack.c.l.b16 %v4246
      %v4373 = vpack.c.b16 %v4370, %v4369
      %v4374 = vpack.c.b16 %v4372, %v4371
      %v4381 = vunpack.c.l.b16 %v4206
      %v4382 = vunpack.c.l.b16 %v4207
      %v4383 = vunpack.c.l.b16 %v4208
      %v4384 = vunpack.c.l.b16 %v4209
      %v4385 = vunpack.c.l.b16 %v4210
      %v4386 = vunpack.c.l.b16 %v4211
      %v4387 = vpack.c.b16 %v4382, %v4381
      %v4388 = vpack.c.b16 %v4384, %v4383
      %v4389 = vpack.c.b16 %v4386, %v4385
      %v4394 = vsel %vm4307, %v4373, 0
      %v4397 = vsel %vm4307, %v4374, 0
      %4399 = vmatpush.bf16.msra.mxu0 0
      %4400 = vmatpush.bf16.msra.mxu0 0
      %4401 = vmatpush.bf16.msra.mxu0 0
      %4402 = vmatpush.bf16.msra.mxu0 0
      %4403 = vmatpush.bf16.msra.mxu0 0
      %4404 = vmatpush.bf16.msra.mxu0 %v4389
      %4405 = vmatpush.bf16.msra.mxu0 %v4388
      %4406 = vmatpush.bf16.msra.mxu0 %v4387
      %4407 = vmatmul.bf16.gmra.mxu0 %v4394
      %v4408 = vpop.f32.mrf.mxu0
      %v4409 = vadd.f32 %v4336, %v4408
      %v4410 = vpop.f32.mrf.mxu0
      %v4411 = vadd.f32 %v4338, %v4410
      %4412 = vmatmul.bf16.gmra.mxu0 %v4397
      %v4413 = vpop.f32.mrf.mxu0
      %v4414 = vadd.f32 %v4341, %v4413
      %v4415 = vpop.f32.mrf.mxu0
      %v4416 = vadd.f32 %v4343, %v4415
      %4417 = vmatmul.bf16.gmra.mxu0 %v4309
      %v4418 = vpop.f32.mrf.mxu0
      %v4419 = vadd.f32 %v4346, %v4418
      %v4420 = vpop.f32.mrf.mxu0
      %v4421 = vadd.f32 %v4348, %v4420
      %4422 = vmatmul.bf16.gmra.mxu0 %v4312
      %v4423 = vpop.f32.mrf.mxu0
      %v4424 = vadd.f32 %v4351, %v4423
      %v4425 = vpop.f32.mrf.mxu0
      %v4426 = vadd.f32 %v4353, %v4425
      %4427 = vmatmul.bf16.gmra.mxu0 %v4315
      %v4428 = vpop.f32.mrf.mxu0
      %v4429 = vadd.f32 %v4356, %v4428
      %v4430 = vpop.f32.mrf.mxu0
      %v4431 = vadd.f32 %v4358, %v4430
      %4432 = vmatmul.bf16.gmra.mxu0 %v4318
      %v4433 = vpop.f32.mrf.mxu0
      %v4434 = vadd.f32 %v4361, %v4433
      %v4435 = vpop.f32.mrf.mxu0
      %v4436 = vadd.f32 %v4363, %v4435
      %4437 = vdwg.mxu0
      %s4438 = sadd.s32 %s4235, 1
      %s4439 = smul.u32 %s4438, 16
      %s4440 = smul.addr %s4439, 4
      %s4441 = scalar_lea.vmem [#allocation5], %s4440
      %v4442 = vld [vmem:[%s4441] sm:$0xf]
      %v4443 = vld [vmem:[%s4441 + $0x4] sm:$0xf]
      %v4444 = vld [vmem:[%s4441 + $0x8] sm:$0xf]
      %v4445 = vld [vmem:[%s4441 + $0xc] sm:$0xf]
      %v4446 = vld [vmem:[%s4441 + $0x10] sm:$0xf]
      %v4447 = vld [vmem:[%s4441 + $0x14] sm:$0xf]
      %v4448 = vld [vmem:[%s4441 + $0x18] sm:$0xf]
      %v4449 = vld [vmem:[%s4441 + $0x1c] sm:$0xf]
      %v4450 = vld [vmem:[%s4441 + $0x20] sm:$0xf]
      %v4451 = vld [vmem:[%s4441 + $0x24] sm:$0xf]
      %v4452 = vld [vmem:[%s4441 + $0x28] sm:$0xf]
      %v4453 = vld [vmem:[%s4441 + $0x2c] sm:$0xf]
      %v4454 = vld [vmem:[%s4441 + $0x30] sm:$0xf]
      %v4455 = vld [vmem:[%s4441 + $0x34] sm:$0xf]
      %v4456 = vld [vmem:[%s4441 + $0x38] sm:$0xf]
      %v4457 = vld [vmem:[%s4441 + $0x3c] sm:$0xf]
      %v4470 = vunpack.c.l.b16 %v4442
      %v4471 = vunpack.c.l.b16 %v4443
      %v4472 = vunpack.c.l.b16 %v4444
      %v4473 = vunpack.c.l.b16 %v4445
      %v4474 = vunpack.c.l.b16 %v4446
      %v4475 = vunpack.c.l.b16 %v4447
      %v4476 = vunpack.c.l.b16 %v4448
      %v4477 = vunpack.c.l.b16 %v4449
      %v4478 = vunpack.c.l.b16 %v4450
      %v4479 = vunpack.c.l.b16 %v4451
      %v4480 = vunpack.c.l.b16 %v4452
      %v4481 = vunpack.c.l.b16 %v4453
      %v4482 = vpack.c.b16 %v4471, %v4470
      %v4483 = vpack.c.b16 %v4473, %v4472
      %v4484 = vpack.c.b16 %v4475, %v4474
      %v4485 = vpack.c.b16 %v4477, %v4476
      %v4486 = vpack.c.b16 %v4479, %v4478
      %v4487 = vpack.c.b16 %v4481, %v4480
      %v4494 = vunpack.c.l.b16 %v4220
      %v4495 = vunpack.c.l.b16 %v4221
      %v4496 = vunpack.c.l.b16 %v4222
      %v4497 = vunpack.c.l.b16 %v4223
      %v4498 = vunpack.c.l.b16 %v4224
      %v4499 = vunpack.c.l.b16 %v4225
      %v4500 = vpack.c.b16 %v4495, %v4494
      %v4501 = vpack.c.b16 %v4497, %v4496
      %v4502 = vpack.c.b16 %v4499, %v4498
      %v4507 = vsel %vm4307, %v4482, 0
      %v4510 = vsel %vm4307, %v4483, 0
      %v4513 = vsel %vm4307, %v4484, 0
      %v4516 = vsel %vm4307, %v4485, 0
      %v4519 = vsel %vm4307, %v4486, 0
      %v4522 = vsel %vm4307, %v4487, 0
      %4524 = vmatpush.bf16.msra.mxu0 0
      %4525 = vmatpush.bf16.msra.mxu0 0
      %4526 = vmatpush.bf16.msra.mxu0 0
      %4527 = vmatpush.bf16.msra.mxu0 0
      %4528 = vmatpush.bf16.msra.mxu0 0
      %4529 = vmatpush.bf16.msra.mxu0 %v4502
      %4530 = vmatpush.bf16.msra.mxu0 %v4501
      %4531 = vmatpush.bf16.msra.mxu0 %v4500
      %4532 = vmatmul.bf16.gmra.mxu0 %v4507
      %v4533 = vpop.f32.mrf.mxu0
      %v4534 = vadd.f32 0.0, %v4533
      %v4535 = vpop.f32.mrf.mxu0
      %v4536 = vadd.f32 0.0, %v4535
      %4537 = vmatmul.bf16.gmra.mxu0 %v4510
      %v4538 = vpop.f32.mrf.mxu0
      %v4539 = vadd.f32 0.0, %v4538
      %v4540 = vpop.f32.mrf.mxu0
      %v4541 = vadd.f32 0.0, %v4540
      %4542 = vmatmul.bf16.gmra.mxu0 %v4513
      %v4543 = vpop.f32.mrf.mxu0
      %v4544 = vadd.f32 0.0, %v4543
      %v4545 = vpop.f32.mrf.mxu0
      %v4546 = vadd.f32 0.0, %v4545
      %4547 = vmatmul.bf16.gmra.mxu0 %v4516
      %v4548 = vpop.f32.mrf.mxu0
      %v4549 = vadd.f32 0.0, %v4548
      %v4550 = vpop.f32.mrf.mxu0
      %v4551 = vadd.f32 0.0, %v4550
      %4552 = vmatmul.bf16.gmra.mxu0 %v4519
      %v4553 = vpop.f32.mrf.mxu0
      %v4554 = vadd.f32 0.0, %v4553
      %v4555 = vpop.f32.mrf.mxu0
      %v4556 = vadd.f32 0.0, %v4555
      %4557 = vmatmul.bf16.gmra.mxu0 %v4522
      %v4558 = vpop.f32.mrf.mxu0
      %v4559 = vadd.f32 0.0, %v4558
      %v4560 = vpop.f32.mrf.mxu0
      %v4561 = vadd.f32 0.0, %v4560
      %4562 = vdwg.mxu0
      %v4563 = vadd.f32 %v4409, %v4534
      %v4564 = vadd.f32 %v4411, %v4536
      %v4565 = vadd.f32 %v4414, %v4539
      %v4566 = vadd.f32 %v4416, %v4541
      %v4567 = vadd.f32 %v4419, %v4544
      %v4568 = vadd.f32 %v4421, %v4546
      %v4569 = vadd.f32 %v4424, %v4549
      %v4570 = vadd.f32 %v4426, %v4551
      %v4571 = vadd.f32 %v4429, %v4554
      %v4572 = vadd.f32 %v4431, %v4556
      %v4573 = vadd.f32 %v4434, %v4559
      %v4574 = vadd.f32 %v4436, %v4561
      %v4579 = vunpack.c.l.b16 %v4454
      %v4580 = vunpack.c.l.b16 %v4455
      %v4581 = vunpack.c.l.b16 %v4456
      %v4582 = vunpack.c.l.b16 %v4457
      %v4583 = vpack.c.b16 %v4580, %v4579
      %v4584 = vpack.c.b16 %v4582, %v4581
      %v4591 = vunpack.c.l.b16 %v4227
      %v4592 = vunpack.c.l.b16 %v4228
      %v4593 = vunpack.c.l.b16 %v4229
      %v4594 = vunpack.c.l.b16 %v4230
      %v4595 = vunpack.c.l.b16 %v4231
      %v4596 = vunpack.c.l.b16 %v4232
      %v4597 = vpack.c.b16 %v4592, %v4591
      %v4598 = vpack.c.b16 %v4594, %v4593
      %v4599 = vpack.c.b16 %v4596, %v4595
      %v4604 = vsel %vm4307, %v4583, 0
      %v4607 = vsel %vm4307, %v4584, 0
      %4609 = vmatpush.bf16.msra.mxu0 0
      %4610 = vmatpush.bf16.msra.mxu0 0
      %4611 = vmatpush.bf16.msra.mxu0 0
      %4612 = vmatpush.bf16.msra.mxu0 0
      %4613 = vmatpush.bf16.msra.mxu0 0
      %4614 = vmatpush.bf16.msra.mxu0 %v4599
      %4615 = vmatpush.bf16.msra.mxu0 %v4598
      %4616 = vmatpush.bf16.msra.mxu0 %v4597
      %4617 = vmatmul.bf16.gmra.mxu0 %v4513
      %v4618 = vpop.f32.mrf.mxu0
      %v4619 = vadd.f32 0.0, %v4618
      %v4620 = vpop.f32.mrf.mxu0
      %v4621 = vadd.f32 0.0, %v4620
      %4622 = vmatmul.bf16.gmra.mxu0 %v4516
      %v4623 = vpop.f32.mrf.mxu0
      %v4624 = vadd.f32 0.0, %v4623
      %v4625 = vpop.f32.mrf.mxu0
      %v4626 = vadd.f32 0.0, %v4625
      %4627 = vmatmul.bf16.gmra.mxu0 %v4519
      %v4628 = vpop.f32.mrf.mxu0
      %v4629 = vadd.f32 0.0, %v4628
      %v4630 = vpop.f32.mrf.mxu0
      %v4631 = vadd.f32 0.0, %v4630
      %4632 = vmatmul.bf16.gmra.mxu0 %v4522
      %v4633 = vpop.f32.mrf.mxu0
      %v4634 = vadd.f32 0.0, %v4633
      %v4635 = vpop.f32.mrf.mxu0
      %v4636 = vadd.f32 0.0, %v4635
      %4637 = vmatmul.bf16.gmra.mxu0 %v4604
      %v4638 = vpop.f32.mrf.mxu0
      %v4639 = vadd.f32 0.0, %v4638
      %v4640 = vpop.f32.mrf.mxu0
      %v4641 = vadd.f32 0.0, %v4640
      %4642 = vmatmul.bf16.gmra.mxu0 %v4607
      %v4643 = vpop.f32.mrf.mxu0
      %v4644 = vadd.f32 0.0, %v4643
      %v4645 = vpop.f32.mrf.mxu0
      %v4646 = vadd.f32 0.0, %v4645
      %4647 = vdwg.mxu0
      %v4648 = vadd.f32 %v4563, %v4619
      %v4649 = vadd.f32 %v4564, %v4621
      %v4650 = vadd.f32 %v4565, %v4624
      %v4651 = vadd.f32 %v4566, %v4626
      %v4652 = vadd.f32 %v4567, %v4629
      %v4653 = vadd.f32 %v4568, %v4631
      %v4654 = vadd.f32 %v4569, %v4634
      %v4655 = vadd.f32 %v4570, %v4636
      %v4656 = vadd.f32 %v4571, %v4639
      %v4657 = vadd.f32 %v4572, %v4641
      %v4658 = vadd.f32 %v4573, %v4644
      %v4659 = vadd.f32 %v4574, %v4646
      %v4661 = vperm.slane %v4233, 0
      %v4663 = vadd.f32 %v4648, %v4661
      %v4664 = vadd.f32 %v4649, %v4661
      %v4665 = vadd.f32 %v4650, %v4661
      %v4666 = vadd.f32 %v4651, %v4661
      %v4667 = vadd.f32 %v4652, %v4661
      %v4668 = vadd.f32 %v4653, %v4661
      %v4669 = vadd.f32 %v4654, %v4661
      %v4670 = vadd.f32 %v4655, %v4661
      %v4671 = vadd.f32 %v4656, %v4661
      %v4672 = vadd.f32 %v4657, %v4661
      %v4673 = vadd.f32 %v4658, %v4661
      %v4674 = vadd.f32 %v4659, %v4661
      %vm4675 = vcmp.ge.f32.partialorder %v4663, 0.0
      %vm4676 = vcmp.ge.f32.partialorder %v4664, 0.0
      %vm4677 = vcmp.ge.f32.partialorder %v4665, 0.0
      %vm4678 = vcmp.ge.f32.partialorder %v4666, 0.0
      %vm4679 = vcmp.ge.f32.partialorder %v4667, 0.0
      %vm4680 = vcmp.ge.f32.partialorder %v4668, 0.0
      %vm4681 = vcmp.ge.f32.partialorder %v4669, 0.0
      %vm4682 = vcmp.ge.f32.partialorder %v4670, 0.0
      %vm4683 = vcmp.ge.f32.partialorder %v4671, 0.0
      %vm4684 = vcmp.ge.f32.partialorder %v4672, 0.0
      %vm4685 = vcmp.ge.f32.partialorder %v4673, 0.0
      %vm4686 = vcmp.ge.f32.partialorder %v4674, 0.0
      %v4687 = vstv %s58
      %v4688 = vmul.f32 %v4687, %v4663
      %v4689 = vmul.f32 %v4687, %v4664
      %v4690 = vmul.f32 %v4687, %v4665
      %v4691 = vmul.f32 %v4687, %v4666
      %v4692 = vmul.f32 %v4687, %v4667
      %v4693 = vmul.f32 %v4687, %v4668
      %v4694 = vmul.f32 %v4687, %v4669
      %v4695 = vmul.f32 %v4687, %v4670
      %v4696 = vmul.f32 %v4687, %v4671
      %v4697 = vmul.f32 %v4687, %v4672
      %v4698 = vmul.f32 %v4687, %v4673
      %v4699 = vmul.f32 %v4687, %v4674
      %v4700 = vsel %vm4675, %v4663, %v4688
      %v4701 = vsel %vm4676, %v4664, %v4689
      %v4702 = vsel %vm4677, %v4665, %v4690
      %v4703 = vsel %vm4678, %v4666, %v4691
      %v4704 = vsel %vm4679, %v4667, %v4692
      %v4705 = vsel %vm4680, %v4668, %v4693
      %v4706 = vsel %vm4681, %v4669, %v4694
      %v4707 = vsel %vm4682, %v4670, %v4695
      %v4708 = vsel %vm4683, %v4671, %v4696
      %v4709 = vsel %vm4684, %v4672, %v4697
      %v4710 = vsel %vm4685, %v4673, %v4698
      %v4711 = vsel %vm4686, %v4674, %v4699
      %v4712 = vpack.c.bf16 %v4700, %v4700
      %v4713 = vpack.c.bf16 %v4701, %v4701
      %v4714 = vpack.c.bf16 %v4702, %v4702
      %v4715 = vpack.c.bf16 %v4703, %v4703
      %v4716 = vpack.c.bf16 %v4704, %v4704
      %v4717 = vpack.c.bf16 %v4705, %v4705
      %v4718 = vpack.c.bf16 %v4706, %v4706
      %v4719 = vpack.c.bf16 %v4707, %v4707
      %v4720 = vpack.c.bf16 %v4708, %v4708
      %v4721 = vpack.c.bf16 %v4709, %v4709
      %v4722 = vpack.c.bf16 %v4710, %v4710
      %v4723 = vpack.c.bf16 %v4711, %v4711
      %s4724 = smul.u32 %s4235, 12
      %s4725 = smul.addr %s4724, 4
      %s4726 = scalar_lea.vmem [#allocation6], %s4725
      %vm4727 = vcmask 519168
      %4728 = vst.msk [vmem:[%s4726] sm:$0xf] %vm4727, %v4712
      %4729 = vst.msk [vmem:[%s4726 + $0x4] sm:$0xf] %vm4727, %v4713
      %4730 = vst.msk [vmem:[%s4726 + $0x8] sm:$0xf] %vm4727, %v4714
      %4731 = vst.msk [vmem:[%s4726 + $0xc] sm:$0xf] %vm4727, %v4715
      %4732 = vst.msk [vmem:[%s4726 + $0x10] sm:$0xf] %vm4727, %v4716
      %4733 = vst.msk [vmem:[%s4726 + $0x14] sm:$0xf] %vm4727, %v4717
      %4734 = vst.msk [vmem:[%s4726 + $0x18] sm:$0xf] %vm4727, %v4718
      %4735 = vst.msk [vmem:[%s4726 + $0x1c] sm:$0xf] %vm4727, %v4719
      %4736 = vst.msk [vmem:[%s4726 + $0x20] sm:$0xf] %vm4727, %v4720
      %4737 = vst.msk [vmem:[%s4726 + $0x24] sm:$0xf] %vm4727, %v4721
      %4738 = vst.msk [vmem:[%s4726 + $0x28] sm:$0xf] %vm4727, %v4722
      %4739 = vst.msk [vmem:[%s4726 + $0x2c] sm:$0xf] %vm4727, %v4723
    $region86: #{tpu_custom_call.1} parent=1 // loop_footer
      %s4239 = sadd.s32 1, %s4235
    $region87: #{tpu_custom_call.1} parent=1 // loop_footer_branch
      %4234 = sbr.rel target = $region83
    $region88: #{tpu_custom_call.1} parent=1 // loop_exit
      _
    %v4740 = vld [vmem:[#allocation6] sm:$0xf]
    %v4741 = vld [vmem:[#allocation6 + $0x4] sm:$0xf]
    %v4742 = vld [vmem:[#allocation6 + $0x8] sm:$0xf]
    %v4743 = vld [vmem:[#allocation6 + $0xc] sm:$0xf]
    %v4744 = vld [vmem:[%s8] sm:$0xf]
    %v4745 = vld [vmem:[%s8 + $0x4] sm:$0xf]
    %v4746 = vld [vmem:[%s8 + $0x8] sm:$0xf]
    %v4747 = vld [vmem:[%s8 + $0xc] sm:$0xf]
    %v4748 = vld [vmem:[%s8 + $0x10] sm:$0xf]
    %v4749 = vld [vmem:[%s8 + $0x14] sm:$0xf]
    %v4750 = vld [vmem:[%s8 + $0x18] sm:$0xf]
    %v4751 = vld [vmem:[%s8 + $0x1c] sm:$0xf]
    %s4752 = scalar_lea.vmem [#allocation6], 16
    %v4753 = vld [vmem:[%s4752] sm:$0xf]
    %v4754 = vld [vmem:[%s4752 + $0x4] sm:$0xf]
    %v4755 = vld [vmem:[%s4752 + $0x8] sm:$0xf]
    %v4756 = vld [vmem:[%s4752 + $0xc] sm:$0xf]
    %s4757 = scalar_lea.vmem %s8, 32
    %v4758 = vld [vmem:[%s4757] sm:$0xf]
    %v4759 = vld [vmem:[%s4757 + $0x4] sm:$0xf]
    %v4760 = vld [vmem:[%s4757 + $0x8] sm:$0xf]
    %v4761 = vld [vmem:[%s4757 + $0xc] sm:$0xf]
    %v4762 = vld [vmem:[%s4757 + $0x10] sm:$0xf]
    %v4763 = vld [vmem:[%s4757 + $0x14] sm:$0xf]
    %v4764 = vld [vmem:[%s4757 + $0x18] sm:$0xf]
    %v4765 = vld [vmem:[%s4757 + $0x1c] sm:$0xf]
    %v4770 = vunpack.c.l.b16 %v4753
    %v4771 = vunpack.c.l.b16 %v4754
    %v4772 = vunpack.c.l.b16 %v4755
    %v4773 = vunpack.c.l.b16 %v4756
    %v4774 = vpack.c.b16 %v4771, %v4770
    %v4775 = vpack.c.b16 %v4773, %v4772
    %v4784 = vunpack.c.l.b16 %v4758
    %v4785 = vunpack.c.l.b16 %v4759
    %v4786 = vunpack.c.l.b16 %v4760
    %v4787 = vunpack.c.l.b16 %v4761
    %v4788 = vunpack.c.l.b16 %v4762
    %v4789 = vunpack.c.l.b16 %v4763
    %v4790 = vunpack.c.l.b16 %v4764
    %v4791 = vunpack.c.l.b16 %v4765
    %v4792 = vpack.c.b16 %v4785, %v4784
    %v4793 = vpack.c.b16 %v4787, %v4786
    %v4794 = vpack.c.b16 %v4789, %v4788
    %v4795 = vpack.c.b16 %v4791, %v4790
    %vm4800 = vcmask 523264
    %v4802 = vsel %vm4800, %v4774, 0
    %v4805 = vsel %vm4800, %v4775, 0
    %4807 = vmatpush.bf16.msra.mxu0 0
    %4808 = vmatpush.bf16.msra.mxu0 0
    %4809 = vmatpush.bf16.msra.mxu0 0
    %4810 = vmatpush.bf16.msra.mxu0 0
    %4811 = vmatpush.bf16.msra.mxu0 %v4795
    %4812 = vmatpush.bf16.msra.mxu0 %v4794
    %4813 = vmatpush.bf16.msra.mxu0 %v4793
    %4814 = vmatpush.bf16.msra.mxu0 %v4792
    %4815 = vmatmul.bf16.gmra.mxu0 %v4802
    %v4816 = vpop.f32.mrf.mxu0
    %v4817 = vadd.f32 0.0, %v4816
    %v4818 = vpop.f32.mrf.mxu0
    %v4819 = vadd.f32 0.0, %v4818
    %4820 = vmatmul.bf16.gmra.mxu0 %v4805
    %v4821 = vpop.f32.mrf.mxu0
    %v4822 = vadd.f32 0.0, %v4821
    %v4823 = vpop.f32.mrf.mxu0
    %v4824 = vadd.f32 0.0, %v4823
    %4825 = vdwg.mxu0
    %v4830 = vunpack.c.l.b16 %v4740
    %v4831 = vunpack.c.l.b16 %v4741
    %v4832 = vunpack.c.l.b16 %v4742
    %v4833 = vunpack.c.l.b16 %v4743
    %v4834 = vpack.c.b16 %v4831, %v4830
    %v4835 = vpack.c.b16 %v4833, %v4832
    %v4844 = vunpack.c.l.b16 %v4744
    %v4845 = vunpack.c.l.b16 %v4745
    %v4846 = vunpack.c.l.b16 %v4746
    %v4847 = vunpack.c.l.b16 %v4747
    %v4848 = vunpack.c.l.b16 %v4748
    %v4849 = vunpack.c.l.b16 %v4749
    %v4850 = vunpack.c.l.b16 %v4750
    %v4851 = vunpack.c.l.b16 %v4751
    %v4852 = vpack.c.b16 %v4845, %v4844
    %v4853 = vpack.c.b16 %v4847, %v4846
    %v4854 = vpack.c.b16 %v4849, %v4848
    %v4855 = vpack.c.b16 %v4851, %v4850
    %v4861 = vsel %vm4800, %v4834, 0
    %v4864 = vsel %vm4800, %v4835, 0
    %4866 = vmatpush.bf16.msra.mxu0 0
    %4867 = vmatpush.bf16.msra.mxu0 0
    %4868 = vmatpush.bf16.msra.mxu0 0
    %4869 = vmatpush.bf16.msra.mxu0 0
    %4870 = vmatpush.bf16.msra.mxu0 %v4855
    %4871 = vmatpush.bf16.msra.mxu0 %v4854
    %4872 = vmatpush.bf16.msra.mxu0 %v4853
    %4873 = vmatpush.bf16.msra.mxu0 %v4852
    %4874 = vmatmul.bf16.gmra.mxu0 %v4861
    %v4875 = vpop.f32.mrf.mxu0
    %v4876 = vadd.f32 %v4817, %v4875
    %v4877 = vpop.f32.mrf.mxu0
    %v4878 = vadd.f32 %v4819, %v4877
    %4879 = vmatmul.bf16.gmra.mxu0 %v4864
    %v4880 = vpop.f32.mrf.mxu0
    %v4881 = vadd.f32 %v4822, %v4880
    %v4882 = vpop.f32.mrf.mxu0
    %v4883 = vadd.f32 %v4824, %v4882
    %4884 = vdwg.mxu0
    %s4885 = scalar_lea.vmem [#allocation6], 32
    %v4886 = vld [vmem:[%s4885] sm:$0xf]
    %v4887 = vld [vmem:[%s4885 + $0x4] sm:$0xf]
    %v4888 = vld [vmem:[%s4885 + $0x8] sm:$0xf]
    %v4889 = vld [vmem:[%s4885 + $0xc] sm:$0xf]
    %s4890 = scalar_lea.vmem %s8, 64
    %v4891 = vld [vmem:[%s4890] sm:$0xf]
    %v4892 = vld [vmem:[%s4890 + $0x4] sm:$0xf]
    %v4893 = vld [vmem:[%s4890 + $0x8] sm:$0xf]
    %v4894 = vld [vmem:[%s4890 + $0xc] sm:$0xf]
    %v4895 = vld [vmem:[%s4890 + $0x10] sm:$0xf]
    %v4896 = vld [vmem:[%s4890 + $0x14] sm:$0xf]
    %v4897 = vld [vmem:[%s4890 + $0x18] sm:$0xf]
    %v4898 = vld [vmem:[%s4890 + $0x1c] sm:$0xf]
    %v4903 = vunpack.c.l.b16 %v4886
    %v4904 = vunpack.c.l.b16 %v4887
    %v4905 = vunpack.c.l.b16 %v4888
    %v4906 = vunpack.c.l.b16 %v4889
    %v4907 = vpack.c.b16 %v4904, %v4903
    %v4908 = vpack.c.b16 %v4906, %v4905
    %v4917 = vunpack.c.l.b16 %v4891
    %v4918 = vunpack.c.l.b16 %v4892
    %v4919 = vunpack.c.l.b16 %v4893
    %v4920 = vunpack.c.l.b16 %v4894
    %v4921 = vunpack.c.l.b16 %v4895
    %v4922 = vunpack.c.l.b16 %v4896
    %v4923 = vunpack.c.l.b16 %v4897
    %v4924 = vunpack.c.l.b16 %v4898
    %v4925 = vpack.c.b16 %v4918, %v4917
    %v4926 = vpack.c.b16 %v4920, %v4919
    %v4927 = vpack.c.b16 %v4922, %v4921
    %v4928 = vpack.c.b16 %v4924, %v4923
    %v4934 = vsel %vm4800, %v4907, 0
    %v4937 = vsel %vm4800, %v4908, 0
    %4939 = vmatpush.bf16.msra.mxu0 0
    %4940 = vmatpush.bf16.msra.mxu0 0
    %4941 = vmatpush.bf16.msra.mxu0 0
    %4942 = vmatpush.bf16.msra.mxu0 0
    %4943 = vmatpush.bf16.msra.mxu0 %v4928
    %4944 = vmatpush.bf16.msra.mxu0 %v4927
    %4945 = vmatpush.bf16.msra.mxu0 %v4926
    %4946 = vmatpush.bf16.msra.mxu0 %v4925
    %4947 = vmatmul.bf16.gmra.mxu0 %v4934
    %v4948 = vpop.f32.mrf.mxu0
    %v4949 = vadd.f32 0.0, %v4948
    %v4950 = vpop.f32.mrf.mxu0
    %v4951 = vadd.f32 0.0, %v4950
    %4952 = vmatmul.bf16.gmra.mxu0 %v4937
    %v4953 = vpop.f32.mrf.mxu0
    %v4954 = vadd.f32 0.0, %v4953
    %v4955 = vpop.f32.mrf.mxu0
    %v4956 = vadd.f32 0.0, %v4955
    %4957 = vdwg.mxu0
    %v4958 = vadd.f32 %v4876, %v4949
    %v4959 = vadd.f32 %v4878, %v4951
    %v4960 = vadd.f32 %v4881, %v4954
    %v4961 = vadd.f32 %v4883, %v4956
    %s4962 = scalar_lea.vmem [#allocation6], 48
    %v4963 = vld [vmem:[%s4962] sm:$0xf]
    %v4964 = vld [vmem:[%s4962 + $0x4] sm:$0xf]
    %v4965 = vld [vmem:[%s4962 + $0x8] sm:$0xf]
    %v4966 = vld [vmem:[%s4962 + $0xc] sm:$0xf]
    %s4967 = scalar_lea.vmem %s8, 96
    %v4968 = vld [vmem:[%s4967] sm:$0xf]
    %v4969 = vld [vmem:[%s4967 + $0x4] sm:$0xf]
    %v4970 = vld [vmem:[%s4967 + $0x8] sm:$0xf]
    %v4971 = vld [vmem:[%s4967 + $0xc] sm:$0xf]
    %v4972 = vld [vmem:[%s4967 + $0x10] sm:$0xf]
    %v4973 = vld [vmem:[%s4967 + $0x14] sm:$0xf]
    %v4974 = vld [vmem:[%s4967 + $0x18] sm:$0xf]
    %v4975 = vld [vmem:[%s4967 + $0x1c] sm:$0xf]
    %v4980 = vunpack.c.l.b16 %v4963
    %v4981 = vunpack.c.l.b16 %v4964
    %v4982 = vunpack.c.l.b16 %v4965
    %v4983 = vunpack.c.l.b16 %v4966
    %v4984 = vpack.c.b16 %v4981, %v4980
    %v4985 = vpack.c.b16 %v4983, %v4982
    %v4994 = vunpack.c.l.b16 %v4968
    %v4995 = vunpack.c.l.b16 %v4969
    %v4996 = vunpack.c.l.b16 %v4970
    %v4997 = vunpack.c.l.b16 %v4971
    %v4998 = vunpack.c.l.b16 %v4972
    %v4999 = vunpack.c.l.b16 %v4973
    %v5000 = vunpack.c.l.b16 %v4974
    %v5001 = vunpack.c.l.b16 %v4975
    %v5002 = vpack.c.b16 %v4995, %v4994
    %v5003 = vpack.c.b16 %v4997, %v4996
    %v5004 = vpack.c.b16 %v4999, %v4998
    %v5005 = vpack.c.b16 %v5001, %v5000
    %v5011 = vsel %vm4800, %v4984, 0
    %v5014 = vsel %vm4800, %v4985, 0
    %5016 = vmatpush.bf16.msra.mxu0 0
    %5017 = vmatpush.bf16.msra.mxu0 0
    %5018 = vmatpush.bf16.msra.mxu0 0
    %5019 = vmatpush.bf16.msra.mxu0 0
    %5020 = vmatpush.bf16.msra.mxu0 %v5005
    %5021 = vmatpush.bf16.msra.mxu0 %v5004
    %5022 = vmatpush.bf16.msra.mxu0 %v5003
    %5023 = vmatpush.bf16.msra.mxu0 %v5002
    %5024 = vmatmul.bf16.gmra.mxu0 %v5011
    %v5025 = vpop.f32.mrf.mxu0
    %v5026 = vadd.f32 0.0, %v5025
    %v5027 = vpop.f32.mrf.mxu0
    %v5028 = vadd.f32 0.0, %v5027
    %5029 = vmatmul.bf16.gmra.mxu0 %v5014
    %v5030 = vpop.f32.mrf.mxu0
    %v5031 = vadd.f32 0.0, %v5030
    %v5032 = vpop.f32.mrf.mxu0
    %v5033 = vadd.f32 0.0, %v5032
    %5034 = vdwg.mxu0
    %v5035 = vadd.f32 %v4958, %v5026
    %v5036 = vadd.f32 %v4959, %v5028
    %v5037 = vadd.f32 %v4960, %v5031
    %v5038 = vadd.f32 %v4961, %v5033
    %s5039 = scalar_lea.vmem [#allocation6], 64
    %v5040 = vld [vmem:[%s5039] sm:$0xf]
    %v5041 = vld [vmem:[%s5039 + $0x4] sm:$0xf]
    %v5042 = vld [vmem:[%s5039 + $0x8] sm:$0xf]
    %v5043 = vld [vmem:[%s5039 + $0xc] sm:$0xf]
    %s5044 = scalar_lea.vmem %s8, 128
    %v5045 = vld [vmem:[%s5044] sm:$0xf]
    %v5046 = vld [vmem:[%s5044 + $0x4] sm:$0xf]
    %v5047 = vld [vmem:[%s5044 + $0x8] sm:$0xf]
    %v5048 = vld [vmem:[%s5044 + $0xc] sm:$0xf]
    %v5049 = vld [vmem:[%s5044 + $0x10] sm:$0xf]
    %v5050 = vld [vmem:[%s5044 + $0x14] sm:$0xf]
    %v5051 = vld [vmem:[%s5044 + $0x18] sm:$0xf]
    %v5052 = vld [vmem:[%s5044 + $0x1c] sm:$0xf]
    %v5057 = vunpack.c.l.b16 %v5040
    %v5058 = vunpack.c.l.b16 %v5041
    %v5059 = vunpack.c.l.b16 %v5042
    %v5060 = vunpack.c.l.b16 %v5043
    %v5061 = vpack.c.b16 %v5058, %v5057
    %v5062 = vpack.c.b16 %v5060, %v5059
    %v5071 = vunpack.c.l.b16 %v5045
    %v5072 = vunpack.c.l.b16 %v5046
    %v5073 = vunpack.c.l.b16 %v5047
    %v5074 = vunpack.c.l.b16 %v5048
    %v5075 = vunpack.c.l.b16 %v5049
    %v5076 = vunpack.c.l.b16 %v5050
    %v5077 = vunpack.c.l.b16 %v5051
    %v5078 = vunpack.c.l.b16 %v5052
    %v5079 = vpack.c.b16 %v5072, %v5071
    %v5080 = vpack.c.b16 %v5074, %v5073
    %v5081 = vpack.c.b16 %v5076, %v5075
    %v5082 = vpack.c.b16 %v5078, %v5077
    %v5088 = vsel %vm4800, %v5061, 0
    %v5091 = vsel %vm4800, %v5062, 0
    %5093 = vmatpush.bf16.msra.mxu0 0
    %5094 = vmatpush.bf16.msra.mxu0 0
    %5095 = vmatpush.bf16.msra.mxu0 0
    %5096 = vmatpush.bf16.msra.mxu0 0
    %5097 = vmatpush.bf16.msra.mxu0 %v5082
    %5098 = vmatpush.bf16.msra.mxu0 %v5081
    %5099 = vmatpush.bf16.msra.mxu0 %v5080
    %5100 = vmatpush.bf16.msra.mxu0 %v5079
    %5101 = vmatmul.bf16.gmra.mxu0 %v5088
    %v5102 = vpop.f32.mrf.mxu0
    %v5103 = vadd.f32 0.0, %v5102
    %v5104 = vpop.f32.mrf.mxu0
    %v5105 = vadd.f32 0.0, %v5104
    %5106 = vmatmul.bf16.gmra.mxu0 %v5091
    %v5107 = vpop.f32.mrf.mxu0
    %v5108 = vadd.f32 0.0, %v5107
    %v5109 = vpop.f32.mrf.mxu0
    %v5110 = vadd.f32 0.0, %v5109
    %5111 = vdwg.mxu0
    %v5112 = vadd.f32 %v5035, %v5103
    %v5113 = vadd.f32 %v5036, %v5105
    %v5114 = vadd.f32 %v5037, %v5108
    %v5115 = vadd.f32 %v5038, %v5110
    %s5116 = scalar_lea.vmem [#allocation6], 80
    %v5117 = vld [vmem:[%s5116] sm:$0xf]
    %v5118 = vld [vmem:[%s5116 + $0x4] sm:$0xf]
    %v5119 = vld [vmem:[%s5116 + $0x8] sm:$0xf]
    %v5120 = vld [vmem:[%s5116 + $0xc] sm:$0xf]
    %s5121 = scalar_lea.vmem %s8, 160
    %v5122 = vld [vmem:[%s5121] sm:$0xf]
    %v5123 = vld [vmem:[%s5121 + $0x4] sm:$0xf]
    %v5124 = vld [vmem:[%s5121 + $0x8] sm:$0xf]
    %v5125 = vld [vmem:[%s5121 + $0xc] sm:$0xf]
    %v5126 = vld [vmem:[%s5121 + $0x10] sm:$0xf]
    %v5127 = vld [vmem:[%s5121 + $0x14] sm:$0xf]
    %v5128 = vld [vmem:[%s5121 + $0x18] sm:$0xf]
    %v5129 = vld [vmem:[%s5121 + $0x1c] sm:$0xf]
    %v5134 = vunpack.c.l.b16 %v5117
    %v5135 = vunpack.c.l.b16 %v5118
    %v5136 = vunpack.c.l.b16 %v5119
    %v5137 = vunpack.c.l.b16 %v5120
    %v5138 = vpack.c.b16 %v5135, %v5134
    %v5139 = vpack.c.b16 %v5137, %v5136
    %v5148 = vunpack.c.l.b16 %v5122
    %v5149 = vunpack.c.l.b16 %v5123
    %v5150 = vunpack.c.l.b16 %v5124
    %v5151 = vunpack.c.l.b16 %v5125
    %v5152 = vunpack.c.l.b16 %v5126
    %v5153 = vunpack.c.l.b16 %v5127
    %v5154 = vunpack.c.l.b16 %v5128
    %v5155 = vunpack.c.l.b16 %v5129
    %v5156 = vpack.c.b16 %v5149, %v5148
    %v5157 = vpack.c.b16 %v5151, %v5150
    %v5158 = vpack.c.b16 %v5153, %v5152
    %v5159 = vpack.c.b16 %v5155, %v5154
    %v5165 = vsel %vm4800, %v5138, 0
    %v5168 = vsel %vm4800, %v5139, 0
    %5170 = vmatpush.bf16.msra.mxu0 0
    %5171 = vmatpush.bf16.msra.mxu0 0
    %5172 = vmatpush.bf16.msra.mxu0 0
    %5173 = vmatpush.bf16.msra.mxu0 0
    %5174 = vmatpush.bf16.msra.mxu0 %v5159
    %5175 = vmatpush.bf16.msra.mxu0 %v5158
    %5176 = vmatpush.bf16.msra.mxu0 %v5157
    %5177 = vmatpush.bf16.msra.mxu0 %v5156
    %5178 = vmatmul.bf16.gmra.mxu0 %v5165
    %v5179 = vpop.f32.mrf.mxu0
    %v5180 = vadd.f32 0.0, %v5179
    %v5181 = vpop.f32.mrf.mxu0
    %v5182 = vadd.f32 0.0, %v5181
    %5183 = vmatmul.bf16.gmra.mxu0 %v5168
    %v5184 = vpop.f32.mrf.mxu0
    %v5185 = vadd.f32 0.0, %v5184
    %v5186 = vpop.f32.mrf.mxu0
    %v5187 = vadd.f32 0.0, %v5186
    %5188 = vdwg.mxu0
    %v5189 = vadd.f32 %v5112, %v5180
    %v5190 = vadd.f32 %v5113, %v5182
    %v5191 = vadd.f32 %v5114, %v5185
    %v5192 = vadd.f32 %v5115, %v5187
    %s5193 = scalar_lea.vmem [#allocation6], 96
    %v5194 = vld [vmem:[%s5193] sm:$0xf]
    %v5195 = vld [vmem:[%s5193 + $0x4] sm:$0xf]
    %v5196 = vld [vmem:[%s5193 + $0x8] sm:$0xf]
    %v5197 = vld [vmem:[%s5193 + $0xc] sm:$0xf]
    %s5198 = scalar_lea.vmem %s8, 192
    %v5199 = vld [vmem:[%s5198] sm:$0xf]
    %v5200 = vld [vmem:[%s5198 + $0x4] sm:$0xf]
    %v5201 = vld [vmem:[%s5198 + $0x8] sm:$0xf]
    %v5202 = vld [vmem:[%s5198 + $0xc] sm:$0xf]
    %v5203 = vld [vmem:[%s5198 + $0x10] sm:$0xf]
    %v5204 = vld [vmem:[%s5198 + $0x14] sm:$0xf]
    %v5205 = vld [vmem:[%s5198 + $0x18] sm:$0xf]
    %v5206 = vld [vmem:[%s5198 + $0x1c] sm:$0xf]
    %v5211 = vunpack.c.l.b16 %v5194
    %v5212 = vunpack.c.l.b16 %v5195
    %v5213 = vunpack.c.l.b16 %v5196
    %v5214 = vunpack.c.l.b16 %v5197
    %v5215 = vpack.c.b16 %v5212, %v5211
    %v5216 = vpack.c.b16 %v5214, %v5213
    %v5225 = vunpack.c.l.b16 %v5199
    %v5226 = vunpack.c.l.b16 %v5200
    %v5227 = vunpack.c.l.b16 %v5201
    %v5228 = vunpack.c.l.b16 %v5202
    %v5229 = vunpack.c.l.b16 %v5203
    %v5230 = vunpack.c.l.b16 %v5204
    %v5231 = vunpack.c.l.b16 %v5205
    %v5232 = vunpack.c.l.b16 %v5206
    %v5233 = vpack.c.b16 %v5226, %v5225
    %v5234 = vpack.c.b16 %v5228, %v5227
    %v5235 = vpack.c.b16 %v5230, %v5229
    %v5236 = vpack.c.b16 %v5232, %v5231
    %v5242 = vsel %vm4800, %v5215, 0
    %v5245 = vsel %vm4800, %v5216, 0
    %5247 = vmatpush.bf16.msra.mxu0 0
    %5248 = vmatpush.bf16.msra.mxu0 0
    %5249 = vmatpush.bf16.msra.mxu0 0
    %5250 = vmatpush.bf16.msra.mxu0 0
    %5251 = vmatpush.bf16.msra.mxu0 %v5236
    %5252 = vmatpush.bf16.msra.mxu0 %v5235
    %5253 = vmatpush.bf16.msra.mxu0 %v5234
    %5254 = vmatpush.bf16.msra.mxu0 %v5233
    %5255 = vmatmul.bf16.gmra.mxu0 %v5242
    %v5256 = vpop.f32.mrf.mxu0
    %v5257 = vadd.f32 0.0, %v5256
    %v5258 = vpop.f32.mrf.mxu0
    %v5259 = vadd.f32 0.0, %v5258
    %5260 = vmatmul.bf16.gmra.mxu0 %v5245
    %v5261 = vpop.f32.mrf.mxu0
    %v5262 = vadd.f32 0.0, %v5261
    %v5263 = vpop.f32.mrf.mxu0
    %v5264 = vadd.f32 0.0, %v5263
    %5265 = vdwg.mxu0
    %v5266 = vadd.f32 %v5189, %v5257
    %v5267 = vadd.f32 %v5190, %v5259
    %v5268 = vadd.f32 %v5191, %v5262
    %v5269 = vadd.f32 %v5192, %v5264
    %s5270 = scalar_lea.vmem [#allocation6], 112
    %v5271 = vld [vmem:[%s5270] sm:$0xf]
    %v5272 = vld [vmem:[%s5270 + $0x4] sm:$0xf]
    %v5273 = vld [vmem:[%s5270 + $0x8] sm:$0xf]
    %v5274 = vld [vmem:[%s5270 + $0xc] sm:$0xf]
    %s5275 = scalar_lea.vmem %s8, 224
    %v5276 = vld [vmem:[%s5275] sm:$0xf]
    %v5277 = vld [vmem:[%s5275 + $0x4] sm:$0xf]
    %v5278 = vld [vmem:[%s5275 + $0x8] sm:$0xf]
    %v5279 = vld [vmem:[%s5275 + $0xc] sm:$0xf]
    %v5280 = vld [vmem:[%s5275 + $0x10] sm:$0xf]
    %v5281 = vld [vmem:[%s5275 + $0x14] sm:$0xf]
    %v5282 = vld [vmem:[%s5275 + $0x18] sm:$0xf]
    %v5283 = vld [vmem:[%s5275 + $0x1c] sm:$0xf]
    %v5288 = vunpack.c.l.b16 %v5271
    %v5289 = vunpack.c.l.b16 %v5272
    %v5290 = vunpack.c.l.b16 %v5273
    %v5291 = vunpack.c.l.b16 %v5274
    %v5292 = vpack.c.b16 %v5289, %v5288
    %v5293 = vpack.c.b16 %v5291, %v5290
    %v5302 = vunpack.c.l.b16 %v5276
    %v5303 = vunpack.c.l.b16 %v5277
    %v5304 = vunpack.c.l.b16 %v5278
    %v5305 = vunpack.c.l.b16 %v5279
    %v5306 = vunpack.c.l.b16 %v5280
    %v5307 = vunpack.c.l.b16 %v5281
    %v5308 = vunpack.c.l.b16 %v5282
    %v5309 = vunpack.c.l.b16 %v5283
    %v5310 = vpack.c.b16 %v5303, %v5302
    %v5311 = vpack.c.b16 %v5305, %v5304
    %v5312 = vpack.c.b16 %v5307, %v5306
    %v5313 = vpack.c.b16 %v5309, %v5308
    %v5319 = vsel %vm4800, %v5292, 0
    %v5322 = vsel %vm4800, %v5293, 0
    %5324 = vmatpush.bf16.msra.mxu0 0
    %5325 = vmatpush.bf16.msra.mxu0 0
    %5326 = vmatpush.bf16.msra.mxu0 0
    %5327 = vmatpush.bf16.msra.mxu0 0
    %5328 = vmatpush.bf16.msra.mxu0 %v5313
    %5329 = vmatpush.bf16.msra.mxu0 %v5312
    %5330 = vmatpush.bf16.msra.mxu0 %v5311
    %5331 = vmatpush.bf16.msra.mxu0 %v5310
    %5332 = vmatmul.bf16.gmra.mxu0 %v5319
    %v5333 = vpop.f32.mrf.mxu0
    %v5334 = vadd.f32 0.0, %v5333
    %v5335 = vpop.f32.mrf.mxu0
    %v5336 = vadd.f32 0.0, %v5335
    %5337 = vmatmul.bf16.gmra.mxu0 %v5322
    %v5338 = vpop.f32.mrf.mxu0
    %v5339 = vadd.f32 0.0, %v5338
    %v5340 = vpop.f32.mrf.mxu0
    %v5341 = vadd.f32 0.0, %v5340
    %5342 = vdwg.mxu0
    %v5343 = vadd.f32 %v5266, %v5334
    %v5344 = vadd.f32 %v5267, %v5336
    %v5345 = vadd.f32 %v5268, %v5339
    %v5346 = vadd.f32 %v5269, %v5341
    %s5347 = scalar_lea.vmem [#allocation6], 128
    %v5348 = vld [vmem:[%s5347] sm:$0xf]
    %v5349 = vld [vmem:[%s5347 + $0x4] sm:$0xf]
    %v5350 = vld [vmem:[%s5347 + $0x8] sm:$0xf]
    %v5351 = vld [vmem:[%s5347 + $0xc] sm:$0xf]
    %s5352 = scalar_lea.vmem %s8, 256
    %v5353 = vld [vmem:[%s5352] sm:$0xf]
    %v5354 = vld [vmem:[%s5352 + $0x4] sm:$0xf]
    %v5355 = vld [vmem:[%s5352 + $0x8] sm:$0xf]
    %v5356 = vld [vmem:[%s5352 + $0xc] sm:$0xf]
    %v5357 = vld [vmem:[%s5352 + $0x10] sm:$0xf]
    %v5358 = vld [vmem:[%s5352 + $0x14] sm:$0xf]
    %v5359 = vld [vmem:[%s5352 + $0x18] sm:$0xf]
    %v5360 = vld [vmem:[%s5352 + $0x1c] sm:$0xf]
    %v5365 = vunpack.c.l.b16 %v5348
    %v5366 = vunpack.c.l.b16 %v5349
    %v5367 = vunpack.c.l.b16 %v5350
    %v5368 = vunpack.c.l.b16 %v5351
    %v5369 = vpack.c.b16 %v5366, %v5365
    %v5370 = vpack.c.b16 %v5368, %v5367
    %v5379 = vunpack.c.l.b16 %v5353
    %v5380 = vunpack.c.l.b16 %v5354
    %v5381 = vunpack.c.l.b16 %v5355
    %v5382 = vunpack.c.l.b16 %v5356
    %v5383 = vunpack.c.l.b16 %v5357
    %v5384 = vunpack.c.l.b16 %v5358
    %v5385 = vunpack.c.l.b16 %v5359
    %v5386 = vunpack.c.l.b16 %v5360
    %v5387 = vpack.c.b16 %v5380, %v5379
    %v5388 = vpack.c.b16 %v5382, %v5381
    %v5389 = vpack.c.b16 %v5384, %v5383
    %v5390 = vpack.c.b16 %v5386, %v5385
    %v5396 = vsel %vm4800, %v5369, 0
    %v5399 = vsel %vm4800, %v5370, 0
    %5401 = vmatpush.bf16.msra.mxu0 0
    %5402 = vmatpush.bf16.msra.mxu0 0
    %5403 = vmatpush.bf16.msra.mxu0 0
    %5404 = vmatpush.bf16.msra.mxu0 0
    %5405 = vmatpush.bf16.msra.mxu0 %v5390
    %5406 = vmatpush.bf16.msra.mxu0 %v5389
    %5407 = vmatpush.bf16.msra.mxu0 %v5388
    %5408 = vmatpush.bf16.msra.mxu0 %v5387
    %5409 = vmatmul.bf16.gmra.mxu0 %v5396
    %v5410 = vpop.f32.mrf.mxu0
    %v5411 = vadd.f32 0.0, %v5410
    %v5412 = vpop.f32.mrf.mxu0
    %v5413 = vadd.f32 0.0, %v5412
    %5414 = vmatmul.bf16.gmra.mxu0 %v5399
    %v5415 = vpop.f32.mrf.mxu0
    %v5416 = vadd.f32 0.0, %v5415
    %v5417 = vpop.f32.mrf.mxu0
    %v5418 = vadd.f32 0.0, %v5417
    %5419 = vdwg.mxu0
    %v5420 = vadd.f32 %v5343, %v5411
    %v5421 = vadd.f32 %v5344, %v5413
    %v5422 = vadd.f32 %v5345, %v5416
    %v5423 = vadd.f32 %v5346, %v5418
    %v5424 = vld [vmem:[%s9] sm:$0x1]
    %v5426 = vperm.slane %v5424, 0
    %v5428 = vadd.f32 %v5420, %v5426
    %v5429 = vadd.f32 %v5421, %v5426
    %v5430 = vadd.f32 %v5422, %v5426
    %v5431 = vadd.f32 %v5423, %v5426
    %v5432 = vpack.c.bf16 %v5429, %v5428
    %v5433 = vpack.c.bf16 %v5431, %v5430
    %v5434 = vld [vmem:[%s10] sm:$0xf]
    %v5435 = vld [vmem:[%s10 + $0x4] sm:$0xf]
    %v5436 = vld [vmem:[%s10 + $0x8] sm:$0xf]
    %v5437 = vld [vmem:[%s10 + $0xc] sm:$0xf]
    %v5438 = vld [vmem:[%s10 + $0x10] sm:$0xf]
    %v5439 = vld [vmem:[%s10 + $0x14] sm:$0xf]
    %v5440 = vld [vmem:[%s10 + $0x18] sm:$0xf]
    %v5441 = vld [vmem:[%s10 + $0x1c] sm:$0xf]
    %v5442 = vld [vmem:[%s10 + $0x20] sm:$0xf]
    %v5443 = vld [vmem:[%s10 + $0x24] sm:$0xf]
    %v5444 = vld [vmem:[%s10 + $0x28] sm:$0xf]
    %v5445 = vld [vmem:[%s10 + $0x2c] sm:$0xf]
    %v5446 = vld [vmem:[%s10 + $0x30] sm:$0xf]
    %v5447 = vld [vmem:[%s10 + $0x34] sm:$0xf]
    %v5448 = vld [vmem:[%s10 + $0x38] sm:$0xf]
    %v5449 = vld [vmem:[%s10 + $0x3c] sm:$0xf]
    %v5450 = vld [vmem:[%s11] sm:$0x1]
    %v5452 = vperm.slane %v5450, 0
    %v5470 = vunpack.c.l.b16 %v5434
    %v5471 = vunpack.c.l.b16 %v5435
    %v5472 = vunpack.c.l.b16 %v5436
    %v5473 = vunpack.c.l.b16 %v5437
    %v5474 = vunpack.c.l.b16 %v5438
    %v5475 = vunpack.c.l.b16 %v5439
    %v5476 = vunpack.c.l.b16 %v5440
    %v5477 = vunpack.c.l.b16 %v5441
    %v5478 = vunpack.c.l.b16 %v5442
    %v5479 = vunpack.c.l.b16 %v5443
    %v5480 = vunpack.c.l.b16 %v5444
    %v5481 = vunpack.c.l.b16 %v5445
    %v5482 = vunpack.c.l.b16 %v5446
    %v5483 = vunpack.c.l.b16 %v5447
    %v5484 = vunpack.c.l.b16 %v5448
    %v5485 = vunpack.c.l.b16 %v5449
    %v5486 = vpack.c.b16 %v5471, %v5470
    %v5487 = vpack.c.b16 %v5473, %v5472
    %v5488 = vpack.c.b16 %v5475, %v5474
    %v5489 = vpack.c.b16 %v5477, %v5476
    %v5490 = vpack.c.b16 %v5479, %v5478
    %v5491 = vpack.c.b16 %v5481, %v5480
    %v5492 = vpack.c.b16 %v5483, %v5482
    %v5493 = vpack.c.b16 %v5485, %v5484
    %5502 = vmatpush.bf16.msra.mxu0 %v5493
    %5503 = vmatpush.bf16.msra.mxu0 %v5492
    %5504 = vmatpush.bf16.msra.mxu0 %v5491
    %5505 = vmatpush.bf16.msra.mxu0 %v5490
    %5506 = vmatpush.bf16.msra.mxu0 %v5489
    %5507 = vmatpush.bf16.msra.mxu0 %v5488
    %5508 = vmatpush.bf16.msra.mxu0 %v5487
    %5509 = vmatpush.bf16.msra.mxu0 %v5486
    %5510 = vmatmul.bf16.gmra.mxu0 %v5432
    %v5511 = vpop.f32.mrf.mxu0
    %v5512 = vadd.f32 %v5452, %v5511
    %v5513 = vpop.f32.mrf.mxu0
    %v5514 = vadd.f32 %v5452, %v5513
    %5515 = vmatmul.bf16.gmra.mxu0 %v5433
    %v5516 = vpop.f32.mrf.mxu0
    %v5517 = vadd.f32 %v5452, %v5516
    %v5518 = vpop.f32.mrf.mxu0
    %v5519 = vadd.f32 %v5452, %v5518
    %5520 = vdwg.mxu0
    %5521 = vst [vmem:[#allocation10] sm:$0xff] %v5512
    %5522 = vst [vmem:[#allocation10 + $0x8] sm:$0xff] %v5514
    %5523 = vst [vmem:[#allocation10 + $0x10] sm:$0xff] %v5517
    %5524 = vst [vmem:[#allocation10 + $0x18] sm:$0xff] %v5519
    // Predicated region
    $region89: #{tpu_custom_call.1} parent=1 // pred_check
      _
    $region90: #{tpu_custom_call.1} parent=1 // pred_check_branch
      %5526 = sbr.rel (0) target = $region92
    $region91: #{tpu_custom_call.1} parent=1 // pred_region
      %5528 = vsyncadd [#allocation8], 0
      %s5529 = sshll.u32 [#allocation10], 4
      %s5530 = int_to_ptr.vmem [resolvable:$true] %s5529
      %s5531 = sshll.u32 %s12, 4
      %s5532 = int_to_ptr.hbm [resolvable:$true] %s5531
      %5537 = dma.vmem_to_hbm [thread:$0]  %s5530, 512, %s5532, [#allocation8], 128, 128, 8
    $region92: #{tpu_custom_call.1} parent=1 // pred_fallthru
      _
    // Predicated region
    $region93: #{tpu_custom_call.1} parent=1 // pred_check
      _
    $region94: #{tpu_custom_call.1} parent=1 // pred_check_branch
      %5539 = sbr.rel (0) target = $region96
    $region95: #{tpu_custom_call.1} parent=1 // pred_region
      %5541 = dma.done [#allocation8], 512
    $region96: #{tpu_custom_call.1} parent=1 // pred_fallthru
      _
    %5542 = vsyncpa [#allocation8], 1
    %5543 = vsyncpa [#allocation9], 1

</llo_original>
